<compile_context>
chip_gen: v6e
topology: v6e:2x2x1
jax: 0.10.0
libtpu: 0.0.40
codegen_flags: <defaults>
</compile_context>

<pallas_src>
import functools

import jax
import jax.numpy as jnp
from jax.experimental import pallas as pl
from jax.experimental.pallas import tpu as pltpu

# PROTEINS: 3 node features, 2 classes; hidden width 16 (as in the module).
NUM_NODE_FEATURES = 3
HIDDEN = 16
NUM_CLASSES = 2

# Packed / padded layout constants.
NODES_PER_GRAPH = 64                          # per-graph node budget (PROTEINS avg ~39)
TILE_N = 512                                  # node rows per grid step (multiple of 256 -> fills v6e/v7x MXU)
GRAPHS_PER_TILE = TILE_N // NODES_PER_GRAPH   # = 8 (sublane aligned)
F_PAD = 16                                    # input feature dim (bf16 sublane multiple)
H_PAD = 128                                   # hidden dim (lane aligned)
C_PAD = 128                                   # class dim (lane-dense output stores)


def gcn_kernel(a_ref, x_ref, dcol_ref, drow_ref, p_ref,
               w1_ref, b1_ref, w2_ref, b2_ref, o_ref):
    # a_ref:   [TILE_N, TILE_N] bf16, exact 0/1 diagonal block of (A + I)
    # dcol_ref:[TILE_N, 1]      f32,  D^{-1/2} for this tile's nodes (column form)
    # drow_ref:[1, 1, TILE_N]   f32,  same vector, row form
    # p_ref:   [1, GPT, TILE_N] f32,  mean-pool weights (1/n_g on member nodes)
    a = a_ref[...]
    dcol = dcol_ref[...]
    drow = drow_ref[0]                                        # [1, TILE_N]

    # ---- layer 1: h = relu(Dinv (A+I) Dinv X W1 + b1) ----
    xw = jnp.dot(x_ref[...], w1_ref[...],
                 preferred_element_type=jnp.float32)          # [TILE_N, H] f32
    xw = (dcol * xw).astype(jnp.bfloat16)                     # Dinv @ (X W1)
    agg = jnp.dot(a, xw, preferred_element_type=jnp.float32)  # [TILE_N, H] f32
    h = jnp.maximum(dcol * agg + b1_ref[...], 0.0).astype(jnp.bfloat16)

    # ---- layer 2 with mean-pool folded in ----
    #   pooled = P (A_hat h W2 + b2) = ((P Dinv (A+I) Dinv) h) W2 + b2
    # (P rows sum to 1 for real graphs; padded graph / node rows carry zero
    #  weight because their P entries, dinv and A columns are all zero.)
    p1 = (p_ref[0] * drow).astype(jnp.bfloat16)               # P @ Dinv   [GPT, TILE_N]
    r = jnp.dot(p1, a, preferred_element_type=jnp.float32)    # (P Dinv)(A+I)
    r = (r * drow).astype(jnp.bfloat16)                       # ... @ Dinv
    ph = jnp.dot(r, h, preferred_element_type=jnp.float32)    # [GPT, H] f32
    pooled = jnp.dot(ph.astype(jnp.bfloat16), w2_ref[...],
                     preferred_element_type=jnp.float32) + b2_ref[...]   # [GPT, C]

    # ---- masked log_softmax over the real class lanes (f32) ----
    col = jax.lax.broadcasted_iota(jnp.int32, pooled.shape, 1)
    valid = col < NUM_CLASSES
    logits = jnp.where(valid, pooled, jnp.float32(-1e30))
    m = jnp.max(logits, axis=1, keepdims=True)
    ex = jnp.where(valid, jnp.exp(logits - m), 0.0)
    lse = jnp.log(jnp.sum(ex, axis=1, keepdims=True)) + m
    o_ref[...] = (logits - lse)[None]


@functools.partial(jax.jit, static_argnames=("num_graphs",))
def gcn_forward(x, edge_index, batch, num_graphs, params):
    """x:[N,F] f32, edge_index:[2,E] i32, batch:[N] i32 (nodes contiguous per
    graph, PyG batching convention; every graph must have <= NODES_PER_GRAPH
    nodes)."""
    w1, b1, w2, b2 = params
    num_nodes, num_feat = x.shape

    gpt = GRAPHS_PER_TILE
    g_pad = int(pl.cdiv(num_graphs, gpt)) * gpt
    num_tiles = g_pad // gpt
    n_pad = num_tiles * TILE_N                     # == g_pad * NODES_PER_GRAPH

    # ---- pack nodes: graph g occupies rows [g*NPG, g*NPG + n_g) ----
    counts = jnp.zeros((g_pad,), jnp.float32).at[batch].add(1.0)
    csum = jnp.cumsum(counts.astype(jnp.int32))
    starts = jnp.concatenate([jnp.zeros((1,), jnp.int32), csum[:-1]])
    local = jnp.arange(num_nodes, dtype=jnp.int32) - starts[batch]
    packed = batch * NODES_PER_GRAPH + local       # packed global row per node
    col_in_tile = packed % TILE_N                  # column inside its diagonal block

    # ---- exact 0/1 (A + I) diagonal blocks, stacked by row tile (bf16) ----
    # Off-diagonal all-zero blocks are never materialized.
    src, dst = edge_index[0], edge_index[1]
    a_blk = jnp.zeros((n_pad, TILE_N), jnp.bfloat16)
    a_blk = a_blk.at[packed[dst], col_in_tile[src]].add(1.0)   # A[dst, src] += 1
    a_blk = a_blk.at[packed, col_in_tile].add(1.0)             # self loops (real nodes)

    deg = jnp.sum(a_blk, axis=1, dtype=jnp.float32)
    dinv = jnp.where(deg > 0, jax.lax.rsqrt(deg), 0.0)         # f32, kernel-side scaling
    dinv_col = dinv[:, None]                                   # [n_pad, 1]
    dinv_row = dinv.reshape(num_tiles, 1, TILE_N)              # [tiles, 1, TILE_N]

    # ---- mean-pool weights, one [GPT, TILE_N] block per tile ----
    p = jnp.zeros((g_pad, TILE_N), jnp.float32)
    p = p.at[batch, col_in_tile].add(1.0)
    p = p / jnp.maximum(counts, 1.0)[:, None]
    p = p.reshape(num_tiles, gpt, TILE_N)

    # ---- packed / padded dense operands (bf16 MXU inputs, f32 biases) ----
    x_p = jnp.zeros((n_pad, F_PAD), jnp.bfloat16).at[packed, :num_feat].set(
        x.astype(jnp.bfloat16))
    w1_p = jnp.zeros((F_PAD, H_PAD), jnp.bfloat16).at[:num_feat, :HIDDEN].set(
        w1.astype(jnp.bfloat16))
    w2_p = jnp.zeros((H_PAD, C_PAD), jnp.bfloat16).at[:HIDDEN, :NUM_CLASSES].set(
        w2.astype(jnp.bfloat16))
    b1_p = jnp.zeros((1, H_PAD), jnp.float32).at[0, :HIDDEN].set(
        b1.astype(jnp.float32))
    b2_p = jnp.zeros((1, C_PAD), jnp.float32).at[0, :NUM_CLASSES].set(
        b2.astype(jnp.float32))

    out = pl.pallas_call(
        gcn_kernel,
        out_shape=jax.ShapeDtypeStruct((num_tiles, gpt, C_PAD), jnp.float32),
        grid=(num_tiles,),
        in_specs=[
            pl.BlockSpec((TILE_N, TILE_N), lambda i: (i, 0)),   # (A+I) diag block, bf16
            pl.BlockSpec((TILE_N, F_PAD), lambda i: (i, 0)),    # X (packed), bf16
            pl.BlockSpec((TILE_N, 1), lambda i: (i, 0)),        # dinv (column), f32
            pl.BlockSpec((1, 1, TILE_N), lambda i: (i, 0, 0)),  # dinv (row), f32
            pl.BlockSpec((1, gpt, TILE_N), lambda i: (i, 0, 0)),# P (mean weights), f32
            pl.BlockSpec((F_PAD, H_PAD), lambda i: (0, 0)),     # W1 bf16
            pl.BlockSpec((1, H_PAD), lambda i: (0, 0)),         # b1 f32
            pl.BlockSpec((H_PAD, C_PAD), lambda i: (0, 0)),     # W2 bf16
            pl.BlockSpec((1, C_PAD), lambda i: (0, 0)),         # b2 f32
        ],
        out_specs=pl.BlockSpec((1, gpt, C_PAD), lambda i: (i, 0, 0)),
        compiler_params=pltpu.CompilerParams(
            dimension_semantics=("parallel",)      # independent tiles -> megacore on v7x
        ),
    )(a_blk, x_p, dinv_col, dinv_row, p, w1_p, b1_p, w2_p, b2_p)

    return out.reshape(g_pad, C_PAD)[:num_graphs, :NUM_CLASSES]


def ref_forward(x, edge_index, batch, num_graphs, params):
    # Pure-JAX f32 reference of the original module's forward.
    w1, b1, w2, b2 = params
    n = x.shape[0]
    src, dst = edge_index[0], edge_index[1]
    A = jnp.zeros((n, n), jnp.float32).at[dst, src].add(1.0)
    A = A + jnp.eye(n, dtype=jnp.float32)
    deg = jnp.sum(A, axis=1)
    dinv = jnp.where(deg > 0, 1.0 / jnp.sqrt(deg), 0.0)
    A_hat = dinv[:, None] * A * dinv[None, :]

    h = jnp.maximum(A_hat @ (x @ w1) + b1, 0.0)
    h2 = A_hat @ (h @ w2) + b2
    counts = jnp.zeros((num_graphs,), jnp.float32).at[batch].add(1.0)
    pooled = (
        jnp.zeros((num_graphs, h2.shape[1]), jnp.float32).at[batch].add(h2)
        / counts[:, None]
    )
    return jax.nn.log_softmax(pooled, axis=1)


if __name__ == "__main__":
    key = jax.random.PRNGKey(0)
    k_x, k_w1, k_b1, k_w2, k_b2 = jax.random.split(key, 5)

    # Synthetic batch of 16 PROTEINS-like graphs (3 node features each),
    # varying sizes, rings with edges listed in both directions.
    graph_sizes = [6, 8, 10, 12] * 4
    assert max(graph_sizes) <= NODES_PER_GRAPH
    num_graphs = len(graph_sizes)
    num_nodes = sum(graph_sizes)

    x = jax.random.normal(k_x, (num_nodes, NUM_NODE_FEATURES), jnp.float32)

    srcs, dsts, batch_list = [], [], []
    offset = 0
    for g, n in enumerate(graph_sizes):
        for i in range(n):
            j = (i + 1) % n
            srcs += [offset + i, offset + j]
            dsts += [offset + j, offset + i]
        batch_list += [g] * n
        offset += n
    edge_index = jnp.array([srcs, dsts], dtype=jnp.int32)
    batch = jnp.array(batch_list, dtype=jnp.int32)

    # Deterministic parameter init, matching GCNConv shapes.
    w1 = jax.random.normal(k_w1, (NUM_NODE_FEATURES, HIDDEN), jnp.float32) * 0.5
    b1 = jax.random.normal(k_b1, (HIDDEN,), jnp.float32) * 0.1
    w2 = jax.random.normal(k_w2, (HIDDEN, NUM_CLASSES), jnp.float32) * 0.3
    b2 = jax.random.normal(k_b2, (NUM_CLASSES,), jnp.float32) * 0.1
    params = (w1, b1, w2, b2)

    out = gcn_forward(x, edge_index, batch, num_graphs, params)
    out = jax.block_until_ready(out)

    ref = ref_forward(x, edge_index, batch, num_graphs, params)
    assert out.shape == (num_graphs, NUM_CLASSES)
    assert bool(jnp.all(jnp.isfinite(out)))
    # bf16 MXU inputs (exact 0/1 adjacency, f32 dinv/accumulation) vs. pure-f32
    # reference: loose tolerance.
    assert bool(jnp.allclose(out, ref, atol=5e-2, rtol=5e-2)), (
        float(jnp.max(jnp.abs(out - ref))))
    print("KERNEL_OK")
</pallas_src>

<mosaic_0001>
module attributes {stable_mosaic.version = 11 : i64} {
  func.func private @main(%arg0: i32) attributes {dimension_semantics = [#tpu.dimension_semantics<core_parallel>], iteration_bounds = array<i64: 2>, tpu.core_type = #tpu.core_type<sc_scalar_subcore>, window_params = []} {
    return
  }
}

module attributes {stable_mosaic.version = 11 : i64} {
  func.func private @main(%arg0: i32) attributes {dimension_semantics = [#tpu.dimension_semantics<core_parallel>], iteration_bounds = array<i64: 2>, tpu.core_type = #tpu.core_type<sc_scalar_subcore>, window_params = []} {
    return
  }
}

module attributes {stable_mosaic.version = 11 : i64} {
  func.func @gcn_kernel(%arg0: i32, %arg1: memref<512x512xbf16, #tpu.memory_space<vmem>>, %arg2: memref<512x16xbf16, #tpu.memory_space<vmem>>, %arg3: memref<512x1xf32, #tpu.memory_space<vmem>>, %arg4: memref<1x1x512xf32, #tpu.memory_space<vmem>>, %arg5: memref<1x8x512xf32, #tpu.memory_space<vmem>>, %arg6: memref<16x128xbf16, #tpu.memory_space<vmem>>, %arg7: memref<1x128xf32, #tpu.memory_space<vmem>>, %arg8: memref<128x128xbf16, #tpu.memory_space<vmem>>, %arg9: memref<1x128xf32, #tpu.memory_space<vmem>>, %arg10: memref<1x8x128xf32, #tpu.memory_space<vmem>>) attributes {dimension_semantics = [#tpu.dimension_semantics<parallel>], iteration_bounds = array<i64: 2>, scalar_prefetch = 0 : i64, scratch_operands = 0 : i64, tpu.core_type = #tpu.core_type<tc>, window_params = [{transform_indices = @transform_0, window_bounds = array<i64: 512, 512>}, {transform_indices = @transform_1, window_bounds = array<i64: 512, 16>}, {transform_indices = @transform_2, window_bounds = array<i64: 512, 1>}, {transform_indices = @transform_3, window_bounds = array<i64: 1, 1, 512>}, {transform_indices = @transform_4, window_bounds = array<i64: 1, 8, 512>}, {pipeline_mode = #tpu.pipeline_mode<synchronous>, transform_indices = @transform_5, window_bounds = array<i64: 16, 128>}, {pipeline_mode = #tpu.pipeline_mode<synchronous>, transform_indices = @transform_6, window_bounds = array<i64: 1, 128>}, {pipeline_mode = #tpu.pipeline_mode<synchronous>, transform_indices = @transform_7, window_bounds = array<i64: 128, 128>}, {pipeline_mode = #tpu.pipeline_mode<synchronous>, transform_indices = @transform_8, window_bounds = array<i64: 1, 128>}, {transform_indices = @transform_9, window_bounds = array<i64: 1, 8, 128>}]} {
    %c0 = arith.constant 0 : index
    %c0_0 = arith.constant 0 : index
    %0 = vector.load %arg1[%c0, %c0_0] : memref<512x512xbf16, #tpu.memory_space<vmem>>, vector<512x512xbf16>
    %c0_1 = arith.constant 0 : index
    %c0_2 = arith.constant 0 : index
    %1 = vector.load %arg3[%c0_1, %c0_2] : memref<512x1xf32, #tpu.memory_space<vmem>>, vector<512x1xf32>
    %c0_3 = arith.constant 0 : index
    %c0_4 = arith.constant 0 : index
    %c0_5 = arith.constant 0 : index
    %2 = vector.load %arg4[%c0_3, %c0_4, %c0_5] : memref<1x1x512xf32, #tpu.memory_space<vmem>>, vector<1x1x512xf32>
    %3 = vector.shape_cast %2 : vector<1x1x512xf32> to vector<1x512xf32>
    %c0_6 = arith.constant 0 : index
    %c0_7 = arith.constant 0 : index
    %4 = vector.load %arg2[%c0_6, %c0_7] : memref<512x16xbf16, #tpu.memory_space<vmem>>, vector<512x16xbf16>
    %c0_8 = arith.constant 0 : index
    %c0_9 = arith.constant 0 : index
    %5 = vector.load %arg6[%c0_8, %c0_9] : memref<16x128xbf16, #tpu.memory_space<vmem>>, vector<16x128xbf16>
    %cst = arith.constant dense<0.000000e+00> : vector<512x128xf32>
    %6 = tpu.matmul %4, %5, %cst {dimension_numbers = #tpu.dot_dimension_numbers<[1], [0], [0], [1], [0, 0, 1, 1], [], []>} : vector<512x16xbf16>, vector<16x128xbf16>, vector<512x128xf32> -> vector<512x128xf32>
    %7 = vector.broadcast %1 : vector<512x1xf32> to vector<512x128xf32>
    %8 = arith.mulf %7, %6 : vector<512x128xf32>
    %9 = arith.truncf %8 : vector<512x128xf32> to vector<512x128xbf16>
    %cst_10 = arith.constant dense<0.000000e+00> : vector<512x128xf32>
    %10 = tpu.matmul %0, %9, %cst_10 {dimension_numbers = #tpu.dot_dimension_numbers<[1], [0], [0], [1], [0, 0, 1, 1], [], []>} : vector<512x512xbf16>, vector<512x128xbf16>, vector<512x128xf32> -> vector<512x128xf32>
    %11 = vector.broadcast %1 : vector<512x1xf32> to vector<512x128xf32>
    %12 = arith.mulf %11, %10 : vector<512x128xf32>
    %c0_11 = arith.constant 0 : index
    %c0_12 = arith.constant 0 : index
    %13 = vector.load %arg7[%c0_11, %c0_12] : memref<1x128xf32, #tpu.memory_space<vmem>>, vector<1x128xf32>
    %14 = vector.broadcast %13 : vector<1x128xf32> to vector<512x128xf32>
    %15 = arith.addf %12, %14 : vector<512x128xf32>
    %cst_13 = arith.constant 0.000000e+00 : f32
    %16 = vector.broadcast %cst_13 : f32 to vector<512x128xf32>
    %17 = arith.maximumf %15, %16 : vector<512x128xf32>
    %18 = arith.truncf %17 : vector<512x128xf32> to vector<512x128xbf16>
    %c0_14 = arith.constant 0 : index
    %c0_15 = arith.constant 0 : index
    %c0_16 = arith.constant 0 : index
    %19 = vector.load %arg5[%c0_14, %c0_15, %c0_16] : memref<1x8x512xf32, #tpu.memory_space<vmem>>, vector<1x8x512xf32>
    %20 = vector.shape_cast %19 : vector<1x8x512xf32> to vector<8x512xf32>
    %21 = vector.broadcast %3 : vector<1x512xf32> to vector<8x512xf32>
    %22 = arith.mulf %20, %21 : vector<8x512xf32>
    %23 = arith.truncf %22 : vector<8x512xf32> to vector<8x512xbf16>
    %cst_17 = arith.constant dense<0.000000e+00> : vector<8x512xf32>
    %24 = tpu.matmul %23, %0, %cst_17 {dimension_numbers = #tpu.dot_dimension_numbers<[1], [0], [0], [1], [0, 0, 1, 1], [], []>} : vector<8x512xbf16>, vector<512x512xbf16>, vector<8x512xf32> -> vector<8x512xf32>
    %25 = vector.broadcast %3 : vector<1x512xf32> to vector<8x512xf32>
    %26 = arith.mulf %24, %25 : vector<8x512xf32>
    %27 = arith.truncf %26 : vector<8x512xf32> to vector<8x512xbf16>
    %cst_18 = arith.constant dense<0.000000e+00> : vector<8x128xf32>
    %28 = tpu.matmul %27, %18, %cst_18 {dimension_numbers = #tpu.dot_dimension_numbers<[1], [0], [0], [1], [0, 0, 1, 1], [], []>} : vector<8x512xbf16>, vector<512x128xbf16>, vector<8x128xf32> -> vector<8x128xf32>
    %29 = arith.truncf %28 : vector<8x128xf32> to vector<8x128xbf16>
    %c0_19 = arith.constant 0 : index
    %c0_20 = arith.constant 0 : index
    %30 = vector.load %arg8[%c0_19, %c0_20] : memref<128x128xbf16, #tpu.memory_space<vmem>>, vector<128x128xbf16>
    %cst_21 = arith.constant dense<0.000000e+00> : vector<8x128xf32>
    %31 = tpu.matmul %29, %30, %cst_21 {dimension_numbers = #tpu.dot_dimension_numbers<[1], [0], [0], [1], [0, 0, 1, 1], [], []>} : vector<8x128xbf16>, vector<128x128xbf16>, vector<8x128xf32> -> vector<8x128xf32>
    %c0_22 = arith.constant 0 : index
    %c0_23 = arith.constant 0 : index
    %32 = vector.load %arg9[%c0_22, %c0_23] : memref<1x128xf32, #tpu.memory_space<vmem>>, vector<1x128xf32>
    %33 = vector.broadcast %32 : vector<1x128xf32> to vector<8x128xf32>
    %34 = arith.addf %31, %33 : vector<8x128xf32>
    %35 = tpu.iota {dimensions = array<i32: 1>} : vector<8x128xi32>
    %c2_i32 = arith.constant 2 : i32
    %36 = vector.broadcast %c2_i32 : i32 to vector<8x128xi32>
    %37 = arith.cmpi slt, %35, %36 : vector<8x128xi32>
    %cst_24 = arith.constant -1.000000e+30 : f32
    %38 = vector.broadcast %cst_24 : f32 to vector<8x128xf32>
    %39 = arith.select %37, %34, %38 : vector<8x128xi1>, vector<8x128xf32>
    %cst_25 = arith.constant dense<0xFF800000> : vector<8xf32>
    %40 = vector.multi_reduction <maximumf>, %39, %cst_25 [1] : vector<8x128xf32> to vector<8xf32>
    %41 = vector.shape_cast %40 : vector<8xf32> to vector<8x1xf32>
    %42 = vector.broadcast %41 : vector<8x1xf32> to vector<8x128xf32>
    %43 = arith.subf %39, %42 : vector<8x128xf32>
    %44 = math.exp %43 : vector<8x128xf32>
    %cst_26 = arith.constant 0.000000e+00 : f32
    %45 = vector.broadcast %cst_26 : f32 to vector<8x128xf32>
    %46 = arith.select %37, %44, %45 : vector<8x128xi1>, vector<8x128xf32>
    %cst_27 = arith.constant dense<0.000000e+00> : vector<8xf32>
    %47 = vector.multi_reduction <add>, %46, %cst_27 [1] : vector<8x128xf32> to vector<8xf32>
    %48 = vector.shape_cast %47 : vector<8xf32> to vector<8x1xf32>
    %49 = math.log %48 : vector<8x1xf32>
    %50 = arith.addf %49, %41 : vector<8x1xf32>
    %51 = vector.broadcast %50 : vector<8x1xf32> to vector<8x128xf32>
    %52 = arith.subf %39, %51 : vector<8x128xf32>
    %53 = vector.shape_cast %52 : vector<8x128xf32> to vector<1x8x128xf32>
    %c0_28 = arith.constant 0 : index
    %c0_29 = arith.constant 0 : index
    %c0_30 = arith.constant 0 : index
    %54 = vector.load %arg10[%c0_28, %c0_29, %c0_30] : memref<1x8x128xf32, #tpu.memory_space<vmem>>, vector<1x8x128xf32>
    tpu.vector_store %arg10[%c0_28, %c0_29, %c0_30], %53 {strides = array<i32>} : memref<1x8x128xf32, #tpu.memory_space<vmem>>, vector<1x8x128xf32>,
    return
  }
  func.func @transform_0(%arg0: i32) -> (i32, i32) {
    %c0_i32 = arith.constant 0 : i32
    %c0_i32_0 = arith.constant 0 : i32
    return %arg0, %c0_i32 : i32, i32
  }
  func.func @transform_1(%arg0: i32) -> (i32, i32) {
    %c0_i32 = arith.constant 0 : i32
    %c0_i32_0 = arith.constant 0 : i32
    return %arg0, %c0_i32 : i32, i32
  }
  func.func @transform_2(%arg0: i32) -> (i32, i32) {
    %c0_i32 = arith.constant 0 : i32
    %c0_i32_0 = arith.constant 0 : i32
    return %arg0, %c0_i32 : i32, i32
  }
  func.func @transform_3(%arg0: i32) -> (i32, i32, i32) {
    %c0_i32 = arith.constant 0 : i32
    %c0_i32_0 = arith.constant 0 : i32
    %c0_i32_1 = arith.constant 0 : i32
    return %arg0, %c0_i32, %c0_i32_0 : i32, i32, i32
  }
  func.func @transform_4(%arg0: i32) -> (i32, i32, i32) {
    %c0_i32 = arith.constant 0 : i32
    %c0_i32_0 = arith.constant 0 : i32
    %c0_i32_1 = arith.constant 0 : i32
    return %arg0, %c0_i32, %c0_i32_0 : i32, i32, i32
  }
  func.func @transform_5(%arg0: i32) -> (i32, i32) {
    %c0_i32 = arith.constant 0 : i32
    %c0_i32_0 = arith.constant 0 : i32
    %c0_i32_1 = arith.constant 0 : i32
    return %c0_i32, %c0_i32_0 : i32, i32
  }
  func.func @transform_6(%arg0: i32) -> (i32, i32) {
    %c0_i32 = arith.constant 0 : i32
    %c0_i32_0 = arith.constant 0 : i32
    %c0_i32_1 = arith.constant 0 : i32
    return %c0_i32, %c0_i32_0 : i32, i32
  }
  func.func @transform_7(%arg0: i32) -> (i32, i32) {
    %c0_i32 = arith.constant 0 : i32
    %c0_i32_0 = arith.constant 0 : i32
    %c0_i32_1 = arith.constant 0 : i32
    return %c0_i32, %c0_i32_0 : i32, i32
  }
  func.func @transform_8(%arg0: i32) -> (i32, i32) {
    %c0_i32 = arith.constant 0 : i32
    %c0_i32_0 = arith.constant 0 : i32
    %c0_i32_1 = arith.constant 0 : i32
    return %c0_i32, %c0_i32_0 : i32, i32
  }
  func.func @transform_9(%arg0: i32) -> (i32, i32, i32) {
    %c0_i32 = arith.constant 0 : i32
    %c0_i32_0 = arith.constant 0 : i32
    %c0_i32_1 = arith.constant 0 : i32
    return %arg0, %c0_i32, %c0_i32_0 : i32, i32, i32
  }
}

</mosaic_0001>

<llo_original>
// kernel: gcn_forward.1
$region0: #{gcn_forward.1}
  #allocation0 [shape = 'u32[]', space=smem, size = 0x4, offset = 0x4, fixed_abs, tag = 'smem constant byte address 0x4 - core index']
  #allocation1 [shape = 'u32[144,128]{1,0:T(1,128)}', space=vmem, size = 0x12000, scoped, tag = 'internal scratch']
  %s0 = inlined_call_operand.vmem [shape: bf16[1024,512], index: 0, kind: input, shape index: {}]
  %s1 = inlined_call_operand.vmem [shape: bf16[1024,16], index: 1, kind: input, shape index: {}]
  %s2 = inlined_call_operand.vmem [shape: f32[1024,1], index: 2, kind: input, shape index: {}]
  %s3 = inlined_call_operand.vmem [shape: f32[2,1,512], index: 3, kind: input, shape index: {}]
  %s4 = inlined_call_operand.vmem [shape: f32[2,8,512], index: 4, kind: input, shape index: {}]
  %s5 = inlined_call_operand.vmem [shape: bf16[16,128], index: 5, kind: input, shape index: {}]
  %s6 = inlined_call_operand.vmem [shape: f32[1,128], index: 6, kind: input, shape index: {}]
  %s7 = inlined_call_operand.vmem [shape: bf16[128,128], index: 7, kind: input, shape index: {}]
  %s8 = inlined_call_operand.vmem [shape: f32[1,128], index: 8, kind: input, shape index: {}]
  %s9 = inlined_call_operand.vmem [shape: f32[2,8,128], index: 9, kind: output, shape index: {}]
  %s10 = sld [smem:[#allocation0]]
  $region69: #{gcn_forward.1} parent=0
    _
  %s12 = ssub.s32 1, %s10
  %s13 = scalar_select 0, %s12, %s10
  loop: start=0, step=1, limit=4
  $region2: #{gcn_forward.1} parent=0 // loop_pre_header
    _
  $region3: #{gcn_forward.1} parent=0 // loop_header
    %s15 = sphi 0, %s19
    %p16 = scmp.ge.s32.totalorder %s15, 4
    %s25 = sphi 0, %s27
    %s28 = sphi 0, %s25
    %s29 = sphi 0, %s28
    %s45 = sphi 0, %s29
    %s51 = sphi 0, %s53
    %s54 = sphi 0, %s51
    %s55 = sphi 0, %s54
    %s71 = sphi 0, %s55
    %s77 = sphi 0, %s79
    %s80 = sphi 0, %s77
    %s81 = sphi 0, %s80
    %s97 = sphi 0, %s81
    %s103 = sphi 0, %s105
    %s106 = sphi 0, %s103
    %s107 = sphi 0, %s106
    %s123 = sphi 0, %s107
    %s129 = sphi 0, %s131
    %s132 = sphi 0, %s129
    %s133 = sphi 0, %s132
    %s149 = sphi 0, %s133
    %s153 = sphi 0, %s153
    %s155 = sphi 0, %s153
    %s156 = sphi 0, %s155
    %s170 = sphi 0, %s156
    %s174 = sphi 0, %s174
    %s176 = sphi 0, %s174
    %s177 = sphi 0, %s176
    %s191 = sphi 0, %s177
    %s195 = sphi 0, %s195
    %s197 = sphi 0, %s195
    %s198 = sphi 0, %s197
    %s212 = sphi 0, %s198
    %s216 = sphi 0, %s216
    %s218 = sphi 0, %s216
    %s219 = sphi 0, %s218
    %s233 = sphi 0, %s219
    %s239 = sphi 0, %s241
    %s242 = sphi 0, %s239
    %s243 = sphi 0, %s242
    %s259 = sphi 0, %s243
  $region4: #{gcn_forward.1} parent=0 // loop_header_branch
    %18 = sbr.rel (%p16) target = $region8
  $region5: #{gcn_forward.1} parent=0 // loop_body
    %s20 = ssub.s32 %s15, 1
    %s21 = ssub.s32 %s15, 2
    %s22 = sadd.s32 %s15, 1
    %s23 = ssub.s32 %s15, %s22
    %p24 = scmp.eq.s32.totalorder %s23, 0
    %s26 = sadd.s32 %s25, 1
    %s27 = scalar_select %p24, %s25, %s26
    %p30 = pneg %p24
    %p31 = scmp.eq.s32.totalorder %s15, 1
    %p32 = por %p30, %p31
    %p33 = scmp.ne.s32.totalorder %s25, %s28
    %p34 = scmp.eq.s32.totalorder %s15, 0
    %p35 = por %p33, %p34
    %p36 = scmp.ne.s32.totalorder %s25, %s28
    %p37 = scmp.eq.s32.totalorder %s20, 1
    %p38 = por %p36, %p37
    %p39 = scmp.ne.s32.totalorder %s28, %s29
    %p40 = scmp.eq.s32.totalorder %s20, 0
    %p41 = por %p39, %p40
    %p42 = scmp.ne.s32.totalorder %s28, %s29
    %p43 = scmp.eq.s32.totalorder %s21, 1
    %p44 = por %p42, %p43
    %p46 = scmp.ne.s32.totalorder %s29, %s45
    %p47 = scmp.eq.s32.totalorder %s21, 0
    %p48 = por %p46, %p47
    %s49 = ssub.s32 %s15, %s22
    %p50 = scmp.eq.s32.totalorder %s49, 0
    %s52 = sadd.s32 %s51, 1
    %s53 = scalar_select %p50, %s51, %s52
    %p56 = pneg %p50
    %p57 = scmp.eq.s32.totalorder %s15, 1
    %p58 = por %p56, %p57
    %p59 = scmp.ne.s32.totalorder %s51, %s54
    %p60 = scmp.eq.s32.totalorder %s15, 0
    %p61 = por %p59, %p60
    %p62 = scmp.ne.s32.totalorder %s51, %s54
    %p63 = scmp.eq.s32.totalorder %s20, 1
    %p64 = por %p62, %p63
    %p65 = scmp.ne.s32.totalorder %s54, %s55
    %p66 = scmp.eq.s32.totalorder %s20, 0
    %p67 = por %p65, %p66
    %p68 = scmp.ne.s32.totalorder %s54, %s55
    %p69 = scmp.eq.s32.totalorder %s21, 1
    %p70 = por %p68, %p69
    %p72 = scmp.ne.s32.totalorder %s55, %s71
    %p73 = scmp.eq.s32.totalorder %s21, 0
    %p74 = por %p72, %p73
    %s75 = ssub.s32 %s15, %s22
    %p76 = scmp.eq.s32.totalorder %s75, 0
    %s78 = sadd.s32 %s77, 1
    %s79 = scalar_select %p76, %s77, %s78
    %p82 = pneg %p76
    %p83 = scmp.eq.s32.totalorder %s15, 1
    %p84 = por %p82, %p83
    %p85 = scmp.ne.s32.totalorder %s77, %s80
    %p86 = scmp.eq.s32.totalorder %s15, 0
    %p87 = por %p85, %p86
    %p88 = scmp.ne.s32.totalorder %s77, %s80
    %p89 = scmp.eq.s32.totalorder %s20, 1
    %p90 = por %p88, %p89
    %p91 = scmp.ne.s32.totalorder %s80, %s81
    %p92 = scmp.eq.s32.totalorder %s20, 0
    %p93 = por %p91, %p92
    %p94 = scmp.ne.s32.totalorder %s80, %s81
    %p95 = scmp.eq.s32.totalorder %s21, 1
    %p96 = por %p94, %p95
    %p98 = scmp.ne.s32.totalorder %s81, %s97
    %p99 = scmp.eq.s32.totalorder %s21, 0
    %p100 = por %p98, %p99
    %s101 = ssub.s32 %s15, %s22
    %p102 = scmp.eq.s32.totalorder %s101, 0
    %s104 = sadd.s32 %s103, 1
    %s105 = scalar_select %p102, %s103, %s104
    %p108 = pneg %p102
    %p109 = scmp.eq.s32.totalorder %s15, 1
    %p110 = por %p108, %p109
    %p111 = scmp.ne.s32.totalorder %s103, %s106
    %p112 = scmp.eq.s32.totalorder %s15, 0
    %p113 = por %p111, %p112
    %p114 = scmp.ne.s32.totalorder %s103, %s106
    %p115 = scmp.eq.s32.totalorder %s20, 1
    %p116 = por %p114, %p115
    %p117 = scmp.ne.s32.totalorder %s106, %s107
    %p118 = scmp.eq.s32.totalorder %s20, 0
    %p119 = por %p117, %p118
    %p120 = scmp.ne.s32.totalorder %s106, %s107
    %p121 = scmp.eq.s32.totalorder %s21, 1
    %p122 = por %p120, %p121
    %p124 = scmp.ne.s32.totalorder %s107, %s123
    %p125 = scmp.eq.s32.totalorder %s21, 0
    %p126 = por %p124, %p125
    %s127 = ssub.s32 %s15, %s22
    %p128 = scmp.eq.s32.totalorder %s127, 0
    %s130 = sadd.s32 %s129, 1
    %s131 = scalar_select %p128, %s129, %s130
    %p134 = pneg %p128
    %p135 = scmp.eq.s32.totalorder %s15, 1
    %p136 = por %p134, %p135
    %p137 = scmp.ne.s32.totalorder %s129, %s132
    %p138 = scmp.eq.s32.totalorder %s15, 0
    %p139 = por %p137, %p138
    %p140 = scmp.ne.s32.totalorder %s129, %s132
    %p141 = scmp.eq.s32.totalorder %s20, 1
    %p142 = por %p140, %p141
    %p143 = scmp.ne.s32.totalorder %s132, %s133
    %p144 = scmp.eq.s32.totalorder %s20, 0
    %p145 = por %p143, %p144
    %p146 = scmp.ne.s32.totalorder %s132, %s133
    %p147 = scmp.eq.s32.totalorder %s21, 1
    %p148 = por %p146, %p147
    %p150 = scmp.ne.s32.totalorder %s133, %s149
    %p151 = scmp.eq.s32.totalorder %s21, 0
    %p152 = por %p150, %p151
    %s154 = sadd.s32 %s153, 1
    %p157 = scmp.eq.s32.totalorder %s15, 1
    %p158 = scmp.ne.s32.totalorder %s153, %s155
    %p159 = scmp.eq.s32.totalorder %s15, 0
    %p160 = por %p158, %p159
    %p161 = scmp.ne.s32.totalorder %s153, %s155
    %p162 = scmp.eq.s32.totalorder %s20, 1
    %p163 = por %p161, %p162
    %p164 = scmp.ne.s32.totalorder %s155, %s156
    %p165 = scmp.eq.s32.totalorder %s20, 0
    %p166 = por %p164, %p165
    %p167 = scmp.ne.s32.totalorder %s155, %s156
    %p168 = scmp.eq.s32.totalorder %s21, 1
    %p169 = por %p167, %p168
    %p171 = scmp.ne.s32.totalorder %s156, %s170
    %p172 = scmp.eq.s32.totalorder %s21, 0
    %p173 = por %p171, %p172
    %s175 = sadd.s32 %s174, 1
    %p178 = scmp.eq.s32.totalorder %s15, 1
    %p179 = scmp.ne.s32.totalorder %s174, %s176
    %p180 = scmp.eq.s32.totalorder %s15, 0
    %p181 = por %p179, %p180
    %p182 = scmp.ne.s32.totalorder %s174, %s176
    %p183 = scmp.eq.s32.totalorder %s20, 1
    %p184 = por %p182, %p183
    %p185 = scmp.ne.s32.totalorder %s176, %s177
    %p186 = scmp.eq.s32.totalorder %s20, 0
    %p187 = por %p185, %p186
    %p188 = scmp.ne.s32.totalorder %s176, %s177
    %p189 = scmp.eq.s32.totalorder %s21, 1
    %p190 = por %p188, %p189
    %p192 = scmp.ne.s32.totalorder %s177, %s191
    %p193 = scmp.eq.s32.totalorder %s21, 0
    %p194 = por %p192, %p193
    %s196 = sadd.s32 %s195, 1
    %p199 = scmp.eq.s32.totalorder %s15, 1
    %p200 = scmp.ne.s32.totalorder %s195, %s197
    %p201 = scmp.eq.s32.totalorder %s15, 0
    %p202 = por %p200, %p201
    %p203 = scmp.ne.s32.totalorder %s195, %s197
    %p204 = scmp.eq.s32.totalorder %s20, 1
    %p205 = por %p203, %p204
    %p206 = scmp.ne.s32.totalorder %s197, %s198
    %p207 = scmp.eq.s32.totalorder %s20, 0
    %p208 = por %p206, %p207
    %p209 = scmp.ne.s32.totalorder %s197, %s198
    %p210 = scmp.eq.s32.totalorder %s21, 1
    %p211 = por %p209, %p210
    %p213 = scmp.ne.s32.totalorder %s198, %s212
    %p214 = scmp.eq.s32.totalorder %s21, 0
    %p215 = por %p213, %p214
    %s217 = sadd.s32 %s216, 1
    %p220 = scmp.eq.s32.totalorder %s15, 1
    %p221 = scmp.ne.s32.totalorder %s216, %s218
    %p222 = scmp.eq.s32.totalorder %s15, 0
    %p223 = por %p221, %p222
    %p224 = scmp.ne.s32.totalorder %s216, %s218
    %p225 = scmp.eq.s32.totalorder %s20, 1
    %p226 = por %p224, %p225
    %p227 = scmp.ne.s32.totalorder %s218, %s219
    %p228 = scmp.eq.s32.totalorder %s20, 0
    %p229 = por %p227, %p228
    %p230 = scmp.ne.s32.totalorder %s218, %s219
    %p231 = scmp.eq.s32.totalorder %s21, 1
    %p232 = por %p230, %p231
    %p234 = scmp.ne.s32.totalorder %s219, %s233
    %p235 = scmp.eq.s32.totalorder %s21, 0
    %p236 = por %p234, %p235
    %s237 = ssub.s32 %s15, %s22
    %p238 = scmp.eq.s32.totalorder %s237, 0
    %s240 = sadd.s32 %s239, 1
    %s241 = scalar_select %p238, %s239, %s240
    %p244 = pneg %p238
    %p245 = scmp.eq.s32.totalorder %s15, 1
    %p246 = por %p244, %p245
    %p247 = scmp.ne.s32.totalorder %s239, %s242
    %p248 = scmp.eq.s32.totalorder %s15, 0
    %p249 = por %p247, %p248
    %p250 = scmp.ne.s32.totalorder %s239, %s242
    %p251 = scmp.eq.s32.totalorder %s20, 1
    %p252 = por %p250, %p251
    %p253 = scmp.ne.s32.totalorder %s242, %s243
    %p254 = scmp.eq.s32.totalorder %s20, 0
    %p255 = por %p253, %p254
    %p256 = scmp.ne.s32.totalorder %s242, %s243
    %p257 = scmp.eq.s32.totalorder %s21, 1
    %p258 = por %p256, %p257
    %p260 = scmp.ne.s32.totalorder %s243, %s259
    %p261 = scmp.eq.s32.totalorder %s21, 0
    %p262 = por %p260, %p261
    %p263 = scmp.le.s32.totalorder 1, %s15
    %p264 = scmp.lt.s32.totalorder %s15, 3
    %p265 = pnand %p263, %p264
    %p266 = pneg %p265
    // Predicated region
    $region9: #{gcn_forward.1} parent=5 // pred_check
      _
    $region10: #{gcn_forward.1} parent=5 // pred_check_branch
      %268 = sbr.rel (%p265) target = $region12
    $region11: #{gcn_forward.1} parent=5 // pred_region
      %s269 = ssub.s32 %s15, 1
      // Predicated region
      $region13: #{gcn_forward.1} parent=11 // pred_check
        %p270 = pneg %p166
      $region14: #{gcn_forward.1} parent=11 // pred_check_branch
        %272 = sbr.rel (%p270) target = $region16
      $region15: #{gcn_forward.1} parent=11 // pred_region
        _
      $region16: #{gcn_forward.1} parent=11 // pred_fallthru
        _
      // Predicated region
      $region17: #{gcn_forward.1} parent=11 // pred_check
        %p273 = pneg %p187
      $region18: #{gcn_forward.1} parent=11 // pred_check_branch
        %275 = sbr.rel (%p273) target = $region20
      $region19: #{gcn_forward.1} parent=11 // pred_region
        _
      $region20: #{gcn_forward.1} parent=11 // pred_fallthru
        _
      // Predicated region
      $region21: #{gcn_forward.1} parent=11 // pred_check
        %p276 = pneg %p208
      $region22: #{gcn_forward.1} parent=11 // pred_check_branch
        %278 = sbr.rel (%p276) target = $region24
      $region23: #{gcn_forward.1} parent=11 // pred_region
        _
      $region24: #{gcn_forward.1} parent=11 // pred_fallthru
        _
      // Predicated region
      $region25: #{gcn_forward.1} parent=11 // pred_check
        %p279 = pneg %p229
      $region26: #{gcn_forward.1} parent=11 // pred_check_branch
        %281 = sbr.rel (%p279) target = $region28
      $region27: #{gcn_forward.1} parent=11 // pred_region
        _
      $region28: #{gcn_forward.1} parent=11 // pred_fallthru
        _
    $region12: #{gcn_forward.1} parent=5 // pred_fallthru
      _
    %p282 = scmp.lt.s32.totalorder %s15, 2
    // Predicated region
    $region29: #{gcn_forward.1} parent=5 // pred_check
      %p283 = pneg %p282
    $region30: #{gcn_forward.1} parent=5 // pred_check_branch
      %285 = sbr.rel (%p283) target = $region32
    $region31: #{gcn_forward.1} parent=5 // pred_region
      // Predicated region
      $region33: #{gcn_forward.1} parent=31 // pred_check
        %p286 = pneg %p35
      $region34: #{gcn_forward.1} parent=31 // pred_check_branch
        %288 = sbr.rel (%p286) target = $region36
      $region35: #{gcn_forward.1} parent=31 // pred_region
        %s289 = smul.u32 64, %s15
        %p290 = scmp.lt.s32.totalorder %s289, 127
        %s291 = scalar_select %p290, %s289, 127
        %s292 = smul.addr %s291, 4
        %s293 = smul.addr %s292, 4
        %s294 = scalar_lea.vmem %s0, %s293
        %s295 = smul.u32 64, %s15
      $region36: #{gcn_forward.1} parent=31 // pred_fallthru
        _
      // Predicated region
      $region37: #{gcn_forward.1} parent=31 // pred_check
        %p296 = pneg %p61
      $region38: #{gcn_forward.1} parent=31 // pred_check_branch
        %298 = sbr.rel (%p296) target = $region40
      $region39: #{gcn_forward.1} parent=31 // pred_region
        %s299 = smul.u32 64, %s15
        %p300 = scmp.lt.s32.totalorder %s299, 127
        %s301 = scalar_select %p300, %s299, 127
        %s302 = smul.addr %s301, 4
        %s303 = scalar_lea.vmem %s1, %s302
        %s304 = smul.u32 64, %s15
      $region40: #{gcn_forward.1} parent=31 // pred_fallthru
        _
      // Predicated region
      $region41: #{gcn_forward.1} parent=31 // pred_check
        %p305 = pneg %p87
      $region42: #{gcn_forward.1} parent=31 // pred_check_branch
        %307 = sbr.rel (%p305) target = $region44
      $region43: #{gcn_forward.1} parent=31 // pred_region
        %s308 = smul.u32 64, %s15
        %p309 = scmp.lt.s32.totalorder %s308, 127
        %s310 = scalar_select %p309, %s308, 127
        %s311 = smul.addr %s310, 8
        %s312 = scalar_lea.vmem %s2, %s311
        %s313 = smul.u32 64, %s15
      $region44: #{gcn_forward.1} parent=31 // pred_fallthru
        _
      // Predicated region
      $region45: #{gcn_forward.1} parent=31 // pred_check
        %p314 = pneg %p113
      $region46: #{gcn_forward.1} parent=31 // pred_check_branch
        %316 = sbr.rel (%p314) target = $region48
      $region47: #{gcn_forward.1} parent=31 // pred_region
        %p317 = scmp.lt.s32.totalorder %s15, 1
        %s318 = scalar_select %p317, %s15, 1
        %s319 = smul.addr %s318, 4
        %s320 = scalar_lea.vmem %s3, %s319
      $region48: #{gcn_forward.1} parent=31 // pred_fallthru
        _
      // Predicated region
      $region49: #{gcn_forward.1} parent=31 // pred_check
        %p321 = pneg %p139
      $region50: #{gcn_forward.1} parent=31 // pred_check_branch
        %323 = sbr.rel (%p321) target = $region52
      $region51: #{gcn_forward.1} parent=31 // pred_region
        %p324 = scmp.lt.s32.totalorder %s15, 1
        %s325 = scalar_select %p324, %s15, 1
        %s326 = smul.addr %s325, 4
        %s327 = smul.addr %s326, 8
        %s328 = scalar_lea.vmem %s4, %s327
      $region52: #{gcn_forward.1} parent=31 // pred_fallthru
        _
    $region32: #{gcn_forward.1} parent=5 // pred_fallthru
      _
    %p329 = scmp.le.s32.totalorder 1, %s15
    %p330 = scmp.lt.s32.totalorder %s15, 3
    %p331 = pnand %p329, %p330
    %p332 = pneg %p331
    // Predicated region
    $region53: #{gcn_forward.1} parent=5 // pred_check
      _
    $region54: #{gcn_forward.1} parent=5 // pred_check_branch
      %334 = sbr.rel (%p331) target = $region56
    $region55: #{gcn_forward.1} parent=5 // pred_region
      %s335 = ssub.s32 %s15, 1
      %s336 = smul.u32 64, %s20
      %p337 = scmp.lt.s32.totalorder %s336, 127
      %s338 = scalar_select %p337, %s336, 127
      %s339 = smul.addr %s338, 4
      %s340 = smul.addr %s339, 4
      %s341 = scalar_lea.vmem %s0, %s340
      %p342 = pneg %p41
      %p343 = pneg %p38
      %s344 = smul.u32 64, %s20
      %p345 = scmp.lt.s32.totalorder %s344, 127
      %s346 = scalar_select %p345, %s344, 127
      %s347 = smul.addr %s346, 4
      %s348 = scalar_lea.vmem %s1, %s347
      %p349 = pneg %p67
      %p350 = pneg %p64
      %s351 = smul.u32 64, %s20
      %p352 = scmp.lt.s32.totalorder %s351, 127
      %s353 = scalar_select %p352, %s351, 127
      %s354 = smul.addr %s353, 8
      %s355 = scalar_lea.vmem %s2, %s354
      %p356 = pneg %p93
      %p357 = pneg %p90
      %p358 = scmp.lt.s32.totalorder %s20, 1
      %s359 = scalar_select %p358, %s20, 1
      %s360 = smul.addr %s359, 4
      %s361 = scalar_lea.vmem %s3, %s360
      %p362 = pneg %p119
      %p363 = pneg %p116
      %p364 = scmp.lt.s32.totalorder %s20, 1
      %s365 = scalar_select %p364, %s20, 1
      %s366 = smul.addr %s365, 4
      %s367 = smul.addr %s366, 8
      %s368 = scalar_lea.vmem %s4, %s367
      %p369 = pneg %p145
      %p370 = pneg %p142
      %p371 = pneg %p166
      %p372 = pneg %p163
      %p373 = pneg %p187
      %p374 = pneg %p184
      %p375 = pneg %p208
      %p376 = pneg %p205
      %p377 = pneg %p229
      %p378 = pneg %p226
      %p379 = pneg %p255
      %p380 = pneg %p252
      %p381 = scmp.lt.s32.totalorder %s20, 1
      %s382 = scalar_select %p381, %s20, 1
      %s383 = smul.addr %s382, 8
      %s384 = scalar_lea.vmem %s9, %s383
      %s385 = smul.u32 64, %s20
      %p386 = scmp.lt.s32.totalorder %s385, 127
      %s387 = scalar_select %p386, %s385, 127
      %s388 = smul.addr %s387, 4
      %s389 = smul.addr %s388, 4
      %s390 = scalar_lea.vmem %s0, %s389
      %s391 = smul.u32 64, %s20
      %s392 = smul.u32 64, %s20
      %p393 = scmp.lt.s32.totalorder %s392, 127
      %s394 = scalar_select %p393, %s392, 127
      %s395 = smul.addr %s394, 4
      %s396 = scalar_lea.vmem %s1, %s395
      %s397 = smul.u32 64, %s20
      %s398 = smul.u32 64, %s20
      %p399 = scmp.lt.s32.totalorder %s398, 127
      %s400 = scalar_select %p399, %s398, 127
      %s401 = smul.addr %s400, 8
      %s402 = scalar_lea.vmem %s2, %s401
      %s403 = smul.u32 64, %s20
      %p404 = scmp.lt.s32.totalorder %s20, 1
      %s405 = scalar_select %p404, %s20, 1
      %s406 = smul.addr %s405, 4
      %s407 = scalar_lea.vmem %s3, %s406
      %p408 = scmp.lt.s32.totalorder %s20, 1
      %s409 = scalar_select %p408, %s20, 1
      %s410 = smul.addr %s409, 4
      %s411 = smul.addr %s410, 8
      %s412 = scalar_lea.vmem %s4, %s411
      %p413 = scmp.lt.s32.totalorder %s20, 1
      %s414 = scalar_select %p413, %s20, 1
      %s415 = smul.addr %s414, 8
      %s416 = scalar_lea.vmem %s9, %s415
      %v418 = vld [vmem:[%s390] sm:$0xff]
      %v419 = vld [vmem:[%s390 + $0x8] sm:$0xff]
      %v420 = vld [vmem:[%s390 + $0x10] sm:$0xff]
      %v421 = vld [vmem:[%s390 + $0x18] sm:$0xff]
      %v422 = vld [vmem:[%s390 + $0x20] sm:$0xff]
      %v423 = vld [vmem:[%s390 + $0x28] sm:$0xff]
      %v424 = vld [vmem:[%s390 + $0x30] sm:$0xff]
      %v425 = vld [vmem:[%s390 + $0x38] sm:$0xff]
      %v426 = vld [vmem:[%s390 + $0x40] sm:$0xff]
      %v427 = vld [vmem:[%s390 + $0x48] sm:$0xff]
      %v428 = vld [vmem:[%s390 + $0x50] sm:$0xff]
      %v429 = vld [vmem:[%s390 + $0x58] sm:$0xff]
      %v430 = vld [vmem:[%s390 + $0x60] sm:$0xff]
      %v431 = vld [vmem:[%s390 + $0x68] sm:$0xff]
      %v432 = vld [vmem:[%s390 + $0x70] sm:$0xff]
      %v433 = vld [vmem:[%s390 + $0x78] sm:$0xff]
      %v434 = vld [vmem:[%s390 + $0x80] sm:$0xff]
      %v435 = vld [vmem:[%s390 + $0x88] sm:$0xff]
      %v436 = vld [vmem:[%s390 + $0x90] sm:$0xff]
      %v437 = vld [vmem:[%s390 + $0x98] sm:$0xff]
      %v438 = vld [vmem:[%s390 + $0xa0] sm:$0xff]
      %v439 = vld [vmem:[%s390 + $0xa8] sm:$0xff]
      %v440 = vld [vmem:[%s390 + $0xb0] sm:$0xff]
      %v441 = vld [vmem:[%s390 + $0xb8] sm:$0xff]
      %v442 = vld [vmem:[%s390 + $0xc0] sm:$0xff]
      %v443 = vld [vmem:[%s390 + $0xc8] sm:$0xff]
      %v444 = vld [vmem:[%s390 + $0xd0] sm:$0xff]
      %v445 = vld [vmem:[%s390 + $0xd8] sm:$0xff]
      %v446 = vld [vmem:[%s390 + $0xe0] sm:$0xff]
      %v447 = vld [vmem:[%s390 + $0xe8] sm:$0xff]
      %v448 = vld [vmem:[%s390 + $0xf0] sm:$0xff]
      %v449 = vld [vmem:[%s390 + $0xf8] sm:$0xff]
      %v450 = vld [vmem:[%s390 + $0x100] sm:$0xff]
      %v451 = vld [vmem:[%s390 + $0x108] sm:$0xff]
      %v452 = vld [vmem:[%s390 + $0x110] sm:$0xff]
      %v453 = vld [vmem:[%s390 + $0x118] sm:$0xff]
      %v454 = vld [vmem:[%s390 + $0x120] sm:$0xff]
      %v455 = vld [vmem:[%s390 + $0x128] sm:$0xff]
      %v456 = vld [vmem:[%s390 + $0x130] sm:$0xff]
      %v457 = vld [vmem:[%s390 + $0x138] sm:$0xff]
      %v458 = vld [vmem:[%s390 + $0x140] sm:$0xff]
      %v459 = vld [vmem:[%s390 + $0x148] sm:$0xff]
      %v460 = vld [vmem:[%s390 + $0x150] sm:$0xff]
      %v461 = vld [vmem:[%s390 + $0x158] sm:$0xff]
      %v462 = vld [vmem:[%s390 + $0x160] sm:$0xff]
      %v463 = vld [vmem:[%s390 + $0x168] sm:$0xff]
      %v464 = vld [vmem:[%s390 + $0x170] sm:$0xff]
      %v465 = vld [vmem:[%s390 + $0x178] sm:$0xff]
      %v466 = vld [vmem:[%s390 + $0x180] sm:$0xff]
      %v467 = vld [vmem:[%s390 + $0x188] sm:$0xff]
      %v468 = vld [vmem:[%s390 + $0x190] sm:$0xff]
      %v469 = vld [vmem:[%s390 + $0x198] sm:$0xff]
      %v470 = vld [vmem:[%s390 + $0x1a0] sm:$0xff]
      %v471 = vld [vmem:[%s390 + $0x1a8] sm:$0xff]
      %v472 = vld [vmem:[%s390 + $0x1b0] sm:$0xff]
      %v473 = vld [vmem:[%s390 + $0x1b8] sm:$0xff]
      %v474 = vld [vmem:[%s390 + $0x1c0] sm:$0xff]
      %v475 = vld [vmem:[%s390 + $0x1c8] sm:$0xff]
      %v476 = vld [vmem:[%s390 + $0x1d0] sm:$0xff]
      %v477 = vld [vmem:[%s390 + $0x1d8] sm:$0xff]
      %v478 = vld [vmem:[%s390 + $0x1e0] sm:$0xff]
      %v479 = vld [vmem:[%s390 + $0x1e8] sm:$0xff]
      %v480 = vld [vmem:[%s390 + $0x1f0] sm:$0xff]
      %v481 = vld [vmem:[%s390 + $0x1f8] sm:$0xff]
      %v482 = vld [vmem:[%s390 + $0x200] sm:$0xff]
      %v483 = vld [vmem:[%s390 + $0x208] sm:$0xff]
      %v484 = vld [vmem:[%s390 + $0x210] sm:$0xff]
      %v485 = vld [vmem:[%s390 + $0x218] sm:$0xff]
      %v486 = vld [vmem:[%s390 + $0x220] sm:$0xff]
      %v487 = vld [vmem:[%s390 + $0x228] sm:$0xff]
      %v488 = vld [vmem:[%s390 + $0x230] sm:$0xff]
      %v489 = vld [vmem:[%s390 + $0x238] sm:$0xff]
      %v490 = vld [vmem:[%s390 + $0x240] sm:$0xff]
      %v491 = vld [vmem:[%s390 + $0x248] sm:$0xff]
      %v492 = vld [vmem:[%s390 + $0x250] sm:$0xff]
      %v493 = vld [vmem:[%s390 + $0x258] sm:$0xff]
      %v494 = vld [vmem:[%s390 + $0x260] sm:$0xff]
      %v495 = vld [vmem:[%s390 + $0x268] sm:$0xff]
      %v496 = vld [vmem:[%s390 + $0x270] sm:$0xff]
      %v497 = vld [vmem:[%s390 + $0x278] sm:$0xff]
      %v498 = vld [vmem:[%s390 + $0x280] sm:$0xff]
      %v499 = vld [vmem:[%s390 + $0x288] sm:$0xff]
      %v500 = vld [vmem:[%s390 + $0x290] sm:$0xff]
      %v501 = vld [vmem:[%s390 + $0x298] sm:$0xff]
      %v502 = vld [vmem:[%s390 + $0x2a0] sm:$0xff]
      %v503 = vld [vmem:[%s390 + $0x2a8] sm:$0xff]
      %v504 = vld [vmem:[%s390 + $0x2b0] sm:$0xff]
      %v505 = vld [vmem:[%s390 + $0x2b8] sm:$0xff]
      %v506 = vld [vmem:[%s390 + $0x2c0] sm:$0xff]
      %v507 = vld [vmem:[%s390 + $0x2c8] sm:$0xff]
      %v508 = vld [vmem:[%s390 + $0x2d0] sm:$0xff]
      %v509 = vld [vmem:[%s390 + $0x2d8] sm:$0xff]
      %v510 = vld [vmem:[%s390 + $0x2e0] sm:$0xff]
      %v511 = vld [vmem:[%s390 + $0x2e8] sm:$0xff]
      %v512 = vld [vmem:[%s390 + $0x2f0] sm:$0xff]
      %v513 = vld [vmem:[%s390 + $0x2f8] sm:$0xff]
      %v514 = vld [vmem:[%s390 + $0x300] sm:$0xff]
      %v515 = vld [vmem:[%s390 + $0x308] sm:$0xff]
      %v516 = vld [vmem:[%s390 + $0x310] sm:$0xff]
      %v517 = vld [vmem:[%s390 + $0x318] sm:$0xff]
      %v518 = vld [vmem:[%s390 + $0x320] sm:$0xff]
      %v519 = vld [vmem:[%s390 + $0x328] sm:$0xff]
      %v520 = vld [vmem:[%s390 + $0x330] sm:$0xff]
      %v521 = vld [vmem:[%s390 + $0x338] sm:$0xff]
      %v522 = vld [vmem:[%s390 + $0x340] sm:$0xff]
      %v523 = vld [vmem:[%s390 + $0x348] sm:$0xff]
      %v524 = vld [vmem:[%s390 + $0x350] sm:$0xff]
      %v525 = vld [vmem:[%s390 + $0x358] sm:$0xff]
      %v526 = vld [vmem:[%s390 + $0x360] sm:$0xff]
      %v527 = vld [vmem:[%s390 + $0x368] sm:$0xff]
      %v528 = vld [vmem:[%s390 + $0x370] sm:$0xff]
      %v529 = vld [vmem:[%s390 + $0x378] sm:$0xff]
      %v530 = vld [vmem:[%s390 + $0x380] sm:$0xff]
      %v531 = vld [vmem:[%s390 + $0x388] sm:$0xff]
      %v532 = vld [vmem:[%s390 + $0x390] sm:$0xff]
      %v533 = vld [vmem:[%s390 + $0x398] sm:$0xff]
      %v534 = vld [vmem:[%s390 + $0x3a0] sm:$0xff]
      %v535 = vld [vmem:[%s390 + $0x3a8] sm:$0xff]
      %v536 = vld [vmem:[%s390 + $0x3b0] sm:$0xff]
      %v537 = vld [vmem:[%s390 + $0x3b8] sm:$0xff]
      %v538 = vld [vmem:[%s390 + $0x3c0] sm:$0xff]
      %v539 = vld [vmem:[%s390 + $0x3c8] sm:$0xff]
      %v540 = vld [vmem:[%s390 + $0x3d0] sm:$0xff]
      %v541 = vld [vmem:[%s390 + $0x3d8] sm:$0xff]
      %v542 = vld [vmem:[%s390 + $0x3e0] sm:$0xff]
      %v543 = vld [vmem:[%s390 + $0x3e8] sm:$0xff]
      %v544 = vld [vmem:[%s390 + $0x3f0] sm:$0xff]
      %v545 = vld [vmem:[%s390 + $0x3f8] sm:$0xff]
      %v546 = vld [vmem:[%s402] sm:$0xff]
      %v547 = vld [vmem:[%s402 + $0x8] sm:$0xff]
      %v548 = vld [vmem:[%s402 + $0x10] sm:$0xff]
      %v549 = vld [vmem:[%s402 + $0x18] sm:$0xff]
      %v550 = vld [vmem:[%s402 + $0x20] sm:$0xff]
      %v551 = vld [vmem:[%s402 + $0x28] sm:$0xff]
      %v552 = vld [vmem:[%s402 + $0x30] sm:$0xff]
      %v553 = vld [vmem:[%s402 + $0x38] sm:$0xff]
      %v554 = vld [vmem:[%s402 + $0x40] sm:$0xff]
      %v555 = vld [vmem:[%s402 + $0x48] sm:$0xff]
      %v556 = vld [vmem:[%s402 + $0x50] sm:$0xff]
      %v557 = vld [vmem:[%s402 + $0x58] sm:$0xff]
      %v558 = vld [vmem:[%s402 + $0x60] sm:$0xff]
      %v559 = vld [vmem:[%s402 + $0x68] sm:$0xff]
      %v560 = vld [vmem:[%s402 + $0x70] sm:$0xff]
      %v561 = vld [vmem:[%s402 + $0x78] sm:$0xff]
      %v562 = vld [vmem:[%s402 + $0x80] sm:$0xff]
      %v563 = vld [vmem:[%s402 + $0x88] sm:$0xff]
      %v564 = vld [vmem:[%s402 + $0x90] sm:$0xff]
      %v565 = vld [vmem:[%s402 + $0x98] sm:$0xff]
      %v566 = vld [vmem:[%s402 + $0xa0] sm:$0xff]
      %v567 = vld [vmem:[%s402 + $0xa8] sm:$0xff]
      %v568 = vld [vmem:[%s402 + $0xb0] sm:$0xff]
      %v569 = vld [vmem:[%s402 + $0xb8] sm:$0xff]
      %v570 = vld [vmem:[%s402 + $0xc0] sm:$0xff]
      %v571 = vld [vmem:[%s402 + $0xc8] sm:$0xff]
      %v572 = vld [vmem:[%s402 + $0xd0] sm:$0xff]
      %v573 = vld [vmem:[%s402 + $0xd8] sm:$0xff]
      %v574 = vld [vmem:[%s402 + $0xe0] sm:$0xff]
      %v575 = vld [vmem:[%s402 + $0xe8] sm:$0xff]
      %v576 = vld [vmem:[%s402 + $0xf0] sm:$0xff]
      %v577 = vld [vmem:[%s402 + $0xf8] sm:$0xff]
      %v578 = vld [vmem:[%s402 + $0x100] sm:$0xff]
      %v579 = vld [vmem:[%s402 + $0x108] sm:$0xff]
      %v580 = vld [vmem:[%s402 + $0x110] sm:$0xff]
      %v581 = vld [vmem:[%s402 + $0x118] sm:$0xff]
      %v582 = vld [vmem:[%s402 + $0x120] sm:$0xff]
      %v583 = vld [vmem:[%s402 + $0x128] sm:$0xff]
      %v584 = vld [vmem:[%s402 + $0x130] sm:$0xff]
      %v585 = vld [vmem:[%s402 + $0x138] sm:$0xff]
      %v586 = vld [vmem:[%s402 + $0x140] sm:$0xff]
      %v587 = vld [vmem:[%s402 + $0x148] sm:$0xff]
      %v588 = vld [vmem:[%s402 + $0x150] sm:$0xff]
      %v589 = vld [vmem:[%s402 + $0x158] sm:$0xff]
      %v590 = vld [vmem:[%s402 + $0x160] sm:$0xff]
      %v591 = vld [vmem:[%s402 + $0x168] sm:$0xff]
      %v592 = vld [vmem:[%s402 + $0x170] sm:$0xff]
      %v593 = vld [vmem:[%s402 + $0x178] sm:$0xff]
      %v594 = vld [vmem:[%s402 + $0x180] sm:$0xff]
      %v595 = vld [vmem:[%s402 + $0x188] sm:$0xff]
      %v596 = vld [vmem:[%s402 + $0x190] sm:$0xff]
      %v597 = vld [vmem:[%s402 + $0x198] sm:$0xff]
      %v598 = vld [vmem:[%s402 + $0x1a0] sm:$0xff]
      %v599 = vld [vmem:[%s402 + $0x1a8] sm:$0xff]
      %v600 = vld [vmem:[%s402 + $0x1b0] sm:$0xff]
      %v601 = vld [vmem:[%s402 + $0x1b8] sm:$0xff]
      %v602 = vld [vmem:[%s402 + $0x1c0] sm:$0xff]
      %v603 = vld [vmem:[%s402 + $0x1c8] sm:$0xff]
      %v604 = vld [vmem:[%s402 + $0x1d0] sm:$0xff]
      %v605 = vld [vmem:[%s402 + $0x1d8] sm:$0xff]
      %v606 = vld [vmem:[%s402 + $0x1e0] sm:$0xff]
      %v607 = vld [vmem:[%s402 + $0x1e8] sm:$0xff]
      %v608 = vld [vmem:[%s402 + $0x1f0] sm:$0xff]
      %v609 = vld [vmem:[%s402 + $0x1f8] sm:$0xff]
      %v610 = vld [vmem:[%s407] sm:$0xf]
      %v611 = vld [vmem:[%s396] sm:$0xf]
      %v612 = vld [vmem:[%s396 + $0x4] sm:$0xf]
      %v613 = vld [vmem:[%s396 + $0x8] sm:$0xf]
      %v614 = vld [vmem:[%s396 + $0xc] sm:$0xf]
      %v615 = vld [vmem:[%s396 + $0x10] sm:$0xf]
      %v616 = vld [vmem:[%s396 + $0x14] sm:$0xf]
      %v617 = vld [vmem:[%s396 + $0x18] sm:$0xf]
      %v618 = vld [vmem:[%s396 + $0x1c] sm:$0xf]
      %v619 = vld [vmem:[%s396 + $0x20] sm:$0xf]
      %v620 = vld [vmem:[%s396 + $0x24] sm:$0xf]
      %v621 = vld [vmem:[%s396 + $0x28] sm:$0xf]
      %v622 = vld [vmem:[%s396 + $0x2c] sm:$0xf]
      %v623 = vld [vmem:[%s396 + $0x30] sm:$0xf]
      %v624 = vld [vmem:[%s396 + $0x34] sm:$0xf]
      %v625 = vld [vmem:[%s396 + $0x38] sm:$0xf]
      %v626 = vld [vmem:[%s396 + $0x3c] sm:$0xf]
      %v627 = vld [vmem:[%s396 + $0x40] sm:$0xf]
      %v628 = vld [vmem:[%s396 + $0x44] sm:$0xf]
      %v629 = vld [vmem:[%s396 + $0x48] sm:$0xf]
      %v630 = vld [vmem:[%s396 + $0x4c] sm:$0xf]
      %v631 = vld [vmem:[%s396 + $0x50] sm:$0xf]
      %v632 = vld [vmem:[%s396 + $0x54] sm:$0xf]
      %v633 = vld [vmem:[%s396 + $0x58] sm:$0xf]
      %v634 = vld [vmem:[%s396 + $0x5c] sm:$0xf]
      %v635 = vld [vmem:[%s396 + $0x60] sm:$0xf]
      %v636 = vld [vmem:[%s396 + $0x64] sm:$0xf]
      %v637 = vld [vmem:[%s396 + $0x68] sm:$0xf]
      %v638 = vld [vmem:[%s396 + $0x6c] sm:$0xf]
      %v639 = vld [vmem:[%s396 + $0x70] sm:$0xf]
      %v640 = vld [vmem:[%s396 + $0x74] sm:$0xf]
      %v641 = vld [vmem:[%s396 + $0x78] sm:$0xf]
      %v642 = vld [vmem:[%s396 + $0x7c] sm:$0xf]
      %v643 = vld [vmem:[%s396 + $0x80] sm:$0xf]
      %v644 = vld [vmem:[%s396 + $0x84] sm:$0xf]
      %v645 = vld [vmem:[%s396 + $0x88] sm:$0xf]
      %v646 = vld [vmem:[%s396 + $0x8c] sm:$0xf]
      %v647 = vld [vmem:[%s396 + $0x90] sm:$0xf]
      %v648 = vld [vmem:[%s396 + $0x94] sm:$0xf]
      %v649 = vld [vmem:[%s396 + $0x98] sm:$0xf]
      %v650 = vld [vmem:[%s396 + $0x9c] sm:$0xf]
      %v651 = vld [vmem:[%s396 + $0xa0] sm:$0xf]
      %v652 = vld [vmem:[%s396 + $0xa4] sm:$0xf]
      %v653 = vld [vmem:[%s396 + $0xa8] sm:$0xf]
      %v654 = vld [vmem:[%s396 + $0xac] sm:$0xf]
      %v655 = vld [vmem:[%s396 + $0xb0] sm:$0xf]
      %v656 = vld [vmem:[%s396 + $0xb4] sm:$0xf]
      %v657 = vld [vmem:[%s396 + $0xb8] sm:$0xf]
      %v658 = vld [vmem:[%s396 + $0xbc] sm:$0xf]
      %v659 = vld [vmem:[%s396 + $0xc0] sm:$0xf]
      %v660 = vld [vmem:[%s396 + $0xc4] sm:$0xf]
      %v661 = vld [vmem:[%s396 + $0xc8] sm:$0xf]
      %v662 = vld [vmem:[%s396 + $0xcc] sm:$0xf]
      %v663 = vld [vmem:[%s396 + $0xd0] sm:$0xf]
      %v664 = vld [vmem:[%s396 + $0xd4] sm:$0xf]
      %v665 = vld [vmem:[%s396 + $0xd8] sm:$0xf]
      %v666 = vld [vmem:[%s396 + $0xdc] sm:$0xf]
      %v667 = vld [vmem:[%s396 + $0xe0] sm:$0xf]
      %v668 = vld [vmem:[%s396 + $0xe4] sm:$0xf]
      %v669 = vld [vmem:[%s396 + $0xe8] sm:$0xf]
      %v670 = vld [vmem:[%s396 + $0xec] sm:$0xf]
      %v671 = vld [vmem:[%s396 + $0xf0] sm:$0xf]
      %v672 = vld [vmem:[%s396 + $0xf4] sm:$0xf]
      %v673 = vld [vmem:[%s396 + $0xf8] sm:$0xf]
      %v674 = vld [vmem:[%s396 + $0xfc] sm:$0xf]
      %v675 = vld [vmem:[%s5] sm:$0xf]
      %v676 = vld [vmem:[%s5 + $0x4] sm:$0xf]
      %v741 = vunpack.c.l.b16 %v611
      %v742 = vunpack.c.l.b16 %v612
      %v743 = vunpack.c.l.b16 %v613
      %v744 = vunpack.c.l.b16 %v614
      %v745 = vunpack.c.l.b16 %v615
      %v746 = vunpack.c.l.b16 %v616
      %v747 = vunpack.c.l.b16 %v617
      %v748 = vunpack.c.l.b16 %v618
      %v749 = vunpack.c.l.b16 %v619
      %v750 = vunpack.c.l.b16 %v620
      %v751 = vunpack.c.l.b16 %v621
      %v752 = vunpack.c.l.b16 %v622
      %v753 = vunpack.c.l.b16 %v623
      %v754 = vunpack.c.l.b16 %v624
      %v755 = vunpack.c.l.b16 %v625
      %v756 = vunpack.c.l.b16 %v626
      %v757 = vunpack.c.l.b16 %v627
      %v758 = vunpack.c.l.b16 %v628
      %v759 = vunpack.c.l.b16 %v629
      %v760 = vunpack.c.l.b16 %v630
      %v761 = vunpack.c.l.b16 %v631
      %v762 = vunpack.c.l.b16 %v632
      %v763 = vunpack.c.l.b16 %v633
      %v764 = vunpack.c.l.b16 %v634
      %v765 = vunpack.c.l.b16 %v635
      %v766 = vunpack.c.l.b16 %v636
      %v767 = vunpack.c.l.b16 %v637
      %v768 = vunpack.c.l.b16 %v638
      %v769 = vunpack.c.l.b16 %v639
      %v770 = vunpack.c.l.b16 %v640
      %v771 = vunpack.c.l.b16 %v641
      %v772 = vunpack.c.l.b16 %v642
      %v773 = vunpack.c.l.b16 %v643
      %v774 = vunpack.c.l.b16 %v644
      %v775 = vunpack.c.l.b16 %v645
      %v776 = vunpack.c.l.b16 %v646
      %v777 = vunpack.c.l.b16 %v647
      %v778 = vunpack.c.l.b16 %v648
      %v779 = vunpack.c.l.b16 %v649
      %v780 = vunpack.c.l.b16 %v650
      %v781 = vunpack.c.l.b16 %v651
      %v782 = vunpack.c.l.b16 %v652
      %v783 = vunpack.c.l.b16 %v653
      %v784 = vunpack.c.l.b16 %v654
      %v785 = vunpack.c.l.b16 %v655
      %v786 = vunpack.c.l.b16 %v656
      %v787 = vunpack.c.l.b16 %v657
      %v788 = vunpack.c.l.b16 %v658
      %v789 = vunpack.c.l.b16 %v659
      %v790 = vunpack.c.l.b16 %v660
      %v791 = vunpack.c.l.b16 %v661
      %v792 = vunpack.c.l.b16 %v662
      %v793 = vunpack.c.l.b16 %v663
      %v794 = vunpack.c.l.b16 %v664
      %v795 = vunpack.c.l.b16 %v665
      %v796 = vunpack.c.l.b16 %v666
      %v797 = vunpack.c.l.b16 %v667
      %v798 = vunpack.c.l.b16 %v668
      %v799 = vunpack.c.l.b16 %v669
      %v800 = vunpack.c.l.b16 %v670
      %v801 = vunpack.c.l.b16 %v671
      %v802 = vunpack.c.l.b16 %v672
      %v803 = vunpack.c.l.b16 %v673
      %v804 = vunpack.c.l.b16 %v674
      %v805 = vpack.c.b16 %v742, %v741
      %v806 = vpack.c.b16 %v744, %v743
      %v807 = vpack.c.b16 %v746, %v745
      %v808 = vpack.c.b16 %v748, %v747
      %v809 = vpack.c.b16 %v750, %v749
      %v810 = vpack.c.b16 %v752, %v751
      %v811 = vpack.c.b16 %v754, %v753
      %v812 = vpack.c.b16 %v756, %v755
      %v813 = vpack.c.b16 %v758, %v757
      %v814 = vpack.c.b16 %v760, %v759
      %v815 = vpack.c.b16 %v762, %v761
      %v816 = vpack.c.b16 %v764, %v763
      %v817 = vpack.c.b16 %v766, %v765
      %v818 = vpack.c.b16 %v768, %v767
      %v819 = vpack.c.b16 %v770, %v769
      %v820 = vpack.c.b16 %v772, %v771
      %v821 = vpack.c.b16 %v774, %v773
      %v822 = vpack.c.b16 %v776, %v775
      %v823 = vpack.c.b16 %v778, %v777
      %v824 = vpack.c.b16 %v780, %v779
      %v825 = vpack.c.b16 %v782, %v781
      %v826 = vpack.c.b16 %v784, %v783
      %v827 = vpack.c.b16 %v786, %v785
      %v828 = vpack.c.b16 %v788, %v787
      %v829 = vpack.c.b16 %v790, %v789
      %v830 = vpack.c.b16 %v792, %v791
      %v831 = vpack.c.b16 %v794, %v793
      %v832 = vpack.c.b16 %v796, %v795
      %v833 = vpack.c.b16 %v798, %v797
      %v834 = vpack.c.b16 %v800, %v799
      %v835 = vpack.c.b16 %v802, %v801
      %v836 = vpack.c.b16 %v804, %v803
      %v839 = vunpack.c.l.b16 %v675
      %v840 = vunpack.c.l.b16 %v676
      %v841 = vpack.c.b16 %v840, %v839
      %vm843 = vcmask 130048
      %v845 = vsel %vm843, %v805, 0
      %v848 = vsel %vm843, %v806, 0
      %v851 = vsel %vm843, %v807, 0
      %v854 = vsel %vm843, %v808, 0
      %v857 = vsel %vm843, %v809, 0
      %v860 = vsel %vm843, %v810, 0
      %v863 = vsel %vm843, %v811, 0
      %v866 = vsel %vm843, %v812, 0
      %v869 = vsel %vm843, %v813, 0
      %v872 = vsel %vm843, %v814, 0
      %v875 = vsel %vm843, %v815, 0
      %v878 = vsel %vm843, %v816, 0
      %v881 = vsel %vm843, %v817, 0
      %v884 = vsel %vm843, %v818, 0
      %v887 = vsel %vm843, %v819, 0
      %v890 = vsel %vm843, %v820, 0
      %v893 = vsel %vm843, %v821, 0
      %v896 = vsel %vm843, %v822, 0
      %v899 = vsel %vm843, %v823, 0
      %v902 = vsel %vm843, %v824, 0
      %v905 = vsel %vm843, %v825, 0
      %v908 = vsel %vm843, %v826, 0
      %v911 = vsel %vm843, %v827, 0
      %v914 = vsel %vm843, %v828, 0
      %v917 = vsel %vm843, %v829, 0
      %v920 = vsel %vm843, %v830, 0
      %v923 = vsel %vm843, %v831, 0
      %v926 = vsel %vm843, %v832, 0
      %v929 = vsel %vm843, %v833, 0
      %v932 = vsel %vm843, %v834, 0
      %v935 = vsel %vm843, %v835, 0
      %v938 = vsel %vm843, %v836, 0
      %940 = vmatprep.subr.bf16.mxu0 0
      %941 = vmatpush1.bf16.msra.mxu0 0
      %942 = vmatprep.subr.bf16.mxu0 0
      %943 = vmatpush1.bf16.msra.mxu0 0
      %944 = vmatprep.subr.bf16.mxu0 0
      %945 = vmatpush1.bf16.msra.mxu0 0
      %946 = vmatprep.subr.bf16.mxu0 0
      %947 = vmatpush1.bf16.msra.mxu0 0
      %948 = vmatprep.subr.bf16.mxu0 0
      %949 = vmatpush1.bf16.msra.mxu0 0
      %950 = vmatprep.subr.bf16.mxu0 0
      %951 = vmatpush1.bf16.msra.mxu0 0
      %952 = vmatprep.subr.bf16.mxu0 0
      %953 = vmatpush1.bf16.msra.mxu0 0
      %954 = vmatprep.subr.bf16.mxu0 0
      %955 = vmatpush1.bf16.msra.mxu0 %v841
      %956 = vmatprep.subr.bf16.mxu0 0
      %957 = vmatpush2.bf16.msra.mxu0 0
      %958 = vmatprep.subr.bf16.mxu0 0
      %959 = vmatpush2.bf16.msra.mxu0 0
      %960 = vmatprep.subr.bf16.mxu0 0
      %961 = vmatpush2.bf16.msra.mxu0 0
      %962 = vmatprep.subr.bf16.mxu0 0
      %963 = vmatpush2.bf16.msra.mxu0 0
      %964 = vmatprep.subr.bf16.mxu0 0
      %965 = vmatpush2.bf16.msra.mxu0 0
      %966 = vmatprep.subr.bf16.mxu0 0
      %967 = vmatpush2.bf16.msra.mxu0 0
      %968 = vmatprep.subr.bf16.mxu0 0
      %969 = vmatpush2.bf16.msra.mxu0 0
      %970 = vmatprep.subr.bf16.mxu0 0
      %971 = vmatpush2.bf16.msra.mxu0 0
      %972 = vmatprep.mubr.bf16.mxu0 0
      %973 = vmatmul.mubr.bf16.gmra.mxu0 %v845
      %v974 = vpop.f32.mrf.mxu0
      %v975 = vadd.f32 0.0, %v974
      %v976 = vpop.f32.mrf.mxu0
      %v977 = vpop.f32.mrf.mxu0
      %v978 = vadd.f32 0.0, %v977
      %v979 = vpop.f32.mrf.mxu0
      %980 = vmatprep.mubr.bf16.mxu0 0
      %981 = vmatmul.mubr.bf16.gmra.mxu0 %v848
      %v982 = vpop.f32.mrf.mxu0
      %v983 = vadd.f32 0.0, %v982
      %v984 = vpop.f32.mrf.mxu0
      %v985 = vpop.f32.mrf.mxu0
      %v986 = vadd.f32 0.0, %v985
      %v987 = vpop.f32.mrf.mxu0
      %988 = vmatprep.mubr.bf16.mxu0 0
      %989 = vmatmul.mubr.bf16.gmra.mxu0 %v851
      %v990 = vpop.f32.mrf.mxu0
      %v991 = vadd.f32 0.0, %v990
      %v992 = vpop.f32.mrf.mxu0
      %v993 = vpop.f32.mrf.mxu0
      %v994 = vadd.f32 0.0, %v993
      %v995 = vpop.f32.mrf.mxu0
      %996 = vmatprep.mubr.bf16.mxu0 0
      %997 = vmatmul.mubr.bf16.gmra.mxu0 %v854
      %v998 = vpop.f32.mrf.mxu0
      %v999 = vadd.f32 0.0, %v998
      %v1000 = vpop.f32.mrf.mxu0
      %v1001 = vpop.f32.mrf.mxu0
      %v1002 = vadd.f32 0.0, %v1001
      %v1003 = vpop.f32.mrf.mxu0
      %1004 = vmatprep.mubr.bf16.mxu0 0
      %1005 = vmatmul.mubr.bf16.gmra.mxu0 %v857
      %v1006 = vpop.f32.mrf.mxu0
      %v1007 = vadd.f32 0.0, %v1006
      %v1008 = vpop.f32.mrf.mxu0
      %v1009 = vpop.f32.mrf.mxu0
      %v1010 = vadd.f32 0.0, %v1009
      %v1011 = vpop.f32.mrf.mxu0
      %1012 = vmatprep.mubr.bf16.mxu0 0
      %1013 = vmatmul.mubr.bf16.gmra.mxu0 %v860
      %v1014 = vpop.f32.mrf.mxu0
      %v1015 = vadd.f32 0.0, %v1014
      %v1016 = vpop.f32.mrf.mxu0
      %v1017 = vpop.f32.mrf.mxu0
      %v1018 = vadd.f32 0.0, %v1017
      %v1019 = vpop.f32.mrf.mxu0
      %1020 = vmatprep.mubr.bf16.mxu0 0
      %1021 = vmatmul.mubr.bf16.gmra.mxu0 %v863
      %v1022 = vpop.f32.mrf.mxu0
      %v1023 = vadd.f32 0.0, %v1022
      %v1024 = vpop.f32.mrf.mxu0
      %v1025 = vpop.f32.mrf.mxu0
      %v1026 = vadd.f32 0.0, %v1025
      %v1027 = vpop.f32.mrf.mxu0
      %1028 = vmatprep.mubr.bf16.mxu0 0
      %1029 = vmatmul.mubr.bf16.gmra.mxu0 %v866
      %v1030 = vpop.f32.mrf.mxu0
      %v1031 = vadd.f32 0.0, %v1030
      %v1032 = vpop.f32.mrf.mxu0
      %v1033 = vpop.f32.mrf.mxu0
      %v1034 = vadd.f32 0.0, %v1033
      %v1035 = vpop.f32.mrf.mxu0
      %1036 = vmatprep.mubr.bf16.mxu0 0
      %1037 = vmatmul.mubr.bf16.gmra.mxu0 %v869
      %v1038 = vpop.f32.mrf.mxu0
      %v1039 = vadd.f32 0.0, %v1038
      %v1040 = vpop.f32.mrf.mxu0
      %v1041 = vpop.f32.mrf.mxu0
      %v1042 = vadd.f32 0.0, %v1041
      %v1043 = vpop.f32.mrf.mxu0
      %1044 = vmatprep.mubr.bf16.mxu0 0
      %1045 = vmatmul.mubr.bf16.gmra.mxu0 %v872
      %v1046 = vpop.f32.mrf.mxu0
      %v1047 = vadd.f32 0.0, %v1046
      %v1048 = vpop.f32.mrf.mxu0
      %v1049 = vpop.f32.mrf.mxu0
      %v1050 = vadd.f32 0.0, %v1049
      %v1051 = vpop.f32.mrf.mxu0
      %1052 = vmatprep.mubr.bf16.mxu0 0
      %1053 = vmatmul.mubr.bf16.gmra.mxu0 %v875
      %v1054 = vpop.f32.mrf.mxu0
      %v1055 = vadd.f32 0.0, %v1054
      %v1056 = vpop.f32.mrf.mxu0
      %v1057 = vpop.f32.mrf.mxu0
      %v1058 = vadd.f32 0.0, %v1057
      %v1059 = vpop.f32.mrf.mxu0
      %1060 = vmatprep.mubr.bf16.mxu0 0
      %1061 = vmatmul.mubr.bf16.gmra.mxu0 %v878
      %v1062 = vpop.f32.mrf.mxu0
      %v1063 = vadd.f32 0.0, %v1062
      %v1064 = vpop.f32.mrf.mxu0
      %v1065 = vpop.f32.mrf.mxu0
      %v1066 = vadd.f32 0.0, %v1065
      %v1067 = vpop.f32.mrf.mxu0
      %1068 = vmatprep.mubr.bf16.mxu0 0
      %1069 = vmatmul.mubr.bf16.gmra.mxu0 %v881
      %v1070 = vpop.f32.mrf.mxu0
      %v1071 = vadd.f32 0.0, %v1070
      %v1072 = vpop.f32.mrf.mxu0
      %v1073 = vpop.f32.mrf.mxu0
      %v1074 = vadd.f32 0.0, %v1073
      %v1075 = vpop.f32.mrf.mxu0
      %1076 = vmatprep.mubr.bf16.mxu0 0
      %1077 = vmatmul.mubr.bf16.gmra.mxu0 %v884
      %v1078 = vpop.f32.mrf.mxu0
      %v1079 = vadd.f32 0.0, %v1078
      %v1080 = vpop.f32.mrf.mxu0
      %v1081 = vpop.f32.mrf.mxu0
      %v1082 = vadd.f32 0.0, %v1081
      %v1083 = vpop.f32.mrf.mxu0
      %1084 = vmatprep.mubr.bf16.mxu0 0
      %1085 = vmatmul.mubr.bf16.gmra.mxu0 %v887
      %v1086 = vpop.f32.mrf.mxu0
      %v1087 = vadd.f32 0.0, %v1086
      %v1088 = vpop.f32.mrf.mxu0
      %v1089 = vpop.f32.mrf.mxu0
      %v1090 = vadd.f32 0.0, %v1089
      %v1091 = vpop.f32.mrf.mxu0
      %1092 = vmatprep.mubr.bf16.mxu0 0
      %1093 = vmatmul.mubr.bf16.gmra.mxu0 %v890
      %v1094 = vpop.f32.mrf.mxu0
      %v1095 = vadd.f32 0.0, %v1094
      %v1096 = vpop.f32.mrf.mxu0
      %v1097 = vpop.f32.mrf.mxu0
      %v1098 = vadd.f32 0.0, %v1097
      %v1099 = vpop.f32.mrf.mxu0
      %1100 = vmatprep.mubr.bf16.mxu0 0
      %1101 = vmatmul.mubr.bf16.gmra.mxu0 %v893
      %v1102 = vpop.f32.mrf.mxu0
      %v1103 = vadd.f32 0.0, %v1102
      %v1104 = vpop.f32.mrf.mxu0
      %v1105 = vpop.f32.mrf.mxu0
      %v1106 = vadd.f32 0.0, %v1105
      %v1107 = vpop.f32.mrf.mxu0
      %1108 = vmatprep.mubr.bf16.mxu0 0
      %1109 = vmatmul.mubr.bf16.gmra.mxu0 %v896
      %v1110 = vpop.f32.mrf.mxu0
      %v1111 = vadd.f32 0.0, %v1110
      %v1112 = vpop.f32.mrf.mxu0
      %v1113 = vpop.f32.mrf.mxu0
      %v1114 = vadd.f32 0.0, %v1113
      %v1115 = vpop.f32.mrf.mxu0
      %1116 = vmatprep.mubr.bf16.mxu0 0
      %1117 = vmatmul.mubr.bf16.gmra.mxu0 %v899
      %v1118 = vpop.f32.mrf.mxu0
      %v1119 = vadd.f32 0.0, %v1118
      %v1120 = vpop.f32.mrf.mxu0
      %v1121 = vpop.f32.mrf.mxu0
      %v1122 = vadd.f32 0.0, %v1121
      %v1123 = vpop.f32.mrf.mxu0
      %1124 = vmatprep.mubr.bf16.mxu0 0
      %1125 = vmatmul.mubr.bf16.gmra.mxu0 %v902
      %v1126 = vpop.f32.mrf.mxu0
      %v1127 = vadd.f32 0.0, %v1126
      %v1128 = vpop.f32.mrf.mxu0
      %v1129 = vpop.f32.mrf.mxu0
      %v1130 = vadd.f32 0.0, %v1129
      %v1131 = vpop.f32.mrf.mxu0
      %1132 = vmatprep.mubr.bf16.mxu0 0
      %1133 = vmatmul.mubr.bf16.gmra.mxu0 %v905
      %v1134 = vpop.f32.mrf.mxu0
      %v1135 = vadd.f32 0.0, %v1134
      %v1136 = vpop.f32.mrf.mxu0
      %v1137 = vpop.f32.mrf.mxu0
      %v1138 = vadd.f32 0.0, %v1137
      %v1139 = vpop.f32.mrf.mxu0
      %1140 = vmatprep.mubr.bf16.mxu0 0
      %1141 = vmatmul.mubr.bf16.gmra.mxu0 %v908
      %v1142 = vpop.f32.mrf.mxu0
      %v1143 = vadd.f32 0.0, %v1142
      %v1144 = vpop.f32.mrf.mxu0
      %v1145 = vpop.f32.mrf.mxu0
      %v1146 = vadd.f32 0.0, %v1145
      %v1147 = vpop.f32.mrf.mxu0
      %1148 = vmatprep.mubr.bf16.mxu0 0
      %1149 = vmatmul.mubr.bf16.gmra.mxu0 %v911
      %v1150 = vpop.f32.mrf.mxu0
      %v1151 = vadd.f32 0.0, %v1150
      %v1152 = vpop.f32.mrf.mxu0
      %v1153 = vpop.f32.mrf.mxu0
      %v1154 = vadd.f32 0.0, %v1153
      %v1155 = vpop.f32.mrf.mxu0
      %1156 = vmatprep.mubr.bf16.mxu0 0
      %1157 = vmatmul.mubr.bf16.gmra.mxu0 %v914
      %v1158 = vpop.f32.mrf.mxu0
      %v1159 = vadd.f32 0.0, %v1158
      %v1160 = vpop.f32.mrf.mxu0
      %v1161 = vpop.f32.mrf.mxu0
      %v1162 = vadd.f32 0.0, %v1161
      %v1163 = vpop.f32.mrf.mxu0
      %1164 = vmatprep.mubr.bf16.mxu0 0
      %1165 = vmatmul.mubr.bf16.gmra.mxu0 %v917
      %v1166 = vpop.f32.mrf.mxu0
      %v1167 = vadd.f32 0.0, %v1166
      %v1168 = vpop.f32.mrf.mxu0
      %v1169 = vpop.f32.mrf.mxu0
      %v1170 = vadd.f32 0.0, %v1169
      %v1171 = vpop.f32.mrf.mxu0
      %1172 = vmatprep.mubr.bf16.mxu0 0
      %1173 = vmatmul.mubr.bf16.gmra.mxu0 %v920
      %v1174 = vpop.f32.mrf.mxu0
      %v1175 = vadd.f32 0.0, %v1174
      %v1176 = vpop.f32.mrf.mxu0
      %v1177 = vpop.f32.mrf.mxu0
      %v1178 = vadd.f32 0.0, %v1177
      %v1179 = vpop.f32.mrf.mxu0
      %1180 = vmatprep.mubr.bf16.mxu0 0
      %1181 = vmatmul.mubr.bf16.gmra.mxu0 %v923
      %v1182 = vpop.f32.mrf.mxu0
      %v1183 = vadd.f32 0.0, %v1182
      %v1184 = vpop.f32.mrf.mxu0
      %v1185 = vpop.f32.mrf.mxu0
      %v1186 = vadd.f32 0.0, %v1185
      %v1187 = vpop.f32.mrf.mxu0
      %1188 = vmatprep.mubr.bf16.mxu0 0
      %1189 = vmatmul.mubr.bf16.gmra.mxu0 %v926
      %v1190 = vpop.f32.mrf.mxu0
      %v1191 = vadd.f32 0.0, %v1190
      %v1192 = vpop.f32.mrf.mxu0
      %v1193 = vpop.f32.mrf.mxu0
      %v1194 = vadd.f32 0.0, %v1193
      %v1195 = vpop.f32.mrf.mxu0
      %1196 = vmatprep.mubr.bf16.mxu0 0
      %1197 = vmatmul.mubr.bf16.gmra.mxu0 %v929
      %v1198 = vpop.f32.mrf.mxu0
      %v1199 = vadd.f32 0.0, %v1198
      %v1200 = vpop.f32.mrf.mxu0
      %v1201 = vpop.f32.mrf.mxu0
      %v1202 = vadd.f32 0.0, %v1201
      %v1203 = vpop.f32.mrf.mxu0
      %1204 = vmatprep.mubr.bf16.mxu0 0
      %1205 = vmatmul.mubr.bf16.gmra.mxu0 %v932
      %v1206 = vpop.f32.mrf.mxu0
      %v1207 = vadd.f32 0.0, %v1206
      %v1208 = vpop.f32.mrf.mxu0
      %v1209 = vpop.f32.mrf.mxu0
      %v1210 = vadd.f32 0.0, %v1209
      %v1211 = vpop.f32.mrf.mxu0
      %1212 = vmatprep.mubr.bf16.mxu0 0
      %1213 = vmatmul.mubr.bf16.gmra.mxu0 %v935
      %v1214 = vpop.f32.mrf.mxu0
      %v1215 = vadd.f32 0.0, %v1214
      %v1216 = vpop.f32.mrf.mxu0
      %v1217 = vpop.f32.mrf.mxu0
      %v1218 = vadd.f32 0.0, %v1217
      %v1219 = vpop.f32.mrf.mxu0
      %1220 = vmatprep.mubr.bf16.mxu0 0
      %1221 = vmatmul.mubr.bf16.gmra.mxu0 %v938
      %v1222 = vpop.f32.mrf.mxu0
      %v1223 = vadd.f32 0.0, %v1222
      %v1224 = vpop.f32.mrf.mxu0
      %v1225 = vpop.f32.mrf.mxu0
      %v1226 = vadd.f32 0.0, %v1225
      %v1227 = vpop.f32.mrf.mxu0
      %1228 = vdwg.mxu0
      %1230 = vset.pattern.permute.xlu0 0
      %1231 = vperm.xlu0 %1230, %v546
      %v1232 = vpop.permute.xlu0 %1231
      %1235 = vset.pattern.permute.xlu0 0
      %1236 = vperm.xlu0 %1235, %v547
      %v1237 = vpop.permute.xlu0 %1236
      %1240 = vset.pattern.permute.xlu0 0
      %1241 = vperm.xlu0 %1240, %v548
      %v1242 = vpop.permute.xlu0 %1241
      %1245 = vset.pattern.permute.xlu0 0
      %1246 = vperm.xlu0 %1245, %v549
      %v1247 = vpop.permute.xlu0 %1246
      %1250 = vset.pattern.permute.xlu0 0
      %1251 = vperm.xlu0 %1250, %v550
      %v1252 = vpop.permute.xlu0 %1251
      %1255 = vset.pattern.permute.xlu0 0
      %1256 = vperm.xlu0 %1255, %v551
      %v1257 = vpop.permute.xlu0 %1256
      %1260 = vset.pattern.permute.xlu0 0
      %1261 = vperm.xlu0 %1260, %v552
      %v1262 = vpop.permute.xlu0 %1261
      %1265 = vset.pattern.permute.xlu0 0
      %1266 = vperm.xlu0 %1265, %v553
      %v1267 = vpop.permute.xlu0 %1266
      %1270 = vset.pattern.permute.xlu0 0
      %1271 = vperm.xlu0 %1270, %v554
      %v1272 = vpop.permute.xlu0 %1271
      %1275 = vset.pattern.permute.xlu0 0
      %1276 = vperm.xlu0 %1275, %v555
      %v1277 = vpop.permute.xlu0 %1276
      %1280 = vset.pattern.permute.xlu0 0
      %1281 = vperm.xlu0 %1280, %v556
      %v1282 = vpop.permute.xlu0 %1281
      %1285 = vset.pattern.permute.xlu0 0
      %1286 = vperm.xlu0 %1285, %v557
      %v1287 = vpop.permute.xlu0 %1286
      %1290 = vset.pattern.permute.xlu0 0
      %1291 = vperm.xlu0 %1290, %v558
      %v1292 = vpop.permute.xlu0 %1291
      %1295 = vset.pattern.permute.xlu0 0
      %1296 = vperm.xlu0 %1295, %v559
      %v1297 = vpop.permute.xlu0 %1296
      %1300 = vset.pattern.permute.xlu0 0
      %1301 = vperm.xlu0 %1300, %v560
      %v1302 = vpop.permute.xlu0 %1301
      %1305 = vset.pattern.permute.xlu0 0
      %1306 = vperm.xlu0 %1305, %v561
      %v1307 = vpop.permute.xlu0 %1306
      %1310 = vset.pattern.permute.xlu0 0
      %1311 = vperm.xlu0 %1310, %v562
      %v1312 = vpop.permute.xlu0 %1311
      %1315 = vset.pattern.permute.xlu0 0
      %1316 = vperm.xlu0 %1315, %v563
      %v1317 = vpop.permute.xlu0 %1316
      %1320 = vset.pattern.permute.xlu0 0
      %1321 = vperm.xlu0 %1320, %v564
      %v1322 = vpop.permute.xlu0 %1321
      %1325 = vset.pattern.permute.xlu0 0
      %1326 = vperm.xlu0 %1325, %v565
      %v1327 = vpop.permute.xlu0 %1326
      %1330 = vset.pattern.permute.xlu0 0
      %1331 = vperm.xlu0 %1330, %v566
      %v1332 = vpop.permute.xlu0 %1331
      %1335 = vset.pattern.permute.xlu0 0
      %1336 = vperm.xlu0 %1335, %v567
      %v1337 = vpop.permute.xlu0 %1336
      %1340 = vset.pattern.permute.xlu0 0
      %1341 = vperm.xlu0 %1340, %v568
      %v1342 = vpop.permute.xlu0 %1341
      %1345 = vset.pattern.permute.xlu0 0
      %1346 = vperm.xlu0 %1345, %v569
      %v1347 = vpop.permute.xlu0 %1346
      %1350 = vset.pattern.permute.xlu0 0
      %1351 = vperm.xlu0 %1350, %v570
      %v1352 = vpop.permute.xlu0 %1351
      %1355 = vset.pattern.permute.xlu0 0
      %1356 = vperm.xlu0 %1355, %v571
      %v1357 = vpop.permute.xlu0 %1356
      %1360 = vset.pattern.permute.xlu0 0
      %1361 = vperm.xlu0 %1360, %v572
      %v1362 = vpop.permute.xlu0 %1361
      %1365 = vset.pattern.permute.xlu0 0
      %1366 = vperm.xlu0 %1365, %v573
      %v1367 = vpop.permute.xlu0 %1366
      %1370 = vset.pattern.permute.xlu0 0
      %1371 = vperm.xlu0 %1370, %v574
      %v1372 = vpop.permute.xlu0 %1371
      %1375 = vset.pattern.permute.xlu0 0
      %1376 = vperm.xlu0 %1375, %v575
      %v1377 = vpop.permute.xlu0 %1376
      %1380 = vset.pattern.permute.xlu0 0
      %1381 = vperm.xlu0 %1380, %v576
      %v1382 = vpop.permute.xlu0 %1381
      %1385 = vset.pattern.permute.xlu0 0
      %1386 = vperm.xlu0 %1385, %v577
      %v1387 = vpop.permute.xlu0 %1386
      %1390 = vset.pattern.permute.xlu0 0
      %1391 = vperm.xlu0 %1390, %v578
      %v1392 = vpop.permute.xlu0 %1391
      %1395 = vset.pattern.permute.xlu0 0
      %1396 = vperm.xlu0 %1395, %v579
      %v1397 = vpop.permute.xlu0 %1396
      %1400 = vset.pattern.permute.xlu0 0
      %1401 = vperm.xlu0 %1400, %v580
      %v1402 = vpop.permute.xlu0 %1401
      %1405 = vset.pattern.permute.xlu0 0
      %1406 = vperm.xlu0 %1405, %v581
      %v1407 = vpop.permute.xlu0 %1406
      %1410 = vset.pattern.permute.xlu0 0
      %1411 = vperm.xlu0 %1410, %v582
      %v1412 = vpop.permute.xlu0 %1411
      %1415 = vset.pattern.permute.xlu0 0
      %1416 = vperm.xlu0 %1415, %v583
      %v1417 = vpop.permute.xlu0 %1416
      %1420 = vset.pattern.permute.xlu0 0
      %1421 = vperm.xlu0 %1420, %v584
      %v1422 = vpop.permute.xlu0 %1421
      %1425 = vset.pattern.permute.xlu0 0
      %1426 = vperm.xlu0 %1425, %v585
      %v1427 = vpop.permute.xlu0 %1426
      %1430 = vset.pattern.permute.xlu0 0
      %1431 = vperm.xlu0 %1430, %v586
      %v1432 = vpop.permute.xlu0 %1431
      %1435 = vset.pattern.permute.xlu0 0
      %1436 = vperm.xlu0 %1435, %v587
      %v1437 = vpop.permute.xlu0 %1436
      %1440 = vset.pattern.permute.xlu0 0
      %1441 = vperm.xlu0 %1440, %v588
      %v1442 = vpop.permute.xlu0 %1441
      %1445 = vset.pattern.permute.xlu0 0
      %1446 = vperm.xlu0 %1445, %v589
      %v1447 = vpop.permute.xlu0 %1446
      %1450 = vset.pattern.permute.xlu0 0
      %1451 = vperm.xlu0 %1450, %v590
      %v1452 = vpop.permute.xlu0 %1451
      %1455 = vset.pattern.permute.xlu0 0
      %1456 = vperm.xlu0 %1455, %v591
      %v1457 = vpop.permute.xlu0 %1456
      %1460 = vset.pattern.permute.xlu0 0
      %1461 = vperm.xlu0 %1460, %v592
      %v1462 = vpop.permute.xlu0 %1461
      %1465 = vset.pattern.permute.xlu0 0
      %1466 = vperm.xlu0 %1465, %v593
      %v1467 = vpop.permute.xlu0 %1466
      %1470 = vset.pattern.permute.xlu0 0
      %1471 = vperm.xlu0 %1470, %v594
      %v1472 = vpop.permute.xlu0 %1471
      %1475 = vset.pattern.permute.xlu0 0
      %1476 = vperm.xlu0 %1475, %v595
      %v1477 = vpop.permute.xlu0 %1476
      %1480 = vset.pattern.permute.xlu0 0
      %1481 = vperm.xlu0 %1480, %v596
      %v1482 = vpop.permute.xlu0 %1481
      %1485 = vset.pattern.permute.xlu0 0
      %1486 = vperm.xlu0 %1485, %v597
      %v1487 = vpop.permute.xlu0 %1486
      %1490 = vset.pattern.permute.xlu0 0
      %1491 = vperm.xlu0 %1490, %v598
      %v1492 = vpop.permute.xlu0 %1491
      %1495 = vset.pattern.permute.xlu0 0
      %1496 = vperm.xlu0 %1495, %v599
      %v1497 = vpop.permute.xlu0 %1496
      %1500 = vset.pattern.permute.xlu0 0
      %1501 = vperm.xlu0 %1500, %v600
      %v1502 = vpop.permute.xlu0 %1501
      %1505 = vset.pattern.permute.xlu0 0
      %1506 = vperm.xlu0 %1505, %v601
      %v1507 = vpop.permute.xlu0 %1506
      %1510 = vset.pattern.permute.xlu0 0
      %1511 = vperm.xlu0 %1510, %v602
      %v1512 = vpop.permute.xlu0 %1511
      %1515 = vset.pattern.permute.xlu0 0
      %1516 = vperm.xlu0 %1515, %v603
      %v1517 = vpop.permute.xlu0 %1516
      %1520 = vset.pattern.permute.xlu0 0
      %1521 = vperm.xlu0 %1520, %v604
      %v1522 = vpop.permute.xlu0 %1521
      %1525 = vset.pattern.permute.xlu0 0
      %1526 = vperm.xlu0 %1525, %v605
      %v1527 = vpop.permute.xlu0 %1526
      %1530 = vset.pattern.permute.xlu0 0
      %1531 = vperm.xlu0 %1530, %v606
      %v1532 = vpop.permute.xlu0 %1531
      %1535 = vset.pattern.permute.xlu0 0
      %1536 = vperm.xlu0 %1535, %v607
      %v1537 = vpop.permute.xlu0 %1536
      %1540 = vset.pattern.permute.xlu0 0
      %1541 = vperm.xlu0 %1540, %v608
      %v1542 = vpop.permute.xlu0 %1541
      %1545 = vset.pattern.permute.xlu0 0
      %1546 = vperm.xlu0 %1545, %v609
      %v1547 = vpop.permute.xlu0 %1546
      %v1549 = vmul.f32 %v1232, %v975
      %v1550 = vmul.f32 %v1237, %v978
      %v1551 = vmul.f32 %v1242, %v983
      %v1552 = vmul.f32 %v1247, %v986
      %v1553 = vmul.f32 %v1252, %v991
      %v1554 = vmul.f32 %v1257, %v994
      %v1555 = vmul.f32 %v1262, %v999
      %v1556 = vmul.f32 %v1267, %v1002
      %v1557 = vmul.f32 %v1272, %v1007
      %v1558 = vmul.f32 %v1277, %v1010
      %v1559 = vmul.f32 %v1282, %v1015
      %v1560 = vmul.f32 %v1287, %v1018
      %v1561 = vmul.f32 %v1292, %v1023
      %v1562 = vmul.f32 %v1297, %v1026
      %v1563 = vmul.f32 %v1302, %v1031
      %v1564 = vmul.f32 %v1307, %v1034
      %v1565 = vmul.f32 %v1312, %v1039
      %v1566 = vmul.f32 %v1317, %v1042
      %v1567 = vmul.f32 %v1322, %v1047
      %v1568 = vmul.f32 %v1327, %v1050
      %v1569 = vmul.f32 %v1332, %v1055
      %v1570 = vmul.f32 %v1337, %v1058
      %v1571 = vmul.f32 %v1342, %v1063
      %v1572 = vmul.f32 %v1347, %v1066
      %v1573 = vmul.f32 %v1352, %v1071
      %v1574 = vmul.f32 %v1357, %v1074
      %v1575 = vmul.f32 %v1362, %v1079
      %v1576 = vmul.f32 %v1367, %v1082
      %v1577 = vmul.f32 %v1372, %v1087
      %v1578 = vmul.f32 %v1377, %v1090
      %v1579 = vmul.f32 %v1382, %v1095
      %v1580 = vmul.f32 %v1387, %v1098
      %v1581 = vmul.f32 %v1392, %v1103
      %v1582 = vmul.f32 %v1397, %v1106
      %v1583 = vmul.f32 %v1402, %v1111
      %v1584 = vmul.f32 %v1407, %v1114
      %v1585 = vmul.f32 %v1412, %v1119
      %v1586 = vmul.f32 %v1417, %v1122
      %v1587 = vmul.f32 %v1422, %v1127
      %v1588 = vmul.f32 %v1427, %v1130
      %v1589 = vmul.f32 %v1432, %v1135
      %v1590 = vmul.f32 %v1437, %v1138
      %v1591 = vmul.f32 %v1442, %v1143
      %v1592 = vmul.f32 %v1447, %v1146
      %v1593 = vmul.f32 %v1452, %v1151
      %v1594 = vmul.f32 %v1457, %v1154
      %v1595 = vmul.f32 %v1462, %v1159
      %v1596 = vmul.f32 %v1467, %v1162
      %v1597 = vmul.f32 %v1472, %v1167
      %v1598 = vmul.f32 %v1477, %v1170
      %v1599 = vmul.f32 %v1482, %v1175
      %v1600 = vmul.f32 %v1487, %v1178
      %v1601 = vmul.f32 %v1492, %v1183
      %v1602 = vmul.f32 %v1497, %v1186
      %v1603 = vmul.f32 %v1502, %v1191
      %v1604 = vmul.f32 %v1507, %v1194
      %v1605 = vmul.f32 %v1512, %v1199
      %v1606 = vmul.f32 %v1517, %v1202
      %v1607 = vmul.f32 %v1522, %v1207
      %v1608 = vmul.f32 %v1527, %v1210
      %v1609 = vmul.f32 %v1532, %v1215
      %v1610 = vmul.f32 %v1537, %v1218
      %v1611 = vmul.f32 %v1542, %v1223
      %v1612 = vmul.f32 %v1547, %v1226
      %v1613 = vpack.c.bf16 %v1550, %v1549
      %v1614 = vpack.c.bf16 %v1552, %v1551
      %v1615 = vpack.c.bf16 %v1554, %v1553
      %v1616 = vpack.c.bf16 %v1556, %v1555
      %v1617 = vpack.c.bf16 %v1558, %v1557
      %v1618 = vpack.c.bf16 %v1560, %v1559
      %v1619 = vpack.c.bf16 %v1562, %v1561
      %v1620 = vpack.c.bf16 %v1564, %v1563
      %v1621 = vpack.c.bf16 %v1566, %v1565
      %v1622 = vpack.c.bf16 %v1568, %v1567
      %v1623 = vpack.c.bf16 %v1570, %v1569
      %v1624 = vpack.c.bf16 %v1572, %v1571
      %v1625 = vpack.c.bf16 %v1574, %v1573
      %v1626 = vpack.c.bf16 %v1576, %v1575
      %v1627 = vpack.c.bf16 %v1578, %v1577
      %v1628 = vpack.c.bf16 %v1580, %v1579
      %v1629 = vpack.c.bf16 %v1582, %v1581
      %v1630 = vpack.c.bf16 %v1584, %v1583
      %v1631 = vpack.c.bf16 %v1586, %v1585
      %v1632 = vpack.c.bf16 %v1588, %v1587
      %v1633 = vpack.c.bf16 %v1590, %v1589
      %v1634 = vpack.c.bf16 %v1592, %v1591
      %v1635 = vpack.c.bf16 %v1594, %v1593
      %v1636 = vpack.c.bf16 %v1596, %v1595
      %v1637 = vpack.c.bf16 %v1598, %v1597
      %v1638 = vpack.c.bf16 %v1600, %v1599
      %v1639 = vpack.c.bf16 %v1602, %v1601
      %v1640 = vpack.c.bf16 %v1604, %v1603
      %v1641 = vpack.c.bf16 %v1606, %v1605
      %v1642 = vpack.c.bf16 %v1608, %v1607
      %v1643 = vpack.c.bf16 %v1610, %v1609
      %v1644 = vpack.c.bf16 %v1612, %v1611
      %v1773 = vunpack.c.l.b16 %v418
      %v1774 = vunpack.c.h.b16 %v418
      %v1775 = vunpack.c.l.b16 %v419
      %v1776 = vunpack.c.h.b16 %v419
      %v1777 = vunpack.c.l.b16 %v420
      %v1778 = vunpack.c.h.b16 %v420
      %v1779 = vunpack.c.l.b16 %v421
      %v1780 = vunpack.c.h.b16 %v421
      %v1781 = vunpack.c.l.b16 %v422
      %v1782 = vunpack.c.h.b16 %v422
      %v1783 = vunpack.c.l.b16 %v423
      %v1784 = vunpack.c.h.b16 %v423
      %v1785 = vunpack.c.l.b16 %v424
      %v1786 = vunpack.c.h.b16 %v424
      %v1787 = vunpack.c.l.b16 %v425
      %v1788 = vunpack.c.h.b16 %v425
      %v1789 = vunpack.c.l.b16 %v426
      %v1790 = vunpack.c.h.b16 %v426
      %v1791 = vunpack.c.l.b16 %v427
      %v1792 = vunpack.c.h.b16 %v427
      %v1793 = vunpack.c.l.b16 %v428
      %v1794 = vunpack.c.h.b16 %v428
      %v1795 = vunpack.c.l.b16 %v429
      %v1796 = vunpack.c.h.b16 %v429
      %v1797 = vunpack.c.l.b16 %v430
      %v1798 = vunpack.c.h.b16 %v430
      %v1799 = vunpack.c.l.b16 %v431
      %v1800 = vunpack.c.h.b16 %v431
      %v1801 = vunpack.c.l.b16 %v432
      %v1802 = vunpack.c.h.b16 %v432
      %v1803 = vunpack.c.l.b16 %v433
      %v1804 = vunpack.c.h.b16 %v433
      %v1805 = vunpack.c.l.b16 %v434
      %v1806 = vunpack.c.h.b16 %v434
      %v1807 = vunpack.c.l.b16 %v435
      %v1808 = vunpack.c.h.b16 %v435
      %v1809 = vunpack.c.l.b16 %v436
      %v1810 = vunpack.c.h.b16 %v436
      %v1811 = vunpack.c.l.b16 %v437
      %v1812 = vunpack.c.h.b16 %v437
      %v1813 = vunpack.c.l.b16 %v438
      %v1814 = vunpack.c.h.b16 %v438
      %v1815 = vunpack.c.l.b16 %v439
      %v1816 = vunpack.c.h.b16 %v439
      %v1817 = vunpack.c.l.b16 %v440
      %v1818 = vunpack.c.h.b16 %v440
      %v1819 = vunpack.c.l.b16 %v441
      %v1820 = vunpack.c.h.b16 %v441
      %v1821 = vunpack.c.l.b16 %v442
      %v1822 = vunpack.c.h.b16 %v442
      %v1823 = vunpack.c.l.b16 %v443
      %v1824 = vunpack.c.h.b16 %v443
      %v1825 = vunpack.c.l.b16 %v444
      %v1826 = vunpack.c.h.b16 %v444
      %v1827 = vunpack.c.l.b16 %v445
      %v1828 = vunpack.c.h.b16 %v445
      %v1829 = vunpack.c.l.b16 %v446
      %v1830 = vunpack.c.h.b16 %v446
      %v1831 = vunpack.c.l.b16 %v447
      %v1832 = vunpack.c.h.b16 %v447
      %v1833 = vunpack.c.l.b16 %v448
      %v1834 = vunpack.c.h.b16 %v448
      %v1835 = vunpack.c.l.b16 %v449
      %v1836 = vunpack.c.h.b16 %v449
      %v1837 = vunpack.c.l.b16 %v450
      %v1838 = vunpack.c.h.b16 %v450
      %v1839 = vunpack.c.l.b16 %v451
      %v1840 = vunpack.c.h.b16 %v451
      %v1841 = vunpack.c.l.b16 %v452
      %v1842 = vunpack.c.h.b16 %v452
      %v1843 = vunpack.c.l.b16 %v453
      %v1844 = vunpack.c.h.b16 %v453
      %v1845 = vunpack.c.l.b16 %v454
      %v1846 = vunpack.c.h.b16 %v454
      %v1847 = vunpack.c.l.b16 %v455
      %v1848 = vunpack.c.h.b16 %v455
      %v1849 = vunpack.c.l.b16 %v456
      %v1850 = vunpack.c.h.b16 %v456
      %v1851 = vunpack.c.l.b16 %v457
      %v1852 = vunpack.c.h.b16 %v457
      %v1853 = vunpack.c.l.b16 %v458
      %v1854 = vunpack.c.h.b16 %v458
      %v1855 = vunpack.c.l.b16 %v459
      %v1856 = vunpack.c.h.b16 %v459
      %v1857 = vunpack.c.l.b16 %v460
      %v1858 = vunpack.c.h.b16 %v460
      %v1859 = vunpack.c.l.b16 %v461
      %v1860 = vunpack.c.h.b16 %v461
      %v1861 = vunpack.c.l.b16 %v462
      %v1862 = vunpack.c.h.b16 %v462
      %v1863 = vunpack.c.l.b16 %v463
      %v1864 = vunpack.c.h.b16 %v463
      %v1865 = vunpack.c.l.b16 %v464
      %v1866 = vunpack.c.h.b16 %v464
      %v1867 = vunpack.c.l.b16 %v465
      %v1868 = vunpack.c.h.b16 %v465
      %v1869 = vunpack.c.l.b16 %v466
      %v1870 = vunpack.c.h.b16 %v466
      %v1871 = vunpack.c.l.b16 %v467
      %v1872 = vunpack.c.h.b16 %v467
      %v1873 = vunpack.c.l.b16 %v468
      %v1874 = vunpack.c.h.b16 %v468
      %v1875 = vunpack.c.l.b16 %v469
      %v1876 = vunpack.c.h.b16 %v469
      %v1877 = vunpack.c.l.b16 %v470
      %v1878 = vunpack.c.h.b16 %v470
      %v1879 = vunpack.c.l.b16 %v471
      %v1880 = vunpack.c.h.b16 %v471
      %v1881 = vunpack.c.l.b16 %v472
      %v1882 = vunpack.c.h.b16 %v472
      %v1883 = vunpack.c.l.b16 %v473
      %v1884 = vunpack.c.h.b16 %v473
      %v1885 = vunpack.c.l.b16 %v474
      %v1886 = vunpack.c.h.b16 %v474
      %v1887 = vunpack.c.l.b16 %v475
      %v1888 = vunpack.c.h.b16 %v475
      %v1889 = vunpack.c.l.b16 %v476
      %v1890 = vunpack.c.h.b16 %v476
      %v1891 = vunpack.c.l.b16 %v477
      %v1892 = vunpack.c.h.b16 %v477
      %v1893 = vunpack.c.l.b16 %v478
      %v1894 = vunpack.c.h.b16 %v478
      %v1895 = vunpack.c.l.b16 %v479
      %v1896 = vunpack.c.h.b16 %v479
      %v1897 = vunpack.c.l.b16 %v480
      %v1898 = vunpack.c.h.b16 %v480
      %v1899 = vunpack.c.l.b16 %v481
      %v1900 = vunpack.c.h.b16 %v481
      %v1901 = vunpack.c.l.b16 %v482
      %v1902 = vunpack.c.h.b16 %v482
      %v1903 = vunpack.c.l.b16 %v483
      %v1904 = vunpack.c.h.b16 %v483
      %v1905 = vunpack.c.l.b16 %v484
      %v1906 = vunpack.c.h.b16 %v484
      %v1907 = vunpack.c.l.b16 %v485
      %v1908 = vunpack.c.h.b16 %v485
      %v1909 = vunpack.c.l.b16 %v486
      %v1910 = vunpack.c.h.b16 %v486
      %v1911 = vunpack.c.l.b16 %v487
      %v1912 = vunpack.c.h.b16 %v487
      %v1913 = vunpack.c.l.b16 %v488
      %v1914 = vunpack.c.h.b16 %v488
      %v1915 = vunpack.c.l.b16 %v489
      %v1916 = vunpack.c.h.b16 %v489
      %v1917 = vunpack.c.l.b16 %v490
      %v1918 = vunpack.c.h.b16 %v490
      %v1919 = vunpack.c.l.b16 %v491
      %v1920 = vunpack.c.h.b16 %v491
      %v1921 = vunpack.c.l.b16 %v492
      %v1922 = vunpack.c.h.b16 %v492
      %v1923 = vunpack.c.l.b16 %v493
      %v1924 = vunpack.c.h.b16 %v493
      %v1925 = vunpack.c.l.b16 %v494
      %v1926 = vunpack.c.h.b16 %v494
      %v1927 = vunpack.c.l.b16 %v495
      %v1928 = vunpack.c.h.b16 %v495
      %v1929 = vunpack.c.l.b16 %v496
      %v1930 = vunpack.c.h.b16 %v496
      %v1931 = vunpack.c.l.b16 %v497
      %v1932 = vunpack.c.h.b16 %v497
      %v1933 = vunpack.c.l.b16 %v498
      %v1934 = vunpack.c.h.b16 %v498
      %v1935 = vunpack.c.l.b16 %v499
      %v1936 = vunpack.c.h.b16 %v499
      %v1937 = vunpack.c.l.b16 %v500
      %v1938 = vunpack.c.h.b16 %v500
      %v1939 = vunpack.c.l.b16 %v501
      %v1940 = vunpack.c.h.b16 %v501
      %v1941 = vunpack.c.l.b16 %v502
      %v1942 = vunpack.c.h.b16 %v502
      %v1943 = vunpack.c.l.b16 %v503
      %v1944 = vunpack.c.h.b16 %v503
      %v1945 = vunpack.c.l.b16 %v504
      %v1946 = vunpack.c.h.b16 %v504
      %v1947 = vunpack.c.l.b16 %v505
      %v1948 = vunpack.c.h.b16 %v505
      %v1949 = vunpack.c.l.b16 %v506
      %v1950 = vunpack.c.h.b16 %v506
      %v1951 = vunpack.c.l.b16 %v507
      %v1952 = vunpack.c.h.b16 %v507
      %v1953 = vunpack.c.l.b16 %v508
      %v1954 = vunpack.c.h.b16 %v508
      %v1955 = vunpack.c.l.b16 %v509
      %v1956 = vunpack.c.h.b16 %v509
      %v1957 = vunpack.c.l.b16 %v510
      %v1958 = vunpack.c.h.b16 %v510
      %v1959 = vunpack.c.l.b16 %v511
      %v1960 = vunpack.c.h.b16 %v511
      %v1961 = vunpack.c.l.b16 %v512
      %v1962 = vunpack.c.h.b16 %v512
      %v1963 = vunpack.c.l.b16 %v513
      %v1964 = vunpack.c.h.b16 %v513
      %v1965 = vunpack.c.l.b16 %v514
      %v1966 = vunpack.c.h.b16 %v514
      %v1967 = vunpack.c.l.b16 %v515
      %v1968 = vunpack.c.h.b16 %v515
      %v1969 = vunpack.c.l.b16 %v516
      %v1970 = vunpack.c.h.b16 %v516
      %v1971 = vunpack.c.l.b16 %v517
      %v1972 = vunpack.c.h.b16 %v517
      %v1973 = vunpack.c.l.b16 %v518
      %v1974 = vunpack.c.h.b16 %v518
      %v1975 = vunpack.c.l.b16 %v519
      %v1976 = vunpack.c.h.b16 %v519
      %v1977 = vunpack.c.l.b16 %v520
      %v1978 = vunpack.c.h.b16 %v520
      %v1979 = vunpack.c.l.b16 %v521
      %v1980 = vunpack.c.h.b16 %v521
      %v1981 = vunpack.c.l.b16 %v522
      %v1982 = vunpack.c.h.b16 %v522
      %v1983 = vunpack.c.l.b16 %v523
      %v1984 = vunpack.c.h.b16 %v523
      %v1985 = vunpack.c.l.b16 %v524
      %v1986 = vunpack.c.h.b16 %v524
      %v1987 = vunpack.c.l.b16 %v525
      %v1988 = vunpack.c.h.b16 %v525
      %v1989 = vunpack.c.l.b16 %v526
      %v1990 = vunpack.c.h.b16 %v526
      %v1991 = vunpack.c.l.b16 %v527
      %v1992 = vunpack.c.h.b16 %v527
      %v1993 = vunpack.c.l.b16 %v528
      %v1994 = vunpack.c.h.b16 %v528
      %v1995 = vunpack.c.l.b16 %v529
      %v1996 = vunpack.c.h.b16 %v529
      %v1997 = vunpack.c.l.b16 %v530
      %v1998 = vunpack.c.h.b16 %v530
      %v1999 = vunpack.c.l.b16 %v531
      %v2000 = vunpack.c.h.b16 %v531
      %v2001 = vunpack.c.l.b16 %v532
      %v2002 = vunpack.c.h.b16 %v532
      %v2003 = vunpack.c.l.b16 %v533
      %v2004 = vunpack.c.h.b16 %v533
      %v2005 = vunpack.c.l.b16 %v534
      %v2006 = vunpack.c.h.b16 %v534
      %v2007 = vunpack.c.l.b16 %v535
      %v2008 = vunpack.c.h.b16 %v535
      %v2009 = vunpack.c.l.b16 %v536
      %v2010 = vunpack.c.h.b16 %v536
      %v2011 = vunpack.c.l.b16 %v537
      %v2012 = vunpack.c.h.b16 %v537
      %v2013 = vunpack.c.l.b16 %v538
      %v2014 = vunpack.c.h.b16 %v538
      %v2015 = vunpack.c.l.b16 %v539
      %v2016 = vunpack.c.h.b16 %v539
      %v2017 = vunpack.c.l.b16 %v540
      %v2018 = vunpack.c.h.b16 %v540
      %v2019 = vunpack.c.l.b16 %v541
      %v2020 = vunpack.c.h.b16 %v541
      %v2021 = vunpack.c.l.b16 %v542
      %v2022 = vunpack.c.h.b16 %v542
      %v2023 = vunpack.c.l.b16 %v543
      %v2024 = vunpack.c.h.b16 %v543
      %v2025 = vunpack.c.l.b16 %v544
      %v2026 = vunpack.c.h.b16 %v544
      %v2027 = vunpack.c.l.b16 %v545
      %v2028 = vunpack.c.h.b16 %v545
      %v2029 = vpack.c.b16 %v1777, %v1773
      %v2030 = vpack.c.b16 %v1778, %v1774
      %v2031 = vpack.c.b16 %v1779, %v1775
      %v2032 = vpack.c.b16 %v1780, %v1776
      %v2033 = vpack.c.b16 %v1785, %v1781
      %v2034 = vpack.c.b16 %v1786, %v1782
      %v2035 = vpack.c.b16 %v1787, %v1783
      %v2036 = vpack.c.b16 %v1788, %v1784
      %v2037 = vpack.c.b16 %v1793, %v1789
      %v2038 = vpack.c.b16 %v1794, %v1790
      %v2039 = vpack.c.b16 %v1795, %v1791
      %v2040 = vpack.c.b16 %v1796, %v1792
      %v2041 = vpack.c.b16 %v1801, %v1797
      %v2042 = vpack.c.b16 %v1802, %v1798
      %v2043 = vpack.c.b16 %v1803, %v1799
      %v2044 = vpack.c.b16 %v1804, %v1800
      %v2045 = vpack.c.b16 %v1809, %v1805
      %v2046 = vpack.c.b16 %v1810, %v1806
      %v2047 = vpack.c.b16 %v1811, %v1807
      %v2048 = vpack.c.b16 %v1812, %v1808
      %v2049 = vpack.c.b16 %v1817, %v1813
      %v2050 = vpack.c.b16 %v1818, %v1814
      %v2051 = vpack.c.b16 %v1819, %v1815
      %v2052 = vpack.c.b16 %v1820, %v1816
      %v2053 = vpack.c.b16 %v1825, %v1821
      %v2054 = vpack.c.b16 %v1826, %v1822
      %v2055 = vpack.c.b16 %v1827, %v1823
      %v2056 = vpack.c.b16 %v1828, %v1824
      %v2057 = vpack.c.b16 %v1833, %v1829
      %v2058 = vpack.c.b16 %v1834, %v1830
      %v2059 = vpack.c.b16 %v1835, %v1831
      %v2060 = vpack.c.b16 %v1836, %v1832
      %v2061 = vpack.c.b16 %v1841, %v1837
      %v2062 = vpack.c.b16 %v1842, %v1838
      %v2063 = vpack.c.b16 %v1843, %v1839
      %v2064 = vpack.c.b16 %v1844, %v1840
      %v2065 = vpack.c.b16 %v1849, %v1845
      %v2066 = vpack.c.b16 %v1850, %v1846
      %v2067 = vpack.c.b16 %v1851, %v1847
      %v2068 = vpack.c.b16 %v1852, %v1848
      %v2069 = vpack.c.b16 %v1857, %v1853
      %v2070 = vpack.c.b16 %v1858, %v1854
      %v2071 = vpack.c.b16 %v1859, %v1855
      %v2072 = vpack.c.b16 %v1860, %v1856
      %v2073 = vpack.c.b16 %v1865, %v1861
      %v2074 = vpack.c.b16 %v1866, %v1862
      %v2075 = vpack.c.b16 %v1867, %v1863
      %v2076 = vpack.c.b16 %v1868, %v1864
      %v2077 = vpack.c.b16 %v1873, %v1869
      %v2078 = vpack.c.b16 %v1874, %v1870
      %v2079 = vpack.c.b16 %v1875, %v1871
      %v2080 = vpack.c.b16 %v1876, %v1872
      %v2081 = vpack.c.b16 %v1881, %v1877
      %v2082 = vpack.c.b16 %v1882, %v1878
      %v2083 = vpack.c.b16 %v1883, %v1879
      %v2084 = vpack.c.b16 %v1884, %v1880
      %v2085 = vpack.c.b16 %v1889, %v1885
      %v2086 = vpack.c.b16 %v1890, %v1886
      %v2087 = vpack.c.b16 %v1891, %v1887
      %v2088 = vpack.c.b16 %v1892, %v1888
      %v2089 = vpack.c.b16 %v1897, %v1893
      %v2090 = vpack.c.b16 %v1898, %v1894
      %v2091 = vpack.c.b16 %v1899, %v1895
      %v2092 = vpack.c.b16 %v1900, %v1896
      %v2093 = vpack.c.b16 %v1905, %v1901
      %v2094 = vpack.c.b16 %v1906, %v1902
      %v2095 = vpack.c.b16 %v1907, %v1903
      %v2096 = vpack.c.b16 %v1908, %v1904
      %v2097 = vpack.c.b16 %v1913, %v1909
      %v2098 = vpack.c.b16 %v1914, %v1910
      %v2099 = vpack.c.b16 %v1915, %v1911
      %v2100 = vpack.c.b16 %v1916, %v1912
      %v2101 = vpack.c.b16 %v1921, %v1917
      %v2102 = vpack.c.b16 %v1922, %v1918
      %v2103 = vpack.c.b16 %v1923, %v1919
      %v2104 = vpack.c.b16 %v1924, %v1920
      %v2105 = vpack.c.b16 %v1929, %v1925
      %v2106 = vpack.c.b16 %v1930, %v1926
      %v2107 = vpack.c.b16 %v1931, %v1927
      %v2108 = vpack.c.b16 %v1932, %v1928
      %v2109 = vpack.c.b16 %v1937, %v1933
      %v2110 = vpack.c.b16 %v1938, %v1934
      %v2111 = vpack.c.b16 %v1939, %v1935
      %v2112 = vpack.c.b16 %v1940, %v1936
      %v2113 = vpack.c.b16 %v1945, %v1941
      %v2114 = vpack.c.b16 %v1946, %v1942
      %v2115 = vpack.c.b16 %v1947, %v1943
      %v2116 = vpack.c.b16 %v1948, %v1944
      %v2117 = vpack.c.b16 %v1953, %v1949
      %v2118 = vpack.c.b16 %v1954, %v1950
      %v2119 = vpack.c.b16 %v1955, %v1951
      %v2120 = vpack.c.b16 %v1956, %v1952
      %v2121 = vpack.c.b16 %v1961, %v1957
      %v2122 = vpack.c.b16 %v1962, %v1958
      %v2123 = vpack.c.b16 %v1963, %v1959
      %v2124 = vpack.c.b16 %v1964, %v1960
      %v2125 = vpack.c.b16 %v1969, %v1965
      %v2126 = vpack.c.b16 %v1970, %v1966
      %v2127 = vpack.c.b16 %v1971, %v1967
      %v2128 = vpack.c.b16 %v1972, %v1968
      %v2129 = vpack.c.b16 %v1977, %v1973
      %v2130 = vpack.c.b16 %v1978, %v1974
      %v2131 = vpack.c.b16 %v1979, %v1975
      %v2132 = vpack.c.b16 %v1980, %v1976
      %v2133 = vpack.c.b16 %v1985, %v1981
      %v2134 = vpack.c.b16 %v1986, %v1982
      %v2135 = vpack.c.b16 %v1987, %v1983
      %v2136 = vpack.c.b16 %v1988, %v1984
      %v2137 = vpack.c.b16 %v1993, %v1989
      %v2138 = vpack.c.b16 %v1994, %v1990
      %v2139 = vpack.c.b16 %v1995, %v1991
      %v2140 = vpack.c.b16 %v1996, %v1992
      %v2141 = vpack.c.b16 %v2001, %v1997
      %v2142 = vpack.c.b16 %v2002, %v1998
      %v2143 = vpack.c.b16 %v2003, %v1999
      %v2144 = vpack.c.b16 %v2004, %v2000
      %v2145 = vpack.c.b16 %v2009, %v2005
      %v2146 = vpack.c.b16 %v2010, %v2006
      %v2147 = vpack.c.b16 %v2011, %v2007
      %v2148 = vpack.c.b16 %v2012, %v2008
      %v2149 = vpack.c.b16 %v2017, %v2013
      %v2150 = vpack.c.b16 %v2018, %v2014
      %v2151 = vpack.c.b16 %v2019, %v2015
      %v2152 = vpack.c.b16 %v2020, %v2016
      %v2153 = vpack.c.b16 %v2025, %v2021
      %v2154 = vpack.c.b16 %v2026, %v2022
      %v2155 = vpack.c.b16 %v2027, %v2023
      %v2156 = vpack.c.b16 %v2028, %v2024
      %2285 = vmatprep.subr.bf16.mxu0 0
      %2286 = vmatpush1.bf16.msra.mxu0 %v1620
      %2287 = vmatprep.subr.bf16.mxu0 0
      %2288 = vmatpush1.bf16.msra.mxu0 %v1619
      %2289 = vmatprep.subr.bf16.mxu0 0
      %2290 = vmatpush1.bf16.msra.mxu0 %v1618
      %2291 = vmatprep.subr.bf16.mxu0 0
      %2292 = vmatpush1.bf16.msra.mxu0 %v1617
      %2293 = vmatprep.subr.bf16.mxu0 0
      %2294 = vmatpush1.bf16.msra.mxu0 %v1616
      %2295 = vmatprep.subr.bf16.mxu0 0
      %2296 = vmatpush1.bf16.msra.mxu0 %v1615
      %2297 = vmatprep.subr.bf16.mxu0 0
      %2298 = vmatpush1.bf16.msra.mxu0 %v1614
      %2299 = vmatprep.subr.bf16.mxu0 0
      %2300 = vmatpush1.bf16.msra.mxu0 %v1613
      %2301 = vmatprep.subr.bf16.mxu0 0
      %2302 = vmatpush2.bf16.msra.mxu0 %v1628
      %2303 = vmatprep.subr.bf16.mxu0 0
      %2304 = vmatpush2.bf16.msra.mxu0 %v1627
      %2305 = vmatprep.subr.bf16.mxu0 0
      %2306 = vmatpush2.bf16.msra.mxu0 %v1626
      %2307 = vmatprep.subr.bf16.mxu0 0
      %2308 = vmatpush2.bf16.msra.mxu0 %v1625
      %2309 = vmatprep.subr.bf16.mxu0 0
      %2310 = vmatpush2.bf16.msra.mxu0 %v1624
      %2311 = vmatprep.subr.bf16.mxu0 0
      %2312 = vmatpush2.bf16.msra.mxu0 %v1623
      %2313 = vmatprep.subr.bf16.mxu0 0
      %2314 = vmatpush2.bf16.msra.mxu0 %v1622
      %2315 = vmatprep.subr.bf16.mxu0 0
      %2316 = vmatpush2.bf16.msra.mxu0 %v1621
      %2317 = vmatprep.mubr.bf16.mxu0 %v2030
      %2318 = vmatmul.mubr.bf16.gmra.mxu0 %v2029
      %v2319 = vpop.f32.mrf.mxu0
      %v2320 = vadd.f32 0.0, %v2319
      %v2321 = vpop.f32.mrf.mxu0
      %v2322 = vpop.f32.mrf.mxu0
      %v2323 = vadd.f32 0.0, %v2322
      %v2324 = vpop.f32.mrf.mxu0
      %2325 = vmatprep.mubr.bf16.mxu0 %v2034
      %2326 = vmatmul.mubr.bf16.gmra.mxu0 %v2033
      %v2327 = vpop.f32.mrf.mxu0
      %v2328 = vadd.f32 0.0, %v2327
      %v2329 = vpop.f32.mrf.mxu0
      %v2330 = vpop.f32.mrf.mxu0
      %v2331 = vadd.f32 0.0, %v2330
      %v2332 = vpop.f32.mrf.mxu0
      %2333 = vmatprep.mubr.bf16.mxu0 %v2038
      %2334 = vmatmul.mubr.bf16.gmra.mxu0 %v2037
      %v2335 = vpop.f32.mrf.mxu0
      %v2336 = vadd.f32 0.0, %v2335
      %v2337 = vpop.f32.mrf.mxu0
      %v2338 = vpop.f32.mrf.mxu0
      %v2339 = vadd.f32 0.0, %v2338
      %v2340 = vpop.f32.mrf.mxu0
      %2341 = vmatprep.mubr.bf16.mxu0 %v2042
      %2342 = vmatmul.mubr.bf16.gmra.mxu0 %v2041
      %v2343 = vpop.f32.mrf.mxu0
      %v2344 = vadd.f32 0.0, %v2343
      %v2345 = vpop.f32.mrf.mxu0
      %v2346 = vpop.f32.mrf.mxu0
      %v2347 = vadd.f32 0.0, %v2346
      %v2348 = vpop.f32.mrf.mxu0
      %2349 = vmatprep.mubr.bf16.mxu0 %v2046
      %2350 = vmatmul.mubr.bf16.gmra.mxu0 %v2045
      %v2351 = vpop.f32.mrf.mxu0
      %v2352 = vadd.f32 0.0, %v2351
      %v2353 = vpop.f32.mrf.mxu0
      %v2354 = vpop.f32.mrf.mxu0
      %v2355 = vadd.f32 0.0, %v2354
      %v2356 = vpop.f32.mrf.mxu0
      %2357 = vmatprep.mubr.bf16.mxu0 %v2050
      %2358 = vmatmul.mubr.bf16.gmra.mxu0 %v2049
      %v2359 = vpop.f32.mrf.mxu0
      %v2360 = vadd.f32 0.0, %v2359
      %v2361 = vpop.f32.mrf.mxu0
      %v2362 = vpop.f32.mrf.mxu0
      %v2363 = vadd.f32 0.0, %v2362
      %v2364 = vpop.f32.mrf.mxu0
      %2365 = vmatprep.mubr.bf16.mxu0 %v2054
      %2366 = vmatmul.mubr.bf16.gmra.mxu0 %v2053
      %v2367 = vpop.f32.mrf.mxu0
      %v2368 = vadd.f32 0.0, %v2367
      %v2369 = vpop.f32.mrf.mxu0
      %v2370 = vpop.f32.mrf.mxu0
      %v2371 = vadd.f32 0.0, %v2370
      %v2372 = vpop.f32.mrf.mxu0
      %2373 = vmatprep.mubr.bf16.mxu0 %v2058
      %2374 = vmatmul.mubr.bf16.gmra.mxu0 %v2057
      %v2375 = vpop.f32.mrf.mxu0
      %v2376 = vadd.f32 0.0, %v2375
      %v2377 = vpop.f32.mrf.mxu0
      %v2378 = vpop.f32.mrf.mxu0
      %v2379 = vadd.f32 0.0, %v2378
      %v2380 = vpop.f32.mrf.mxu0
      %2381 = vmatprep.mubr.bf16.mxu0 %v2062
      %2382 = vmatmul.mubr.bf16.gmra.mxu0 %v2061
      %v2383 = vpop.f32.mrf.mxu0
      %v2384 = vadd.f32 0.0, %v2383
      %v2385 = vpop.f32.mrf.mxu0
      %v2386 = vpop.f32.mrf.mxu0
      %v2387 = vadd.f32 0.0, %v2386
      %v2388 = vpop.f32.mrf.mxu0
      %2389 = vmatprep.mubr.bf16.mxu0 %v2066
      %2390 = vmatmul.mubr.bf16.gmra.mxu0 %v2065
      %v2391 = vpop.f32.mrf.mxu0
      %v2392 = vadd.f32 0.0, %v2391
      %v2393 = vpop.f32.mrf.mxu0
      %v2394 = vpop.f32.mrf.mxu0
      %v2395 = vadd.f32 0.0, %v2394
      %v2396 = vpop.f32.mrf.mxu0
      %2397 = vmatprep.mubr.bf16.mxu0 %v2070
      %2398 = vmatmul.mubr.bf16.gmra.mxu0 %v2069
      %v2399 = vpop.f32.mrf.mxu0
      %v2400 = vadd.f32 0.0, %v2399
      %v2401 = vpop.f32.mrf.mxu0
      %v2402 = vpop.f32.mrf.mxu0
      %v2403 = vadd.f32 0.0, %v2402
      %v2404 = vpop.f32.mrf.mxu0
      %2405 = vmatprep.mubr.bf16.mxu0 %v2074
      %2406 = vmatmul.mubr.bf16.gmra.mxu0 %v2073
      %v2407 = vpop.f32.mrf.mxu0
      %v2408 = vadd.f32 0.0, %v2407
      %v2409 = vpop.f32.mrf.mxu0
      %v2410 = vpop.f32.mrf.mxu0
      %v2411 = vadd.f32 0.0, %v2410
      %v2412 = vpop.f32.mrf.mxu0
      %2413 = vmatprep.mubr.bf16.mxu0 %v2078
      %2414 = vmatmul.mubr.bf16.gmra.mxu0 %v2077
      %v2415 = vpop.f32.mrf.mxu0
      %v2416 = vadd.f32 0.0, %v2415
      %v2417 = vpop.f32.mrf.mxu0
      %v2418 = vpop.f32.mrf.mxu0
      %v2419 = vadd.f32 0.0, %v2418
      %v2420 = vpop.f32.mrf.mxu0
      %2421 = vmatprep.mubr.bf16.mxu0 %v2082
      %2422 = vmatmul.mubr.bf16.gmra.mxu0 %v2081
      %v2423 = vpop.f32.mrf.mxu0
      %v2424 = vadd.f32 0.0, %v2423
      %v2425 = vpop.f32.mrf.mxu0
      %v2426 = vpop.f32.mrf.mxu0
      %v2427 = vadd.f32 0.0, %v2426
      %v2428 = vpop.f32.mrf.mxu0
      %2429 = vmatprep.mubr.bf16.mxu0 %v2086
      %2430 = vmatmul.mubr.bf16.gmra.mxu0 %v2085
      %v2431 = vpop.f32.mrf.mxu0
      %v2432 = vadd.f32 0.0, %v2431
      %v2433 = vpop.f32.mrf.mxu0
      %v2434 = vpop.f32.mrf.mxu0
      %v2435 = vadd.f32 0.0, %v2434
      %v2436 = vpop.f32.mrf.mxu0
      %2437 = vmatprep.mubr.bf16.mxu0 %v2090
      %2438 = vmatmul.mubr.bf16.gmra.mxu0 %v2089
      %v2439 = vpop.f32.mrf.mxu0
      %v2440 = vadd.f32 0.0, %v2439
      %v2441 = vpop.f32.mrf.mxu0
      %v2442 = vpop.f32.mrf.mxu0
      %v2443 = vadd.f32 0.0, %v2442
      %v2444 = vpop.f32.mrf.mxu0
      %2445 = vmatprep.mubr.bf16.mxu0 %v2094
      %2446 = vmatmul.mubr.bf16.gmra.mxu0 %v2093
      %v2447 = vpop.f32.mrf.mxu0
      %v2448 = vadd.f32 0.0, %v2447
      %v2449 = vpop.f32.mrf.mxu0
      %v2450 = vpop.f32.mrf.mxu0
      %v2451 = vadd.f32 0.0, %v2450
      %v2452 = vpop.f32.mrf.mxu0
      %2453 = vmatprep.mubr.bf16.mxu0 %v2098
      %2454 = vmatmul.mubr.bf16.gmra.mxu0 %v2097
      %v2455 = vpop.f32.mrf.mxu0
      %v2456 = vadd.f32 0.0, %v2455
      %v2457 = vpop.f32.mrf.mxu0
      %v2458 = vpop.f32.mrf.mxu0
      %v2459 = vadd.f32 0.0, %v2458
      %v2460 = vpop.f32.mrf.mxu0
      %2461 = vmatprep.mubr.bf16.mxu0 %v2102
      %2462 = vmatmul.mubr.bf16.gmra.mxu0 %v2101
      %v2463 = vpop.f32.mrf.mxu0
      %v2464 = vadd.f32 0.0, %v2463
      %v2465 = vpop.f32.mrf.mxu0
      %v2466 = vpop.f32.mrf.mxu0
      %v2467 = vadd.f32 0.0, %v2466
      %v2468 = vpop.f32.mrf.mxu0
      %2469 = vmatprep.mubr.bf16.mxu0 %v2106
      %2470 = vmatmul.mubr.bf16.gmra.mxu0 %v2105
      %v2471 = vpop.f32.mrf.mxu0
      %v2472 = vadd.f32 0.0, %v2471
      %v2473 = vpop.f32.mrf.mxu0
      %v2474 = vpop.f32.mrf.mxu0
      %v2475 = vadd.f32 0.0, %v2474
      %v2476 = vpop.f32.mrf.mxu0
      %2477 = vmatprep.mubr.bf16.mxu0 %v2110
      %2478 = vmatmul.mubr.bf16.gmra.mxu0 %v2109
      %v2479 = vpop.f32.mrf.mxu0
      %v2480 = vadd.f32 0.0, %v2479
      %v2481 = vpop.f32.mrf.mxu0
      %v2482 = vpop.f32.mrf.mxu0
      %v2483 = vadd.f32 0.0, %v2482
      %v2484 = vpop.f32.mrf.mxu0
      %2485 = vmatprep.mubr.bf16.mxu0 %v2114
      %2486 = vmatmul.mubr.bf16.gmra.mxu0 %v2113
      %v2487 = vpop.f32.mrf.mxu0
      %v2488 = vadd.f32 0.0, %v2487
      %v2489 = vpop.f32.mrf.mxu0
      %v2490 = vpop.f32.mrf.mxu0
      %v2491 = vadd.f32 0.0, %v2490
      %v2492 = vpop.f32.mrf.mxu0
      %2493 = vmatprep.mubr.bf16.mxu0 %v2118
      %2494 = vmatmul.mubr.bf16.gmra.mxu0 %v2117
      %v2495 = vpop.f32.mrf.mxu0
      %v2496 = vadd.f32 0.0, %v2495
      %v2497 = vpop.f32.mrf.mxu0
      %v2498 = vpop.f32.mrf.mxu0
      %v2499 = vadd.f32 0.0, %v2498
      %v2500 = vpop.f32.mrf.mxu0
      %2501 = vmatprep.mubr.bf16.mxu0 %v2122
      %2502 = vmatmul.mubr.bf16.gmra.mxu0 %v2121
      %v2503 = vpop.f32.mrf.mxu0
      %v2504 = vadd.f32 0.0, %v2503
      %v2505 = vpop.f32.mrf.mxu0
      %v2506 = vpop.f32.mrf.mxu0
      %v2507 = vadd.f32 0.0, %v2506
      %v2508 = vpop.f32.mrf.mxu0
      %2509 = vmatprep.mubr.bf16.mxu0 %v2126
      %2510 = vmatmul.mubr.bf16.gmra.mxu0 %v2125
      %v2511 = vpop.f32.mrf.mxu0
      %v2512 = vadd.f32 0.0, %v2511
      %v2513 = vpop.f32.mrf.mxu0
      %v2514 = vpop.f32.mrf.mxu0
      %v2515 = vadd.f32 0.0, %v2514
      %v2516 = vpop.f32.mrf.mxu0
      %2517 = vmatprep.mubr.bf16.mxu0 %v2130
      %2518 = vmatmul.mubr.bf16.gmra.mxu0 %v2129
      %v2519 = vpop.f32.mrf.mxu0
      %v2520 = vadd.f32 0.0, %v2519
      %v2521 = vpop.f32.mrf.mxu0
      %v2522 = vpop.f32.mrf.mxu0
      %v2523 = vadd.f32 0.0, %v2522
      %v2524 = vpop.f32.mrf.mxu0
      %2525 = vmatprep.mubr.bf16.mxu0 %v2134
      %2526 = vmatmul.mubr.bf16.gmra.mxu0 %v2133
      %v2527 = vpop.f32.mrf.mxu0
      %v2528 = vadd.f32 0.0, %v2527
      %v2529 = vpop.f32.mrf.mxu0
      %v2530 = vpop.f32.mrf.mxu0
      %v2531 = vadd.f32 0.0, %v2530
      %v2532 = vpop.f32.mrf.mxu0
      %2533 = vmatprep.mubr.bf16.mxu0 %v2138
      %2534 = vmatmul.mubr.bf16.gmra.mxu0 %v2137
      %v2535 = vpop.f32.mrf.mxu0
      %v2536 = vadd.f32 0.0, %v2535
      %v2537 = vpop.f32.mrf.mxu0
      %v2538 = vpop.f32.mrf.mxu0
      %v2539 = vadd.f32 0.0, %v2538
      %v2540 = vpop.f32.mrf.mxu0
      %2541 = vmatprep.mubr.bf16.mxu0 %v2142
      %2542 = vmatmul.mubr.bf16.gmra.mxu0 %v2141
      %v2543 = vpop.f32.mrf.mxu0
      %v2544 = vadd.f32 0.0, %v2543
      %v2545 = vpop.f32.mrf.mxu0
      %v2546 = vpop.f32.mrf.mxu0
      %v2547 = vadd.f32 0.0, %v2546
      %v2548 = vpop.f32.mrf.mxu0
      %2549 = vmatprep.mubr.bf16.mxu0 %v2146
      %2550 = vmatmul.mubr.bf16.gmra.mxu0 %v2145
      %v2551 = vpop.f32.mrf.mxu0
      %v2552 = vadd.f32 0.0, %v2551
      %v2553 = vpop.f32.mrf.mxu0
      %v2554 = vpop.f32.mrf.mxu0
      %v2555 = vadd.f32 0.0, %v2554
      %v2556 = vpop.f32.mrf.mxu0
      %2557 = vmatprep.mubr.bf16.mxu0 %v2150
      %2558 = vmatmul.mubr.bf16.gmra.mxu0 %v2149
      %v2559 = vpop.f32.mrf.mxu0
      %v2560 = vadd.f32 0.0, %v2559
      %v2561 = vpop.f32.mrf.mxu0
      %v2562 = vpop.f32.mrf.mxu0
      %v2563 = vadd.f32 0.0, %v2562
      %v2564 = vpop.f32.mrf.mxu0
      %2565 = vmatprep.mubr.bf16.mxu0 %v2154
      %2566 = vmatmul.mubr.bf16.gmra.mxu0 %v2153
      %v2567 = vpop.f32.mrf.mxu0
      %v2568 = vadd.f32 0.0, %v2567
      %v2569 = vpop.f32.mrf.mxu0
      %v2570 = vpop.f32.mrf.mxu0
      %v2571 = vadd.f32 0.0, %v2570
      %v2572 = vpop.f32.mrf.mxu0
      %2573 = vdwg.mxu0
      %2574 = vmatprep.subr.bf16.mxu0 0
      %2575 = vmatpush1.bf16.msra.mxu0 %v1636
      %2576 = vmatprep.subr.bf16.mxu0 0
      %2577 = vmatpush1.bf16.msra.mxu0 %v1635
      %2578 = vmatprep.subr.bf16.mxu0 0
      %2579 = vmatpush1.bf16.msra.mxu0 %v1634
      %2580 = vmatprep.subr.bf16.mxu0 0
      %2581 = vmatpush1.bf16.msra.mxu0 %v1633
      %2582 = vmatprep.subr.bf16.mxu0 0
      %2583 = vmatpush1.bf16.msra.mxu0 %v1632
      %2584 = vmatprep.subr.bf16.mxu0 0
      %2585 = vmatpush1.bf16.msra.mxu0 %v1631
      %2586 = vmatprep.subr.bf16.mxu0 0
      %2587 = vmatpush1.bf16.msra.mxu0 %v1630
      %2588 = vmatprep.subr.bf16.mxu0 0
      %2589 = vmatpush1.bf16.msra.mxu0 %v1629
      %2590 = vmatprep.subr.bf16.mxu0 0
      %2591 = vmatpush2.bf16.msra.mxu0 %v1644
      %2592 = vmatprep.subr.bf16.mxu0 0
      %2593 = vmatpush2.bf16.msra.mxu0 %v1643
      %2594 = vmatprep.subr.bf16.mxu0 0
      %2595 = vmatpush2.bf16.msra.mxu0 %v1642
      %2596 = vmatprep.subr.bf16.mxu0 0
      %2597 = vmatpush2.bf16.msra.mxu0 %v1641
      %2598 = vmatprep.subr.bf16.mxu0 0
      %2599 = vmatpush2.bf16.msra.mxu0 %v1640
      %2600 = vmatprep.subr.bf16.mxu0 0
      %2601 = vmatpush2.bf16.msra.mxu0 %v1639
      %2602 = vmatprep.subr.bf16.mxu0 0
      %2603 = vmatpush2.bf16.msra.mxu0 %v1638
      %2604 = vmatprep.subr.bf16.mxu0 0
      %2605 = vmatpush2.bf16.msra.mxu0 %v1637
      %2606 = vmatprep.mubr.bf16.mxu0 %v2032
      %2607 = vmatmul.mubr.bf16.gmra.mxu0 %v2031
      %v2608 = vpop.f32.mrf.mxu0
      %v2609 = vadd.f32 %v2320, %v2608
      %v2610 = vpop.f32.mrf.mxu0
      %v2611 = vpop.f32.mrf.mxu0
      %v2612 = vadd.f32 %v2323, %v2611
      %v2613 = vpop.f32.mrf.mxu0
      %2614 = vmatprep.mubr.bf16.mxu0 %v2036
      %2615 = vmatmul.mubr.bf16.gmra.mxu0 %v2035
      %v2616 = vpop.f32.mrf.mxu0
      %v2617 = vadd.f32 %v2328, %v2616
      %v2618 = vpop.f32.mrf.mxu0
      %v2619 = vpop.f32.mrf.mxu0
      %v2620 = vadd.f32 %v2331, %v2619
      %v2621 = vpop.f32.mrf.mxu0
      %2622 = vmatprep.mubr.bf16.mxu0 %v2040
      %2623 = vmatmul.mubr.bf16.gmra.mxu0 %v2039
      %v2624 = vpop.f32.mrf.mxu0
      %v2625 = vadd.f32 %v2336, %v2624
      %v2626 = vpop.f32.mrf.mxu0
      %v2627 = vpop.f32.mrf.mxu0
      %v2628 = vadd.f32 %v2339, %v2627
      %v2629 = vpop.f32.mrf.mxu0
      %2630 = vmatprep.mubr.bf16.mxu0 %v2044
      %2631 = vmatmul.mubr.bf16.gmra.mxu0 %v2043
      %v2632 = vpop.f32.mrf.mxu0
      %v2633 = vadd.f32 %v2344, %v2632
      %v2634 = vpop.f32.mrf.mxu0
      %v2635 = vpop.f32.mrf.mxu0
      %v2636 = vadd.f32 %v2347, %v2635
      %v2637 = vpop.f32.mrf.mxu0
      %2638 = vmatprep.mubr.bf16.mxu0 %v2048
      %2639 = vmatmul.mubr.bf16.gmra.mxu0 %v2047
      %v2640 = vpop.f32.mrf.mxu0
      %v2641 = vadd.f32 %v2352, %v2640
      %v2642 = vpop.f32.mrf.mxu0
      %v2643 = vpop.f32.mrf.mxu0
      %v2644 = vadd.f32 %v2355, %v2643
      %v2645 = vpop.f32.mrf.mxu0
      %2646 = vmatprep.mubr.bf16.mxu0 %v2052
      %2647 = vmatmul.mubr.bf16.gmra.mxu0 %v2051
      %v2648 = vpop.f32.mrf.mxu0
      %v2649 = vadd.f32 %v2360, %v2648
      %v2650 = vpop.f32.mrf.mxu0
      %v2651 = vpop.f32.mrf.mxu0
      %v2652 = vadd.f32 %v2363, %v2651
      %v2653 = vpop.f32.mrf.mxu0
      %2654 = vmatprep.mubr.bf16.mxu0 %v2056
      %2655 = vmatmul.mubr.bf16.gmra.mxu0 %v2055
      %v2656 = vpop.f32.mrf.mxu0
      %v2657 = vadd.f32 %v2368, %v2656
      %v2658 = vpop.f32.mrf.mxu0
      %v2659 = vpop.f32.mrf.mxu0
      %v2660 = vadd.f32 %v2371, %v2659
      %v2661 = vpop.f32.mrf.mxu0
      %2662 = vmatprep.mubr.bf16.mxu0 %v2060
      %2663 = vmatmul.mubr.bf16.gmra.mxu0 %v2059
      %v2664 = vpop.f32.mrf.mxu0
      %v2665 = vadd.f32 %v2376, %v2664
      %v2666 = vpop.f32.mrf.mxu0
      %v2667 = vpop.f32.mrf.mxu0
      %v2668 = vadd.f32 %v2379, %v2667
      %v2669 = vpop.f32.mrf.mxu0
      %2670 = vmatprep.mubr.bf16.mxu0 %v2064
      %2671 = vmatmul.mubr.bf16.gmra.mxu0 %v2063
      %v2672 = vpop.f32.mrf.mxu0
      %v2673 = vadd.f32 %v2384, %v2672
      %v2674 = vpop.f32.mrf.mxu0
      %v2675 = vpop.f32.mrf.mxu0
      %v2676 = vadd.f32 %v2387, %v2675
      %v2677 = vpop.f32.mrf.mxu0
      %2678 = vmatprep.mubr.bf16.mxu0 %v2068
      %2679 = vmatmul.mubr.bf16.gmra.mxu0 %v2067
      %v2680 = vpop.f32.mrf.mxu0
      %v2681 = vadd.f32 %v2392, %v2680
      %v2682 = vpop.f32.mrf.mxu0
      %v2683 = vpop.f32.mrf.mxu0
      %v2684 = vadd.f32 %v2395, %v2683
      %v2685 = vpop.f32.mrf.mxu0
      %2686 = vmatprep.mubr.bf16.mxu0 %v2072
      %2687 = vmatmul.mubr.bf16.gmra.mxu0 %v2071
      %v2688 = vpop.f32.mrf.mxu0
      %v2689 = vadd.f32 %v2400, %v2688
      %v2690 = vpop.f32.mrf.mxu0
      %v2691 = vpop.f32.mrf.mxu0
      %v2692 = vadd.f32 %v2403, %v2691
      %v2693 = vpop.f32.mrf.mxu0
      %2694 = vmatprep.mubr.bf16.mxu0 %v2076
      %2695 = vmatmul.mubr.bf16.gmra.mxu0 %v2075
      %v2696 = vpop.f32.mrf.mxu0
      %v2697 = vadd.f32 %v2408, %v2696
      %v2698 = vpop.f32.mrf.mxu0
      %v2699 = vpop.f32.mrf.mxu0
      %v2700 = vadd.f32 %v2411, %v2699
      %v2701 = vpop.f32.mrf.mxu0
      %2702 = vmatprep.mubr.bf16.mxu0 %v2080
      %2703 = vmatmul.mubr.bf16.gmra.mxu0 %v2079
      %v2704 = vpop.f32.mrf.mxu0
      %v2705 = vadd.f32 %v2416, %v2704
      %v2706 = vpop.f32.mrf.mxu0
      %v2707 = vpop.f32.mrf.mxu0
      %v2708 = vadd.f32 %v2419, %v2707
      %v2709 = vpop.f32.mrf.mxu0
      %2710 = vmatprep.mubr.bf16.mxu0 %v2084
      %2711 = vmatmul.mubr.bf16.gmra.mxu0 %v2083
      %v2712 = vpop.f32.mrf.mxu0
      %v2713 = vadd.f32 %v2424, %v2712
      %v2714 = vpop.f32.mrf.mxu0
      %v2715 = vpop.f32.mrf.mxu0
      %v2716 = vadd.f32 %v2427, %v2715
      %v2717 = vpop.f32.mrf.mxu0
      %2718 = vmatprep.mubr.bf16.mxu0 %v2088
      %2719 = vmatmul.mubr.bf16.gmra.mxu0 %v2087
      %v2720 = vpop.f32.mrf.mxu0
      %v2721 = vadd.f32 %v2432, %v2720
      %v2722 = vpop.f32.mrf.mxu0
      %v2723 = vpop.f32.mrf.mxu0
      %v2724 = vadd.f32 %v2435, %v2723
      %v2725 = vpop.f32.mrf.mxu0
      %2726 = vmatprep.mubr.bf16.mxu0 %v2092
      %2727 = vmatmul.mubr.bf16.gmra.mxu0 %v2091
      %v2728 = vpop.f32.mrf.mxu0
      %v2729 = vadd.f32 %v2440, %v2728
      %v2730 = vpop.f32.mrf.mxu0
      %v2731 = vpop.f32.mrf.mxu0
      %v2732 = vadd.f32 %v2443, %v2731
      %v2733 = vpop.f32.mrf.mxu0
      %2734 = vmatprep.mubr.bf16.mxu0 %v2096
      %2735 = vmatmul.mubr.bf16.gmra.mxu0 %v2095
      %v2736 = vpop.f32.mrf.mxu0
      %v2737 = vadd.f32 %v2448, %v2736
      %v2738 = vpop.f32.mrf.mxu0
      %v2739 = vpop.f32.mrf.mxu0
      %v2740 = vadd.f32 %v2451, %v2739
      %v2741 = vpop.f32.mrf.mxu0
      %2742 = vmatprep.mubr.bf16.mxu0 %v2100
      %2743 = vmatmul.mubr.bf16.gmra.mxu0 %v2099
      %v2744 = vpop.f32.mrf.mxu0
      %v2745 = vadd.f32 %v2456, %v2744
      %v2746 = vpop.f32.mrf.mxu0
      %v2747 = vpop.f32.mrf.mxu0
      %v2748 = vadd.f32 %v2459, %v2747
      %v2749 = vpop.f32.mrf.mxu0
      %2750 = vmatprep.mubr.bf16.mxu0 %v2104
      %2751 = vmatmul.mubr.bf16.gmra.mxu0 %v2103
      %v2752 = vpop.f32.mrf.mxu0
      %v2753 = vadd.f32 %v2464, %v2752
      %v2754 = vpop.f32.mrf.mxu0
      %v2755 = vpop.f32.mrf.mxu0
      %v2756 = vadd.f32 %v2467, %v2755
      %v2757 = vpop.f32.mrf.mxu0
      %2758 = vmatprep.mubr.bf16.mxu0 %v2108
      %2759 = vmatmul.mubr.bf16.gmra.mxu0 %v2107
      %v2760 = vpop.f32.mrf.mxu0
      %v2761 = vadd.f32 %v2472, %v2760
      %v2762 = vpop.f32.mrf.mxu0
      %v2763 = vpop.f32.mrf.mxu0
      %v2764 = vadd.f32 %v2475, %v2763
      %v2765 = vpop.f32.mrf.mxu0
      %2766 = vmatprep.mubr.bf16.mxu0 %v2112
      %2767 = vmatmul.mubr.bf16.gmra.mxu0 %v2111
      %v2768 = vpop.f32.mrf.mxu0
      %v2769 = vadd.f32 %v2480, %v2768
      %v2770 = vpop.f32.mrf.mxu0
      %v2771 = vpop.f32.mrf.mxu0
      %v2772 = vadd.f32 %v2483, %v2771
      %v2773 = vpop.f32.mrf.mxu0
      %2774 = vmatprep.mubr.bf16.mxu0 %v2116
      %2775 = vmatmul.mubr.bf16.gmra.mxu0 %v2115
      %v2776 = vpop.f32.mrf.mxu0
      %v2777 = vadd.f32 %v2488, %v2776
      %v2778 = vpop.f32.mrf.mxu0
      %v2779 = vpop.f32.mrf.mxu0
      %v2780 = vadd.f32 %v2491, %v2779
      %v2781 = vpop.f32.mrf.mxu0
      %2782 = vmatprep.mubr.bf16.mxu0 %v2120
      %2783 = vmatmul.mubr.bf16.gmra.mxu0 %v2119
      %v2784 = vpop.f32.mrf.mxu0
      %v2785 = vadd.f32 %v2496, %v2784
      %v2786 = vpop.f32.mrf.mxu0
      %v2787 = vpop.f32.mrf.mxu0
      %v2788 = vadd.f32 %v2499, %v2787
      %v2789 = vpop.f32.mrf.mxu0
      %2790 = vmatprep.mubr.bf16.mxu0 %v2124
      %2791 = vmatmul.mubr.bf16.gmra.mxu0 %v2123
      %v2792 = vpop.f32.mrf.mxu0
      %v2793 = vadd.f32 %v2504, %v2792
      %v2794 = vpop.f32.mrf.mxu0
      %v2795 = vpop.f32.mrf.mxu0
      %v2796 = vadd.f32 %v2507, %v2795
      %v2797 = vpop.f32.mrf.mxu0
      %2798 = vmatprep.mubr.bf16.mxu0 %v2128
      %2799 = vmatmul.mubr.bf16.gmra.mxu0 %v2127
      %v2800 = vpop.f32.mrf.mxu0
      %v2801 = vadd.f32 %v2512, %v2800
      %v2802 = vpop.f32.mrf.mxu0
      %v2803 = vpop.f32.mrf.mxu0
      %v2804 = vadd.f32 %v2515, %v2803
      %v2805 = vpop.f32.mrf.mxu0
      %2806 = vmatprep.mubr.bf16.mxu0 %v2132
      %2807 = vmatmul.mubr.bf16.gmra.mxu0 %v2131
      %v2808 = vpop.f32.mrf.mxu0
      %v2809 = vadd.f32 %v2520, %v2808
      %v2810 = vpop.f32.mrf.mxu0
      %v2811 = vpop.f32.mrf.mxu0
      %v2812 = vadd.f32 %v2523, %v2811
      %v2813 = vpop.f32.mrf.mxu0
      %2814 = vmatprep.mubr.bf16.mxu0 %v2136
      %2815 = vmatmul.mubr.bf16.gmra.mxu0 %v2135
      %v2816 = vpop.f32.mrf.mxu0
      %v2817 = vadd.f32 %v2528, %v2816
      %v2818 = vpop.f32.mrf.mxu0
      %v2819 = vpop.f32.mrf.mxu0
      %v2820 = vadd.f32 %v2531, %v2819
      %v2821 = vpop.f32.mrf.mxu0
      %2822 = vmatprep.mubr.bf16.mxu0 %v2140
      %2823 = vmatmul.mubr.bf16.gmra.mxu0 %v2139
      %v2824 = vpop.f32.mrf.mxu0
      %v2825 = vadd.f32 %v2536, %v2824
      %v2826 = vpop.f32.mrf.mxu0
      %v2827 = vpop.f32.mrf.mxu0
      %v2828 = vadd.f32 %v2539, %v2827
      %v2829 = vpop.f32.mrf.mxu0
      %2830 = vmatprep.mubr.bf16.mxu0 %v2144
      %2831 = vmatmul.mubr.bf16.gmra.mxu0 %v2143
      %v2832 = vpop.f32.mrf.mxu0
      %v2833 = vadd.f32 %v2544, %v2832
      %v2834 = vpop.f32.mrf.mxu0
      %v2835 = vpop.f32.mrf.mxu0
      %v2836 = vadd.f32 %v2547, %v2835
      %v2837 = vpop.f32.mrf.mxu0
      %2838 = vmatprep.mubr.bf16.mxu0 %v2148
      %2839 = vmatmul.mubr.bf16.gmra.mxu0 %v2147
      %v2840 = vpop.f32.mrf.mxu0
      %v2841 = vadd.f32 %v2552, %v2840
      %v2842 = vpop.f32.mrf.mxu0
      %v2843 = vpop.f32.mrf.mxu0
      %v2844 = vadd.f32 %v2555, %v2843
      %v2845 = vpop.f32.mrf.mxu0
      %2846 = vmatprep.mubr.bf16.mxu0 %v2152
      %2847 = vmatmul.mubr.bf16.gmra.mxu0 %v2151
      %v2848 = vpop.f32.mrf.mxu0
      %v2849 = vadd.f32 %v2560, %v2848
      %v2850 = vpop.f32.mrf.mxu0
      %v2851 = vpop.f32.mrf.mxu0
      %v2852 = vadd.f32 %v2563, %v2851
      %v2853 = vpop.f32.mrf.mxu0
      %2854 = vmatprep.mubr.bf16.mxu0 %v2156
      %2855 = vmatmul.mubr.bf16.gmra.mxu0 %v2155
      %v2856 = vpop.f32.mrf.mxu0
      %v2857 = vadd.f32 %v2568, %v2856
      %v2858 = vpop.f32.mrf.mxu0
      %v2859 = vpop.f32.mrf.mxu0
      %v2860 = vadd.f32 %v2571, %v2859
      %v2861 = vpop.f32.mrf.mxu0
      %2862 = vdwg.mxu0
      %v2863 = vmul.f32 %v1232, %v2609
      %v2864 = vmul.f32 %v1237, %v2612
      %v2865 = vmul.f32 %v1242, %v2617
      %v2866 = vmul.f32 %v1247, %v2620
      %v2867 = vmul.f32 %v1252, %v2625
      %v2868 = vmul.f32 %v1257, %v2628
      %v2869 = vmul.f32 %v1262, %v2633
      %v2870 = vmul.f32 %v1267, %v2636
      %v2871 = vmul.f32 %v1272, %v2641
      %v2872 = vmul.f32 %v1277, %v2644
      %v2873 = vmul.f32 %v1282, %v2649
      %v2874 = vmul.f32 %v1287, %v2652
      %v2875 = vmul.f32 %v1292, %v2657
      %v2876 = vmul.f32 %v1297, %v2660
      %v2877 = vmul.f32 %v1302, %v2665
      %v2878 = vmul.f32 %v1307, %v2668
      %v2879 = vmul.f32 %v1312, %v2673
      %v2880 = vmul.f32 %v1317, %v2676
      %v2881 = vmul.f32 %v1322, %v2681
      %v2882 = vmul.f32 %v1327, %v2684
      %v2883 = vmul.f32 %v1332, %v2689
      %v2884 = vmul.f32 %v1337, %v2692
      %v2885 = vmul.f32 %v1342, %v2697
      %v2886 = vmul.f32 %v1347, %v2700
      %v2887 = vmul.f32 %v1352, %v2705
      %v2888 = vmul.f32 %v1357, %v2708
      %v2889 = vmul.f32 %v1362, %v2713
      %v2890 = vmul.f32 %v1367, %v2716
      %v2891 = vmul.f32 %v1372, %v2721
      %v2892 = vmul.f32 %v1377, %v2724
      %v2893 = vmul.f32 %v1382, %v2729
      %v2894 = vmul.f32 %v1387, %v2732
      %v2895 = vmul.f32 %v1392, %v2737
      %v2896 = vmul.f32 %v1397, %v2740
      %v2897 = vmul.f32 %v1402, %v2745
      %v2898 = vmul.f32 %v1407, %v2748
      %v2899 = vmul.f32 %v1412, %v2753
      %v2900 = vmul.f32 %v1417, %v2756
      %v2901 = vmul.f32 %v1422, %v2761
      %v2902 = vmul.f32 %v1427, %v2764
      %v2903 = vmul.f32 %v1432, %v2769
      %v2904 = vmul.f32 %v1437, %v2772
      %v2905 = vmul.f32 %v1442, %v2777
      %v2906 = vmul.f32 %v1447, %v2780
      %v2907 = vmul.f32 %v1452, %v2785
      %v2908 = vmul.f32 %v1457, %v2788
      %v2909 = vmul.f32 %v1462, %v2793
      %v2910 = vmul.f32 %v1467, %v2796
      %v2911 = vmul.f32 %v1472, %v2801
      %v2912 = vmul.f32 %v1477, %v2804
      %v2913 = vmul.f32 %v1482, %v2809
      %v2914 = vmul.f32 %v1487, %v2812
      %v2915 = vmul.f32 %v1492, %v2817
      %v2916 = vmul.f32 %v1497, %v2820
      %v2917 = vmul.f32 %v1502, %v2825
      %v2918 = vmul.f32 %v1507, %v2828
      %v2919 = vmul.f32 %v1512, %v2833
      %v2920 = vmul.f32 %v1517, %v2836
      %v2921 = vmul.f32 %v1522, %v2841
      %v2922 = vmul.f32 %v1527, %v2844
      %v2923 = vmul.f32 %v1532, %v2849
      %v2924 = vmul.f32 %v1537, %v2852
      %v2925 = vmul.f32 %v1542, %v2857
      %v2926 = vmul.f32 %v1547, %v2860
      %v2927 = vld [vmem:[%s6] sm:$0x1]
      %v2929 = vlaneseq
      %v2930 = vshrl.u32 %v2929, 7
      %v2931 = vsub.s32 0, %v2930
      %v2932 = vrot.slane %v2927, %v2931
      %v2934 = vadd.f32 %v2863, %v2932
      %v2935 = vadd.f32 %v2864, %v2932
      %v2936 = vadd.f32 %v2865, %v2932
      %v2937 = vadd.f32 %v2866, %v2932
      %v2938 = vadd.f32 %v2867, %v2932
      %v2939 = vadd.f32 %v2868, %v2932
      %v2940 = vadd.f32 %v2869, %v2932
      %v2941 = vadd.f32 %v2870, %v2932
      %v2942 = vadd.f32 %v2871, %v2932
      %v2943 = vadd.f32 %v2872, %v2932
      %v2944 = vadd.f32 %v2873, %v2932
      %v2945 = vadd.f32 %v2874, %v2932
      %v2946 = vadd.f32 %v2875, %v2932
      %v2947 = vadd.f32 %v2876, %v2932
      %v2948 = vadd.f32 %v2877, %v2932
      %v2949 = vadd.f32 %v2878, %v2932
      %v2950 = vadd.f32 %v2879, %v2932
      %v2951 = vadd.f32 %v2880, %v2932
      %v2952 = vadd.f32 %v2881, %v2932
      %v2953 = vadd.f32 %v2882, %v2932
      %v2954 = vadd.f32 %v2883, %v2932
      %v2955 = vadd.f32 %v2884, %v2932
      %v2956 = vadd.f32 %v2885, %v2932
      %v2957 = vadd.f32 %v2886, %v2932
      %v2958 = vadd.f32 %v2887, %v2932
      %v2959 = vadd.f32 %v2888, %v2932
      %v2960 = vadd.f32 %v2889, %v2932
      %v2961 = vadd.f32 %v2890, %v2932
      %v2962 = vadd.f32 %v2891, %v2932
      %v2963 = vadd.f32 %v2892, %v2932
      %v2964 = vadd.f32 %v2893, %v2932
      %v2965 = vadd.f32 %v2894, %v2932
      %v2966 = vadd.f32 %v2895, %v2932
      %v2967 = vadd.f32 %v2896, %v2932
      %v2968 = vadd.f32 %v2897, %v2932
      %v2969 = vadd.f32 %v2898, %v2932
      %v2970 = vadd.f32 %v2899, %v2932
      %v2971 = vadd.f32 %v2900, %v2932
      %v2972 = vadd.f32 %v2901, %v2932
      %v2973 = vadd.f32 %v2902, %v2932
      %v2974 = vadd.f32 %v2903, %v2932
      %v2975 = vadd.f32 %v2904, %v2932
      %v2976 = vadd.f32 %v2905, %v2932
      %v2977 = vadd.f32 %v2906, %v2932
      %v2978 = vadd.f32 %v2907, %v2932
      %v2979 = vadd.f32 %v2908, %v2932
      %v2980 = vadd.f32 %v2909, %v2932
      %v2981 = vadd.f32 %v2910, %v2932
      %v2982 = vadd.f32 %v2911, %v2932
      %v2983 = vadd.f32 %v2912, %v2932
      %v2984 = vadd.f32 %v2913, %v2932
      %v2985 = vadd.f32 %v2914, %v2932
      %v2986 = vadd.f32 %v2915, %v2932
      %v2987 = vadd.f32 %v2916, %v2932
      %v2988 = vadd.f32 %v2917, %v2932
      %v2989 = vadd.f32 %v2918, %v2932
      %v2990 = vadd.f32 %v2919, %v2932
      %v2991 = vadd.f32 %v2920, %v2932
      %v2992 = vadd.f32 %v2921, %v2932
      %v2993 = vadd.f32 %v2922, %v2932
      %v2994 = vadd.f32 %v2923, %v2932
      %v2995 = vadd.f32 %v2924, %v2932
      %v2996 = vadd.f32 %v2925, %v2932
      %v2997 = vadd.f32 %v2926, %v2932
      %v2998 = vmax.f32 %v2934, 0.0
      %v2999 = vmax.f32 %v2935, 0.0
      %v3000 = vmax.f32 %v2936, 0.0
      %v3001 = vmax.f32 %v2937, 0.0
      %v3002 = vmax.f32 %v2938, 0.0
      %v3003 = vmax.f32 %v2939, 0.0
      %v3004 = vmax.f32 %v2940, 0.0
      %v3005 = vmax.f32 %v2941, 0.0
      %v3006 = vmax.f32 %v2942, 0.0
      %v3007 = vmax.f32 %v2943, 0.0
      %v3008 = vmax.f32 %v2944, 0.0
      %v3009 = vmax.f32 %v2945, 0.0
      %v3010 = vmax.f32 %v2946, 0.0
      %v3011 = vmax.f32 %v2947, 0.0
      %v3012 = vmax.f32 %v2948, 0.0
      %v3013 = vmax.f32 %v2949, 0.0
      %v3014 = vmax.f32 %v2950, 0.0
      %v3015 = vmax.f32 %v2951, 0.0
      %v3016 = vmax.f32 %v2952, 0.0
      %v3017 = vmax.f32 %v2953, 0.0
      %v3018 = vmax.f32 %v2954, 0.0
      %v3019 = vmax.f32 %v2955, 0.0
      %v3020 = vmax.f32 %v2956, 0.0
      %v3021 = vmax.f32 %v2957, 0.0
      %v3022 = vmax.f32 %v2958, 0.0
      %v3023 = vmax.f32 %v2959, 0.0
      %v3024 = vmax.f32 %v2960, 0.0
      %v3025 = vmax.f32 %v2961, 0.0
      %v3026 = vmax.f32 %v2962, 0.0
      %v3027 = vmax.f32 %v2963, 0.0
      %v3028 = vmax.f32 %v2964, 0.0
      %v3029 = vmax.f32 %v2965, 0.0
      %v3030 = vmax.f32 %v2966, 0.0
      %v3031 = vmax.f32 %v2967, 0.0
      %v3032 = vmax.f32 %v2968, 0.0
      %v3033 = vmax.f32 %v2969, 0.0
      %v3034 = vmax.f32 %v2970, 0.0
      %v3035 = vmax.f32 %v2971, 0.0
      %v3036 = vmax.f32 %v2972, 0.0
      %v3037 = vmax.f32 %v2973, 0.0
      %v3038 = vmax.f32 %v2974, 0.0
      %v3039 = vmax.f32 %v2975, 0.0
      %v3040 = vmax.f32 %v2976, 0.0
      %v3041 = vmax.f32 %v2977, 0.0
      %v3042 = vmax.f32 %v2978, 0.0
      %v3043 = vmax.f32 %v2979, 0.0
      %v3044 = vmax.f32 %v2980, 0.0
      %v3045 = vmax.f32 %v2981, 0.0
      %v3046 = vmax.f32 %v2982, 0.0
      %v3047 = vmax.f32 %v2983, 0.0
      %v3048 = vmax.f32 %v2984, 0.0
      %v3049 = vmax.f32 %v2985, 0.0
      %v3050 = vmax.f32 %v2986, 0.0
      %v3051 = vmax.f32 %v2987, 0.0
      %v3052 = vmax.f32 %v2988, 0.0
      %v3053 = vmax.f32 %v2989, 0.0
      %v3054 = vmax.f32 %v2990, 0.0
      %v3055 = vmax.f32 %v2991, 0.0
      %v3056 = vmax.f32 %v2992, 0.0
      %v3057 = vmax.f32 %v2993, 0.0
      %v3058 = vmax.f32 %v2994, 0.0
      %v3059 = vmax.f32 %v2995, 0.0
      %v3060 = vmax.f32 %v2996, 0.0
      %v3061 = vmax.f32 %v2997, 0.0
      %v3062 = vpack.c.bf16 %v2999, %v2998
      %v3063 = vpack.c.bf16 %v3001, %v3000
      %v3064 = vpack.c.bf16 %v3003, %v3002
      %v3065 = vpack.c.bf16 %v3005, %v3004
      %v3066 = vpack.c.bf16 %v3007, %v3006
      %v3067 = vpack.c.bf16 %v3009, %v3008
      %v3068 = vpack.c.bf16 %v3011, %v3010
      %v3069 = vpack.c.bf16 %v3013, %v3012
      %v3070 = vpack.c.bf16 %v3015, %v3014
      %v3071 = vpack.c.bf16 %v3017, %v3016
      %v3072 = vpack.c.bf16 %v3019, %v3018
      %v3073 = vpack.c.bf16 %v3021, %v3020
      %v3074 = vpack.c.bf16 %v3023, %v3022
      %v3075 = vpack.c.bf16 %v3025, %v3024
      %v3076 = vpack.c.bf16 %v3027, %v3026
      %v3077 = vpack.c.bf16 %v3029, %v3028
      %v3078 = vpack.c.bf16 %v3031, %v3030
      %v3079 = vpack.c.bf16 %v3033, %v3032
      %v3080 = vpack.c.bf16 %v3035, %v3034
      %v3081 = vpack.c.bf16 %v3037, %v3036
      %v3082 = vpack.c.bf16 %v3039, %v3038
      %v3083 = vpack.c.bf16 %v3041, %v3040
      %v3084 = vpack.c.bf16 %v3043, %v3042
      %v3085 = vpack.c.bf16 %v3045, %v3044
      %v3086 = vpack.c.bf16 %v3047, %v3046
      %v3087 = vpack.c.bf16 %v3049, %v3048
      %v3088 = vpack.c.bf16 %v3051, %v3050
      %v3089 = vpack.c.bf16 %v3053, %v3052
      %v3090 = vpack.c.bf16 %v3055, %v3054
      %v3091 = vpack.c.bf16 %v3057, %v3056
      %v3092 = vpack.c.bf16 %v3059, %v3058
      %v3093 = vpack.c.bf16 %v3061, %v3060
      %v3094 = vld [vmem:[%s412] sm:$0xff]
      %v3095 = vld [vmem:[%s412 + $0x8] sm:$0xff]
      %v3096 = vld [vmem:[%s412 + $0x10] sm:$0xff]
      %v3097 = vld [vmem:[%s412 + $0x18] sm:$0xff]
      %v3099 = vlaneseq
      %v3100 = vshrl.u32 %v3099, 7
      %v3101 = vsub.s32 0, %v3100
      %v3102 = vrot.slane %v610, %v3101
      %v3103 = vlaneseq
      %v3104 = vshrl.u32 %v3103, 7
      %v3105 = vsub.s32 1, %v3104
      %v3106 = vrot.slane %v610, %v3105
      %v3107 = vlaneseq
      %v3108 = vshrl.u32 %v3107, 7
      %v3109 = vsub.s32 2, %v3108
      %v3110 = vrot.slane %v610, %v3109
      %v3111 = vlaneseq
      %v3112 = vshrl.u32 %v3111, 7
      %v3113 = vsub.s32 3, %v3112
      %v3114 = vrot.slane %v610, %v3113
      %v3119 = vmul.f32 %v3094, %v3102
      %v3120 = vmul.f32 %v3095, %v3106
      %v3121 = vmul.f32 %v3096, %v3110
      %v3122 = vmul.f32 %v3097, %v3114
      %v3123 = vpack.c.bf16 %v3119, %v3119
      %v3124 = vpack.c.bf16 %v3120, %v3120
      %v3125 = vpack.c.bf16 %v3121, %v3121
      %v3126 = vpack.c.bf16 %v3122, %v3122
      %3127 = vmatprep.subr.bf16.mxu0 %v2058
      %3128 = vmatpush1.bf16.msra.mxu0 %v2057
      %3129 = vmatprep.subr.bf16.mxu0 %v2054
      %3130 = vmatpush1.bf16.msra.mxu0 %v2053
      %3131 = vmatprep.subr.bf16.mxu0 %v2050
      %3132 = vmatpush1.bf16.msra.mxu0 %v2049
      %3133 = vmatprep.subr.bf16.mxu0 %v2046
      %3134 = vmatpush1.bf16.msra.mxu0 %v2045
      %3135 = vmatprep.subr.bf16.mxu0 %v2042
      %3136 = vmatpush1.bf16.msra.mxu0 %v2041
      %3137 = vmatprep.subr.bf16.mxu0 %v2038
      %3138 = vmatpush1.bf16.msra.mxu0 %v2037
      %3139 = vmatprep.subr.bf16.mxu0 %v2034
      %3140 = vmatpush1.bf16.msra.mxu0 %v2033
      %3141 = vmatprep.subr.bf16.mxu0 %v2030
      %3142 = vmatpush1.bf16.msra.mxu0 %v2029
      %3143 = vmatprep.subr.bf16.mxu0 %v2090
      %3144 = vmatpush2.bf16.msra.mxu0 %v2089
      %3145 = vmatprep.subr.bf16.mxu0 %v2086
      %3146 = vmatpush2.bf16.msra.mxu0 %v2085
      %3147 = vmatprep.subr.bf16.mxu0 %v2082
      %3148 = vmatpush2.bf16.msra.mxu0 %v2081
      %3149 = vmatprep.subr.bf16.mxu0 %v2078
      %3150 = vmatpush2.bf16.msra.mxu0 %v2077
      %3151 = vmatprep.subr.bf16.mxu0 %v2074
      %3152 = vmatpush2.bf16.msra.mxu0 %v2073
      %3153 = vmatprep.subr.bf16.mxu0 %v2070
      %3154 = vmatpush2.bf16.msra.mxu0 %v2069
      %3155 = vmatprep.subr.bf16.mxu0 %v2066
      %3156 = vmatpush2.bf16.msra.mxu0 %v2065
      %3157 = vmatprep.subr.bf16.mxu0 %v2062
      %3158 = vmatpush2.bf16.msra.mxu0 %v2061
      %3159 = vmatprep.mubr.bf16.mxu0 %v3124
      %3160 = vmatmul.mubr.bf16.gmra.mxu0 %v3123
      %v3161 = vpop.f32.mrf.mxu0
      %v3162 = vadd.f32 0.0, %v3161
      %v3163 = vpop.f32.mrf.mxu0
      %v3164 = vadd.f32 0.0, %v3163
      %v3165 = vpop.f32.mrf.mxu0
      %v3166 = vpop.f32.mrf.mxu0
      %3167 = vdwg.mxu0
      %3168 = vmatprep.subr.bf16.mxu0 %v2122
      %3169 = vmatpush1.bf16.msra.mxu0 %v2121
      %3170 = vmatprep.subr.bf16.mxu0 %v2118
      %3171 = vmatpush1.bf16.msra.mxu0 %v2117
      %3172 = vmatprep.subr.bf16.mxu0 %v2114
      %3173 = vmatpush1.bf16.msra.mxu0 %v2113
      %3174 = vmatprep.subr.bf16.mxu0 %v2110
      %3175 = vmatpush1.bf16.msra.mxu0 %v2109
      %3176 = vmatprep.subr.bf16.mxu0 %v2106
      %3177 = vmatpush1.bf16.msra.mxu0 %v2105
      %3178 = vmatprep.subr.bf16.mxu0 %v2102
      %3179 = vmatpush1.bf16.msra.mxu0 %v2101
      %3180 = vmatprep.subr.bf16.mxu0 %v2098
      %3181 = vmatpush1.bf16.msra.mxu0 %v2097
      %3182 = vmatprep.subr.bf16.mxu0 %v2094
      %3183 = vmatpush1.bf16.msra.mxu0 %v2093
      %3184 = vmatprep.subr.bf16.mxu0 %v2154
      %3185 = vmatpush2.bf16.msra.mxu0 %v2153
      %3186 = vmatprep.subr.bf16.mxu0 %v2150
      %3187 = vmatpush2.bf16.msra.mxu0 %v2149
      %3188 = vmatprep.subr.bf16.mxu0 %v2146
      %3189 = vmatpush2.bf16.msra.mxu0 %v2145
      %3190 = vmatprep.subr.bf16.mxu0 %v2142
      %3191 = vmatpush2.bf16.msra.mxu0 %v2141
      %3192 = vmatprep.subr.bf16.mxu0 %v2138
      %3193 = vmatpush2.bf16.msra.mxu0 %v2137
      %3194 = vmatprep.subr.bf16.mxu0 %v2134
      %3195 = vmatpush2.bf16.msra.mxu0 %v2133
      %3196 = vmatprep.subr.bf16.mxu0 %v2130
      %3197 = vmatpush2.bf16.msra.mxu0 %v2129
      %3198 = vmatprep.subr.bf16.mxu0 %v2126
      %3199 = vmatpush2.bf16.msra.mxu0 %v2125
      %3200 = vmatprep.mubr.bf16.mxu0 %v3126
      %3201 = vmatmul.mubr.bf16.gmra.mxu0 %v3125
      %v3202 = vpop.f32.mrf.mxu0
      %v3203 = vadd.f32 %v3162, %v3202
      %v3204 = vpop.f32.mrf.mxu0
      %v3205 = vadd.f32 %v3164, %v3204
      %v3206 = vpop.f32.mrf.mxu0
      %v3207 = vpop.f32.mrf.mxu0
      %3208 = vdwg.mxu0
      %3209 = vmatprep.subr.bf16.mxu0 %v2060
      %3210 = vmatpush1.bf16.msra.mxu0 %v2059
      %3211 = vmatprep.subr.bf16.mxu0 %v2056
      %3212 = vmatpush1.bf16.msra.mxu0 %v2055
      %3213 = vmatprep.subr.bf16.mxu0 %v2052
      %3214 = vmatpush1.bf16.msra.mxu0 %v2051
      %3215 = vmatprep.subr.bf16.mxu0 %v2048
      %3216 = vmatpush1.bf16.msra.mxu0 %v2047
      %3217 = vmatprep.subr.bf16.mxu0 %v2044
      %3218 = vmatpush1.bf16.msra.mxu0 %v2043
      %3219 = vmatprep.subr.bf16.mxu0 %v2040
      %3220 = vmatpush1.bf16.msra.mxu0 %v2039
      %3221 = vmatprep.subr.bf16.mxu0 %v2036
      %3222 = vmatpush1.bf16.msra.mxu0 %v2035
      %3223 = vmatprep.subr.bf16.mxu0 %v2032
      %3224 = vmatpush1.bf16.msra.mxu0 %v2031
      %3225 = vmatprep.subr.bf16.mxu0 %v2092
      %3226 = vmatpush2.bf16.msra.mxu0 %v2091
      %3227 = vmatprep.subr.bf16.mxu0 %v2088
      %3228 = vmatpush2.bf16.msra.mxu0 %v2087
      %3229 = vmatprep.subr.bf16.mxu0 %v2084
      %3230 = vmatpush2.bf16.msra.mxu0 %v2083
      %3231 = vmatprep.subr.bf16.mxu0 %v2080
      %3232 = vmatpush2.bf16.msra.mxu0 %v2079
      %3233 = vmatprep.subr.bf16.mxu0 %v2076
      %3234 = vmatpush2.bf16.msra.mxu0 %v2075
      %3235 = vmatprep.subr.bf16.mxu0 %v2072
      %3236 = vmatpush2.bf16.msra.mxu0 %v2071
      %3237 = vmatprep.subr.bf16.mxu0 %v2068
      %3238 = vmatpush2.bf16.msra.mxu0 %v2067
      %3239 = vmatprep.subr.bf16.mxu0 %v2064
      %3240 = vmatpush2.bf16.msra.mxu0 %v2063
      %3241 = vmatprep.mubr.bf16.mxu0 %v3124
      %3242 = vmatmul.mubr.bf16.gmra.mxu0 %v3123
      %v3243 = vpop.f32.mrf.mxu0
      %v3244 = vadd.f32 0.0, %v3243
      %v3245 = vpop.f32.mrf.mxu0
      %v3246 = vadd.f32 0.0, %v3245
      %v3247 = vpop.f32.mrf.mxu0
      %v3248 = vpop.f32.mrf.mxu0
      %3249 = vdwg.mxu0
      %3250 = vmatprep.subr.bf16.mxu0 %v2124
      %3251 = vmatpush1.bf16.msra.mxu0 %v2123
      %3252 = vmatprep.subr.bf16.mxu0 %v2120
      %3253 = vmatpush1.bf16.msra.mxu0 %v2119
      %3254 = vmatprep.subr.bf16.mxu0 %v2116
      %3255 = vmatpush1.bf16.msra.mxu0 %v2115
      %3256 = vmatprep.subr.bf16.mxu0 %v2112
      %3257 = vmatpush1.bf16.msra.mxu0 %v2111
      %3258 = vmatprep.subr.bf16.mxu0 %v2108
      %3259 = vmatpush1.bf16.msra.mxu0 %v2107
      %3260 = vmatprep.subr.bf16.mxu0 %v2104
      %3261 = vmatpush1.bf16.msra.mxu0 %v2103
      %3262 = vmatprep.subr.bf16.mxu0 %v2100
      %3263 = vmatpush1.bf16.msra.mxu0 %v2099
      %3264 = vmatprep.subr.bf16.mxu0 %v2096
      %3265 = vmatpush1.bf16.msra.mxu0 %v2095
      %3266 = vmatprep.subr.bf16.mxu0 %v2156
      %3267 = vmatpush2.bf16.msra.mxu0 %v2155
      %3268 = vmatprep.subr.bf16.mxu0 %v2152
      %3269 = vmatpush2.bf16.msra.mxu0 %v2151
      %3270 = vmatprep.subr.bf16.mxu0 %v2148
      %3271 = vmatpush2.bf16.msra.mxu0 %v2147
      %3272 = vmatprep.subr.bf16.mxu0 %v2144
      %3273 = vmatpush2.bf16.msra.mxu0 %v2143
      %3274 = vmatprep.subr.bf16.mxu0 %v2140
      %3275 = vmatpush2.bf16.msra.mxu0 %v2139
      %3276 = vmatprep.subr.bf16.mxu0 %v2136
      %3277 = vmatpush2.bf16.msra.mxu0 %v2135
      %3278 = vmatprep.subr.bf16.mxu0 %v2132
      %3279 = vmatpush2.bf16.msra.mxu0 %v2131
      %3280 = vmatprep.subr.bf16.mxu0 %v2128
      %3281 = vmatpush2.bf16.msra.mxu0 %v2127
      %3282 = vmatprep.mubr.bf16.mxu0 %v3126
      %3283 = vmatmul.mubr.bf16.gmra.mxu0 %v3125
      %v3284 = vpop.f32.mrf.mxu0
      %v3285 = vadd.f32 %v3244, %v3284
      %v3286 = vpop.f32.mrf.mxu0
      %v3287 = vadd.f32 %v3246, %v3286
      %v3288 = vpop.f32.mrf.mxu0
      %v3289 = vpop.f32.mrf.mxu0
      %3290 = vdwg.mxu0
      %v3291 = vmul.f32 %v3203, %v3102
      %v3292 = vmul.f32 %v3205, %v3106
      %v3293 = vmul.f32 %v3285, %v3110
      %v3294 = vmul.f32 %v3287, %v3114
      %v3295 = vpack.c.bf16 %v3291, %v3291
      %v3296 = vpack.c.bf16 %v3292, %v3292
      %v3297 = vpack.c.bf16 %v3293, %v3293
      %v3298 = vpack.c.bf16 %v3294, %v3294
      %3299 = vmatprep.subr.bf16.mxu0 0
      %3300 = vmatpush1.bf16.msra.mxu0 %v3069
      %3301 = vmatprep.subr.bf16.mxu0 0
      %3302 = vmatpush1.bf16.msra.mxu0 %v3068
      %3303 = vmatprep.subr.bf16.mxu0 0
      %3304 = vmatpush1.bf16.msra.mxu0 %v3067
      %3305 = vmatprep.subr.bf16.mxu0 0
      %3306 = vmatpush1.bf16.msra.mxu0 %v3066
      %3307 = vmatprep.subr.bf16.mxu0 0
      %3308 = vmatpush1.bf16.msra.mxu0 %v3065
      %3309 = vmatprep.subr.bf16.mxu0 0
      %3310 = vmatpush1.bf16.msra.mxu0 %v3064
      %3311 = vmatprep.subr.bf16.mxu0 0
      %3312 = vmatpush1.bf16.msra.mxu0 %v3063
      %3313 = vmatprep.subr.bf16.mxu0 0
      %3314 = vmatpush1.bf16.msra.mxu0 %v3062
      %3315 = vmatprep.subr.bf16.mxu0 0
      %3316 = vmatpush2.bf16.msra.mxu0 %v3077
      %3317 = vmatprep.subr.bf16.mxu0 0
      %3318 = vmatpush2.bf16.msra.mxu0 %v3076
      %3319 = vmatprep.subr.bf16.mxu0 0
      %3320 = vmatpush2.bf16.msra.mxu0 %v3075
      %3321 = vmatprep.subr.bf16.mxu0 0
      %3322 = vmatpush2.bf16.msra.mxu0 %v3074
      %3323 = vmatprep.subr.bf16.mxu0 0
      %3324 = vmatpush2.bf16.msra.mxu0 %v3073
      %3325 = vmatprep.subr.bf16.mxu0 0
      %3326 = vmatpush2.bf16.msra.mxu0 %v3072
      %3327 = vmatprep.subr.bf16.mxu0 0
      %3328 = vmatpush2.bf16.msra.mxu0 %v3071
      %3329 = vmatprep.subr.bf16.mxu0 0
      %3330 = vmatpush2.bf16.msra.mxu0 %v3070
      %3331 = vmatprep.mubr.bf16.mxu0 %v3296
      %3332 = vmatmul.mubr.bf16.gmra.mxu0 %v3295
      %v3333 = vpop.f32.mrf.mxu0
      %v3334 = vadd.f32 0.0, %v3333
      %v3335 = vpop.f32.mrf.mxu0
      %v3336 = vpop.f32.mrf.mxu0
      %v3337 = vpop.f32.mrf.mxu0
      %3338 = vdwg.mxu0
      %3339 = vmatprep.subr.bf16.mxu0 0
      %3340 = vmatpush1.bf16.msra.mxu0 %v3085
      %3341 = vmatprep.subr.bf16.mxu0 0
      %3342 = vmatpush1.bf16.msra.mxu0 %v3084
      %3343 = vmatprep.subr.bf16.mxu0 0
      %3344 = vmatpush1.bf16.msra.mxu0 %v3083
      %3345 = vmatprep.subr.bf16.mxu0 0
      %3346 = vmatpush1.bf16.msra.mxu0 %v3082
      %3347 = vmatprep.subr.bf16.mxu0 0
      %3348 = vmatpush1.bf16.msra.mxu0 %v3081
      %3349 = vmatprep.subr.bf16.mxu0 0
      %3350 = vmatpush1.bf16.msra.mxu0 %v3080
      %3351 = vmatprep.subr.bf16.mxu0 0
      %3352 = vmatpush1.bf16.msra.mxu0 %v3079
      %3353 = vmatprep.subr.bf16.mxu0 0
      %3354 = vmatpush1.bf16.msra.mxu0 %v3078
      %3355 = vmatprep.subr.bf16.mxu0 0
      %3356 = vmatpush2.bf16.msra.mxu0 %v3093
      %3357 = vmatprep.subr.bf16.mxu0 0
      %3358 = vmatpush2.bf16.msra.mxu0 %v3092
      %3359 = vmatprep.subr.bf16.mxu0 0
      %3360 = vmatpush2.bf16.msra.mxu0 %v3091
      %3361 = vmatprep.subr.bf16.mxu0 0
      %3362 = vmatpush2.bf16.msra.mxu0 %v3090
      %3363 = vmatprep.subr.bf16.mxu0 0
      %3364 = vmatpush2.bf16.msra.mxu0 %v3089
      %3365 = vmatprep.subr.bf16.mxu0 0
      %3366 = vmatpush2.bf16.msra.mxu0 %v3088
      %3367 = vmatprep.subr.bf16.mxu0 0
      %3368 = vmatpush2.bf16.msra.mxu0 %v3087
      %3369 = vmatprep.subr.bf16.mxu0 0
      %3370 = vmatpush2.bf16.msra.mxu0 %v3086
      %3371 = vmatprep.mubr.bf16.mxu0 %v3298
      %3372 = vmatmul.mubr.bf16.gmra.mxu0 %v3297
      %v3373 = vpop.f32.mrf.mxu0
      %v3374 = vadd.f32 %v3334, %v3373
      %v3375 = vpop.f32.mrf.mxu0
      %v3376 = vpop.f32.mrf.mxu0
      %v3377 = vpop.f32.mrf.mxu0
      %3378 = vdwg.mxu0
      %v3379 = vpack.c.bf16 %v3374, %v3374
      %v3380 = vld [vmem:[%s7] sm:$0xf]
      %v3381 = vld [vmem:[%s7 + $0x4] sm:$0xf]
      %v3382 = vld [vmem:[%s7 + $0x8] sm:$0xf]
      %v3383 = vld [vmem:[%s7 + $0xc] sm:$0xf]
      %v3384 = vld [vmem:[%s7 + $0x10] sm:$0xf]
      %v3385 = vld [vmem:[%s7 + $0x14] sm:$0xf]
      %v3386 = vld [vmem:[%s7 + $0x18] sm:$0xf]
      %v3387 = vld [vmem:[%s7 + $0x1c] sm:$0xf]
      %v3388 = vld [vmem:[%s7 + $0x20] sm:$0xf]
      %v3389 = vld [vmem:[%s7 + $0x24] sm:$0xf]
      %v3390 = vld [vmem:[%s7 + $0x28] sm:$0xf]
      %v3391 = vld [vmem:[%s7 + $0x2c] sm:$0xf]
      %v3392 = vld [vmem:[%s7 + $0x30] sm:$0xf]
      %v3393 = vld [vmem:[%s7 + $0x34] sm:$0xf]
      %v3394 = vld [vmem:[%s7 + $0x38] sm:$0xf]
      %v3395 = vld [vmem:[%s7 + $0x3c] sm:$0xf]
      %v3396 = vld [vmem:[%s8] sm:$0x1]
      %v3398 = vlaneseq
      %v3399 = vshrl.u32 %v3398, 7
      %v3400 = vsub.s32 0, %v3399
      %v3401 = vrot.slane %v3396, %v3400
      %v3419 = vunpack.c.l.b16 %v3380
      %v3420 = vunpack.c.l.b16 %v3381
      %v3421 = vunpack.c.l.b16 %v3382
      %v3422 = vunpack.c.l.b16 %v3383
      %v3423 = vunpack.c.l.b16 %v3384
      %v3424 = vunpack.c.l.b16 %v3385
      %v3425 = vunpack.c.l.b16 %v3386
      %v3426 = vunpack.c.l.b16 %v3387
      %v3427 = vunpack.c.l.b16 %v3388
      %v3428 = vunpack.c.l.b16 %v3389
      %v3429 = vunpack.c.l.b16 %v3390
      %v3430 = vunpack.c.l.b16 %v3391
      %v3431 = vunpack.c.l.b16 %v3392
      %v3432 = vunpack.c.l.b16 %v3393
      %v3433 = vunpack.c.l.b16 %v3394
      %v3434 = vunpack.c.l.b16 %v3395
      %v3435 = vpack.c.b16 %v3420, %v3419
      %v3436 = vpack.c.b16 %v3422, %v3421
      %v3437 = vpack.c.b16 %v3424, %v3423
      %v3438 = vpack.c.b16 %v3426, %v3425
      %v3439 = vpack.c.b16 %v3428, %v3427
      %v3440 = vpack.c.b16 %v3430, %v3429
      %v3441 = vpack.c.b16 %v3432, %v3431
      %v3442 = vpack.c.b16 %v3434, %v3433
      %3451 = vmatprep.subr.bf16.mxu0 0
      %3452 = vmatpush1.bf16.msra.mxu0 %v3442
      %3453 = vmatprep.subr.bf16.mxu0 0
      %3454 = vmatpush1.bf16.msra.mxu0 %v3441
      %3455 = vmatprep.subr.bf16.mxu0 0
      %3456 = vmatpush1.bf16.msra.mxu0 %v3440
      %3457 = vmatprep.subr.bf16.mxu0 0
      %3458 = vmatpush1.bf16.msra.mxu0 %v3439
      %3459 = vmatprep.subr.bf16.mxu0 0
      %3460 = vmatpush1.bf16.msra.mxu0 %v3438
      %3461 = vmatprep.subr.bf16.mxu0 0
      %3462 = vmatpush1.bf16.msra.mxu0 %v3437
      %3463 = vmatprep.subr.bf16.mxu0 0
      %3464 = vmatpush1.bf16.msra.mxu0 %v3436
      %3465 = vmatprep.subr.bf16.mxu0 0
      %3466 = vmatpush1.bf16.msra.mxu0 %v3435
      %3467 = vmatprep.subr.bf16.mxu0 0
      %3468 = vmatpush2.bf16.msra.mxu0 0
      %3469 = vmatprep.subr.bf16.mxu0 0
      %3470 = vmatpush2.bf16.msra.mxu0 0
      %3471 = vmatprep.subr.bf16.mxu0 0
      %3472 = vmatpush2.bf16.msra.mxu0 0
      %3473 = vmatprep.subr.bf16.mxu0 0
      %3474 = vmatpush2.bf16.msra.mxu0 0
      %3475 = vmatprep.subr.bf16.mxu0 0
      %3476 = vmatpush2.bf16.msra.mxu0 0
      %3477 = vmatprep.subr.bf16.mxu0 0
      %3478 = vmatpush2.bf16.msra.mxu0 0
      %3479 = vmatprep.subr.bf16.mxu0 0
      %3480 = vmatpush2.bf16.msra.mxu0 0
      %3481 = vmatprep.subr.bf16.mxu0 0
      %3482 = vmatpush2.bf16.msra.mxu0 0
      %3483 = vmatprep.mubr.bf16.mxu0 0
      %3484 = vmatmul.mubr.bf16.gmra.mxu0 %v3379
      %v3485 = vpop.f32.mrf.mxu0
      %v3486 = vadd.f32 %v3401, %v3485
      %v3487 = vpop.f32.mrf.mxu0
      %v3488 = vpop.f32.mrf.mxu0
      %v3489 = vpop.f32.mrf.mxu0
      %3490 = vdwg.mxu0
      %v3491 = vlaneseq
      %v3492 = vand.u32 %v3491, 127
      %vm3493 = vcmp.lt.s32.totalorder %v3492, 2
      %v3494 = vsel %vm3493, %v3486, -1e+30
      %3495 = vmax.xlane.f32.xlu0 %v3494
      %v3496 = vpop.xlane.xlu0 %3495
      %v3497 = vsub.f32 %v3494, %v3496
      %v3498 = vmul.f32 %v3497, 1.442695
      %v3499 = vpow.pop %v3498
      %v3500 = vsel %vm3493, %v3499, 0.0
      %3501 = vadd.xlane.f32.xlu0 %v3500
      %v3502 = vpop.xlane.xlu0 %3501
      %v3503 = vlog2.pop %v3502
      %v3504 = vmul.f32 %v3503, 0.6931472
      %v3505 = vadd.f32 %v3504, %v3496
      %v3506 = vsub.f32 %v3494, %v3505
      %3507 = vst [vmem:[%s416] sm:$0xff] %v3506
      %p3508 = scmp.lt.s32.totalorder %s20, 1
      %s3509 = scalar_select %p3508, %s20, 1
      %s3510 = smul.addr %s3509, 8
      %s3511 = scalar_lea.vmem %s9, %s3510
      // Predicated region
      $region57: #{gcn_forward.1} parent=55 // pred_check
        %p3512 = pneg %p252
      $region58: #{gcn_forward.1} parent=55 // pred_check_branch
        %3514 = sbr.rel (%p3512) target = $region60
      $region59: #{gcn_forward.1} parent=55 // pred_region
        _
      $region60: #{gcn_forward.1} parent=55 // pred_fallthru
        _
    $region56: #{gcn_forward.1} parent=5 // pred_fallthru
      _
    %p3515 = scmp.le.s32.totalorder 2, %s15
    // Predicated region
    $region61: #{gcn_forward.1} parent=5 // pred_check
      %p3516 = pneg %p3515
    $region62: #{gcn_forward.1} parent=5 // pred_check_branch
      %3518 = sbr.rel (%p3516) target = $region64
    $region63: #{gcn_forward.1} parent=5 // pred_region
      %s3519 = ssub.s32 %s15, 2
      // Predicated region
      $region65: #{gcn_forward.1} parent=63 // pred_check
        %p3520 = pneg %p258
      $region66: #{gcn_forward.1} parent=63 // pred_check_branch
        %3522 = sbr.rel (%p3520) target = $region68
      $region67: #{gcn_forward.1} parent=63 // pred_region
        %p3523 = scmp.lt.s32.totalorder %s21, 1
        %s3524 = scalar_select %p3523, %s21, 1
        %s3525 = smul.addr %s3524, 8
        %s3526 = scalar_lea.vmem %s9, %s3525
      $region68: #{gcn_forward.1} parent=63 // pred_fallthru
        _
    $region64: #{gcn_forward.1} parent=5 // pred_fallthru
      _
  $region6: #{gcn_forward.1} parent=0 // loop_footer
    %s19 = sadd.s32 1, %s15
  $region7: #{gcn_forward.1} parent=0 // loop_footer_branch
    %14 = sbr.rel target = $region3
  $region8: #{gcn_forward.1} parent=0 // loop_exit
    _

</llo_original>
